<compile_context>
chip_gen: v5e
topology: v5e:2x2
jax: 0.10.0
libtpu: 0.0.40
codegen_flags: <defaults>
</compile_context>

<pallas_src>
import functools
import math

import jax
import jax.numpy as jnp
from jax import lax
from jax.experimental import pallas as pl
from jax.experimental.pallas import tpu as pltpu

LANES = 128                       # TPU lane width; K / C_out padding target
_VMEM_LIMIT = 32 * 1024 * 1024    # scoped-VMEM cap, safe on v5e/v6e/v7x


def _round_up(x, m):
    return (x + m - 1) // m * m


# --------------------------------------------------------------------------
# Elementwise helpers used inside kernels
# --------------------------------------------------------------------------
def _erf_approx(x):
    # Abramowitz & Stegun 7.1.26 polynomial (max abs error ~1.5e-7).
    p = jnp.float32(0.3275911)
    a1 = jnp.float32(0.254829592)
    a2 = jnp.float32(-0.284496736)
    a3 = jnp.float32(1.421413741)
    a4 = jnp.float32(-1.453152027)
    a5 = jnp.float32(1.061405429)
    s = jnp.where(x >= 0, jnp.float32(1.0), jnp.float32(-1.0))
    ax = jnp.abs(x)
    t = 1.0 / (1.0 + p * ax)
    poly = ((((a5 * t + a4) * t + a3) * t + a2) * t + a1) * t
    return s * (1.0 - poly * jnp.exp(-ax * ax))


def _gelu_exact(x):
    # nn.GELU() default (approximate='none'): 0.5*x*(1+erf(x/sqrt(2)))
    return jnp.float32(0.5) * x * (1.0 + _erf_approx(x * jnp.float32(1.0 / math.sqrt(2.0))))


# --------------------------------------------------------------------------
# Pallas kernels (whole layer = one block; everything stays VMEM resident)
# --------------------------------------------------------------------------
def _conv_bn_gelu_kernel(p_ref, w_ref, b_ref, g_ref, be_ref, o_ref):
    """Fused: im2col matmul (MXU, f32 acc) + bias + BatchNorm (batch stats,
    centered variance) + exact GELU; bf16 lane-dense output."""
    z = jnp.dot(p_ref[...], w_ref[...], preferred_element_type=jnp.float32) + b_ref[...]
    inv_n = jnp.float32(1.0 / z.shape[0])          # no padded rows: M is exact
    mean = jnp.sum(z, axis=0, keepdims=True) * inv_n
    zc = z - mean
    var = jnp.sum(zc * zc, axis=0, keepdims=True) * inv_n
    y = zc * lax.rsqrt(var + jnp.float32(1e-5)) * g_ref[...] + be_ref[...]
    o_ref[...] = _gelu_exact(y).astype(o_ref.dtype)


def _matmul_bias_kernel(p_ref, w_ref, b_ref, o_ref):
    o_ref[...] = (jnp.dot(p_ref[...], w_ref[...], preferred_element_type=jnp.float32)
                  + b_ref[...]).astype(o_ref.dtype)


def _matmul_kernel(x_ref, w_ref, o_ref):
    o_ref[...] = jnp.dot(x_ref[...], w_ref[...],
                         preferred_element_type=jnp.float32).astype(o_ref.dtype)


def _call_whole(kernel, out_shape, *args):
    """Grid-less pallas_call: every operand/result is one whole-array VMEM block."""
    vmem = pltpu.MemorySpace.VMEM
    return pl.pallas_call(
        kernel,
        out_shape=out_shape,
        in_specs=[pl.BlockSpec(memory_space=vmem) for _ in args],
        out_specs=pl.BlockSpec(memory_space=vmem),
        compiler_params=pltpu.CompilerParams(vmem_limit_bytes=_VMEM_LIMIT),
    )(*args)


# --------------------------------------------------------------------------
# Pallas wrappers
# --------------------------------------------------------------------------
def _im2col_3x3_dense(x_nhwc, k_pad):
    """Dense-K im2col (pad=1, stride=1): taps' REAL channels are contiguous;
    the total K axis is padded once to `k_pad`."""
    # TODO(synk): move the im2col in-kernel (9 shifted matmuls from a
    # VMEM-resident zero-padded activation) to drop this HBM materialization.
    n, h, w, c = x_nhwc.shape
    xp = jnp.pad(x_nhwc.astype(jnp.bfloat16), ((0, 0), (1, 1), (1, 1), (0, 0)))
    taps = [xp[:, kh:kh + h, kw:kw + w, :] for kh in range(3) for kw in range(3)]
    pat = jnp.concatenate(taps, axis=3).reshape(n * h * w, 9 * c)
    if k_pad > 9 * c:
        pat = jnp.pad(pat, ((0, 0), (0, k_pad - 9 * c)))
    return pat


def _pack_w3x3_dense(w_oihw, k_pad, c_out_pad):
    co, ci = w_oihw.shape[:2]
    w2d = jnp.transpose(w_oihw, (2, 3, 1, 0)).reshape(9 * ci, co)   # (kh,kw,ci) x co
    w2d = jnp.pad(w2d, ((0, k_pad - 9 * ci), (0, c_out_pad - co)))
    return w2d.astype(jnp.bfloat16)


def pallas_conv3x3_bn_gelu(x, w_oihw, bias, gamma, beta):
    """ttconv(3x3, s=1, p=1) + BatchNorm2d (training batch stats) + GELU,
    fully fused in one grid-less pallas_call."""
    n, h, w, c_in = x.shape
    c_out = w_oihw.shape[0]
    cpo = _round_up(c_out, LANES)
    kp = _round_up(9 * c_in, LANES)
    m = n * h * w
    patches = _im2col_3x3_dense(x, kp)
    w2d = _pack_w3x3_dense(w_oihw, kp, cpo)
    b2d = jnp.zeros((1, cpo), jnp.float32).at[0, :c_out].set(bias)
    g2d = jnp.zeros((1, cpo), jnp.float32).at[0, :c_out].set(gamma)
    be2d = jnp.zeros((1, cpo), jnp.float32).at[0, :c_out].set(beta)
    # TODO(synk): for much larger batches, split M over a "parallel" grid with
    # per-block BN partial sums so v7x's two TensorCores both engage.
    y = _call_whole(_conv_bn_gelu_kernel,
                    jax.ShapeDtypeStruct((m, cpo), jnp.bfloat16),
                    patches, w2d, b2d, g2d, be2d)
    return y[:, :c_out].reshape(n, h, w, c_out)


def pallas_conv3x3_bias(x, w_oihw, bias, out_dtype=jnp.bfloat16):
    """Plain ttconv(3x3, s=1, p=1) + bias (the `out` head convs)."""
    n, h, w, c_in = x.shape
    c_out = w_oihw.shape[0]
    cpo = _round_up(c_out, LANES)
    kp = _round_up(9 * c_in, LANES)
    m = n * h * w
    patches = _im2col_3x3_dense(x, kp)
    w2d = _pack_w3x3_dense(w_oihw, kp, cpo)
    b2d = jnp.zeros((1, cpo), jnp.float32).at[0, :c_out].set(bias)
    y = _call_whole(_matmul_bias_kernel,
                    jax.ShapeDtypeStruct((m, cpo), out_dtype),
                    patches, w2d, b2d)
    return y[:, :c_out].reshape(n, h, w, c_out)


def pallas_trans_conv2x2_s2(x, w_iohw):
    """F.conv_transpose2d(x, w, stride=2), kernel 2x2, no bias (non-overlapping).
    Weight packed as (C_in, 2*2*C_out_real) -> exactly 128 output lanes here."""
    n, h, w, c_in = x.shape
    c_out = w_iohw.shape[1]
    xf = x.reshape(n * h * w, c_in).astype(jnp.bfloat16)         # single cast, no re-pad
    w2d = jnp.transpose(w_iohw, (0, 2, 3, 1)).reshape(c_in, 4 * c_out).astype(jnp.bfloat16)
    y = _call_whole(_matmul_kernel,
                    jax.ShapeDtypeStruct((n * h * w, 4 * c_out), jnp.bfloat16),
                    xf, w2d)
    # TODO(synk): fold this sub-pixel de-interleave into an out BlockSpec
    # index_map to save the activation-sized XLA transpose.
    y = y.reshape(n, h, w, 2, 2, c_out)
    return jnp.transpose(y, (0, 1, 3, 2, 4, 5)).reshape(n, 2 * h, 2 * w, c_out)


# --------------------------------------------------------------------------
# Pure-JAX references for the Pallas-backed ops (same bf16/f32 conventions)
# --------------------------------------------------------------------------
def ref_conv3x3_bn_gelu(x, w_oihw, bias, gamma, beta):
    z = lax.conv_general_dilated(
        x.astype(jnp.bfloat16), w_oihw.astype(jnp.bfloat16), (1, 1), ((1, 1), (1, 1)),
        dimension_numbers=('NHWC', 'OIHW', 'NHWC'),
        preferred_element_type=jnp.float32) + bias
    m = jnp.mean(z, axis=(0, 1, 2), keepdims=True)
    v = jnp.mean((z - m) ** 2, axis=(0, 1, 2), keepdims=True)
    y = (z - m) / jnp.sqrt(v + 1e-5) * gamma + beta
    return jax.nn.gelu(y, approximate=False).astype(jnp.bfloat16)


def ref_conv3x3_bias(x, w_oihw, bias, out_dtype=jnp.bfloat16):
    z = lax.conv_general_dilated(
        x.astype(jnp.bfloat16), w_oihw.astype(jnp.bfloat16), (1, 1), ((1, 1), (1, 1)),
        dimension_numbers=('NHWC', 'OIHW', 'NHWC'),
        preferred_element_type=jnp.float32) + bias
    return z.astype(out_dtype)


def ref_trans_conv2x2_s2(x, w_iohw):
    w_eq = jnp.transpose(w_iohw, (1, 0, 2, 3))[:, :, ::-1, ::-1]
    y = lax.conv_general_dilated(
        x.astype(jnp.bfloat16), w_eq.astype(jnp.bfloat16), (1, 1), ((1, 1), (1, 1)),
        lhs_dilation=(2, 2),
        dimension_numbers=('NHWC', 'OIHW', 'NHWC'),
        preferred_element_type=jnp.float32)
    return y.astype(jnp.bfloat16)


# --------------------------------------------------------------------------
# Shared glue (kept in XLA: tiny next to the conv path)
# --------------------------------------------------------------------------
def _tt_kernel(c0, c1, c2):
    # kernel = tensordot(tensordot(cores0, cores1, [2],[0]), cores2, [3],[0])
    return jnp.einsum('aor,rbs,sc->aobc', c0, c1, c2)


def _group_norm_relu(x, num_groups, eps=1e-5):
    x = x.astype(jnp.float32)
    n, h, w, c = x.shape
    g = x.reshape(n, h, w, num_groups, c // num_groups)
    m = jnp.mean(g, axis=(1, 2, 4), keepdims=True)
    v = jnp.mean((g - m) ** 2, axis=(1, 2, 4), keepdims=True)
    y = ((g - m) / jnp.sqrt(v + eps)).reshape(n, h, w, c)
    return jnp.maximum(y, 0.0)          # affine weight=1, bias=0 at init


def _max_pool2(x):
    n, h, w, c = x.shape
    return x.reshape(n, h // 2, 2, w // 2, 2, c).max(axis=(2, 4))


def _embed_fc(p, x):
    # TODO(synk): tiny (batch x emb) matmuls; left to XLA rather than Pallas.
    h = jnp.dot(x, p['w1']) + p['b1']
    h = jax.nn.gelu(h, approximate=False)
    return jnp.dot(h, p['w2']) + p['b2']


def _up0_trans7(hidden, w_iohw):
    # up0: conv_transpose 7x7 / stride 7 on a 1x1 spatial input == one tiny
    # (batch x 64 x 3136) matmul; left to XLA (a pallas_call is pure overhead).
    return jnp.einsum('nc,cohw->nhwo', hidden.astype(jnp.bfloat16),
                      w_iohw.astype(jnp.bfloat16),
                      preferred_element_type=jnp.float32)


def _apply_conv_unit(fn, x, q):
    w = _tt_kernel(q['c0'], q['c1'], q['c2'])
    return fn(x, w, q['bias'], q['gamma'], q['beta'])


# --------------------------------------------------------------------------
# Student_ContextUnet forward (use_pallas switches Pallas kernels <-> JAX ref)
# --------------------------------------------------------------------------
def _forward(params, x_nchw, c_lbl, t, context_mask, *, use_pallas):
    if use_pallas:
        conv_bn_gelu, conv_bias, trans2 = (pallas_conv3x3_bn_gelu,
                                           pallas_conv3x3_bias,
                                           pallas_trans_conv2x2_s2)
    else:
        conv_bn_gelu, conv_bias, trans2 = (ref_conv3x3_bn_gelu,
                                           ref_conv3x3_bias,
                                           ref_trans_conv2x2_s2)

    def res_block(x, p):                 # Student_ResidualConvBlock, is_res=False
        x = _apply_conv_unit(conv_bn_gelu, x, p['conv1'])
        x = _apply_conv_unit(conv_bn_gelu, x, p['conv2'])
        return x

    x = jnp.transpose(x_nchw.astype(jnp.float32), (0, 2, 3, 1))   # NCHW -> NHWC

    # init_conv: ResidualConvBlock(in, n_feat, is_res=True), in != n_feat
    x1 = _apply_conv_unit(conv_bn_gelu, x, params['init']['conv1'])
    x2 = _apply_conv_unit(conv_bn_gelu, x1, params['init']['conv2'])
    x0 = (x1 + x2) / 1.414

    down1 = _max_pool2(res_block(x0, params['down1']))            # (N,14,14,F)
    down2 = _max_pool2(res_block(down1, params['down2']))         # (N, 7, 7,2F)

    # to_vec: AvgPool2d(7) + GELU
    hidden = jax.nn.gelu(jnp.mean(down2.astype(jnp.float32), axis=(1, 2)),
                         approximate=False)                       # (N,2F)

    n_classes = params['contextembed1']['w1'].shape[0]
    c1h = jax.nn.one_hot(c_lbl, n_classes, dtype=jnp.float32)
    cm = context_mask.astype(jnp.float32)[:, None]
    cm = -1.0 * (1.0 - jnp.tile(cm, (1, n_classes)))
    cvec = c1h * cm

    cemb1 = _embed_fc(params['contextembed1'], cvec)[:, None, None, :]
    temb1 = _embed_fc(params['timeembed1'], t.reshape(-1, 1))[:, None, None, :]
    cemb2 = _embed_fc(params['contextembed2'], cvec)[:, None, None, :]
    temb2 = _embed_fc(params['timeembed2'], t.reshape(-1, 1))[:, None, None, :]

    w_up0 = _tt_kernel(params['up0']['c0'], params['up0']['c1'], params['up0']['c2'])
    u0 = _group_norm_relu(_up0_trans7(hidden, w_up0), 8)          # (N,7,7,2F)

    def unet_up(xin, p):
        w_up = _tt_kernel(p['up']['c0'], p['up']['c1'], p['up']['c2'])  # (Cin,Cout,2,2)
        y = trans2(xin, w_up)
        y = res_block(y, p['res1'])
        return res_block(y, p['res2'])

    u1 = unet_up(jnp.concatenate([cemb1 * u0 + temb1,
                                  down2.astype(jnp.float32)], axis=-1), params['up1'])
    u2 = unet_up(jnp.concatenate([cemb2 * u1.astype(jnp.float32) + temb2,
                                  down1.astype(jnp.float32)], axis=-1), params['up2'])

    h = jnp.concatenate([u2, x0], axis=-1)                        # (N,28,28,2F)
    w_o1 = _tt_kernel(params['out1']['c0'], params['out1']['c1'], params['out1']['c2'])
    h = conv_bias(h, w_o1, params['out1']['bias'])
    h = _group_norm_relu(h, 8)
    w_o2 = _tt_kernel(params['out2']['c0'], params['out2']['c1'], params['out2']['c2'])
    h = conv_bias(h, w_o2, params['out2']['bias'], out_dtype=jnp.float32)

    return jnp.transpose(h, (0, 3, 1, 2))                         # NHWC -> NCHW


# --------------------------------------------------------------------------
# Parameters (deterministic, shapes from the PyTorch __init__)
# --------------------------------------------------------------------------
def _xavier_uniform(key, shape):
    rf = 1
    for s in shape[2:]:
        rf *= s
    fan_in = shape[1] * rf
    fan_out = shape[0] * rf
    bound = math.sqrt(6.0 / (fan_in + fan_out))
    return jax.random.uniform(key, shape, jnp.float32, -bound, bound)


def init_params(key, in_channels, n_feat, n_classes):
    keys = iter(jax.random.split(key, 256))
    nk = lambda: next(keys)

    def conv_unit(cin, cout, with_bn=True):
        d = dict(
            c0=_xavier_uniform(nk(), (cout, cin, 3)),
            c1=_xavier_uniform(nk(), (3, 3, 3)),
            c2=_xavier_uniform(nk(), (3, 3)),
            bias=jax.random.uniform(nk(), (cout,), jnp.float32, -1e-5, 1e-5),
        )
        if with_bn:
            d['gamma'] = jnp.ones((cout,), jnp.float32)
            d['beta'] = jnp.zeros((cout,), jnp.float32)
        return d

    def trans_unit(cin, cout, kdim, rank):
        return dict(
            c0=_xavier_uniform(nk(), (cin, cout, rank)),
            c1=_xavier_uniform(nk(), (rank, kdim, rank)),
            c2=_xavier_uniform(nk(), (rank, kdim)),
        )

    def fc_unit(din, demb):
        b1 = 1.0 / math.sqrt(din)
        b2 = 1.0 / math.sqrt(demb)
        return dict(
            w1=jax.random.uniform(nk(), (din, demb), jnp.float32, -b1, b1),
            b1=jax.random.uniform(nk(), (demb,), jnp.float32, -b1, b1),
            w2=jax.random.uniform(nk(), (demb, demb), jnp.float32, -b2, b2),
            b2=jax.random.uniform(nk(), (demb,), jnp.float32, -b2, b2),
        )

    F = n_feat
    return {
        'init': {'conv1': conv_unit(in_channels, F), 'conv2': conv_unit(F, F)},
        'down1': {'conv1': conv_unit(F, F), 'conv2': conv_unit(F, F)},
        'down2': {'conv1': conv_unit(F, 2 * F), 'conv2': conv_unit(2 * F, 2 * F)},
        'timeembed1': fc_unit(1, 2 * F),
        'timeembed2': fc_unit(1, F),
        'contextembed1': fc_unit(n_classes, 2 * F),
        'contextembed2': fc_unit(n_classes, F),
        'up0': trans_unit(2 * F, 2 * F, 7, 3),
        'up1': {'up': trans_unit(4 * F, F, 2, 2),
                'res1': {'conv1': conv_unit(F, F), 'conv2': conv_unit(F, F)},
                'res2': {'conv1': conv_unit(F, F), 'conv2': conv_unit(F, F)}},
        'up2': {'up': trans_unit(2 * F, F, 2, 2),
                'res1': {'conv1': conv_unit(F, F), 'conv2': conv_unit(F, F)},
                'res2': {'conv1': conv_unit(F, F), 'conv2': conv_unit(F, F)}},
        'out1': conv_unit(2 * F, F, with_bn=False),   # followed by GroupNorm+ReLU
        'out2': conv_unit(F, in_channels, with_bn=False),
    }


# --------------------------------------------------------------------------
# Main
# --------------------------------------------------------------------------
if __name__ == "__main__":
    key = jax.random.PRNGKey(0)
    in_channels, n_feat, n_classes = 1, 32, 10
    B, H, W = 2, 28, 28    # 28x28 is required by AvgPool2d(7) + the 7x7/stride-7 up0
    kx, kt, kq, kp = jax.random.split(key, 4)
    x = jax.random.normal(kx, (B, in_channels, H, W), jnp.float32)
    t = jax.random.uniform(kt, (B, 1), jnp.float32)
    c = jnp.array([3, 7], jnp.int32)
    context_mask = jnp.array([0.0, 1.0], jnp.float32)
    params = init_params(kp, in_channels, n_feat, n_classes)

    # ---- tight, isolated checks of the two core Pallas kernels ----
    tq = params['down1']['conv1']
    wq = _tt_kernel(tq['c0'], tq['c1'], tq['c2'])
    xt = jax.random.normal(kq, (2, 14, 14, n_feat), jnp.float32)
    a = jax.block_until_ready(
        pallas_conv3x3_bn_gelu(xt, wq, tq['bias'], tq['gamma'], tq['beta']))
    b = ref_conv3x3_bn_gelu(xt, wq, tq['bias'], tq['gamma'], tq['beta'])
    a32, b32 = a.astype(jnp.float32), b.astype(jnp.float32)
    err1 = float(jnp.max(jnp.abs(a32 - b32)))
    assert bool(jnp.allclose(a32, b32, rtol=2e-2, atol=5e-2)), f"conv kernel max abs err {err1}"

    wup = _tt_kernel(params['up2']['up']['c0'], params['up2']['up']['c1'],
                     params['up2']['up']['c2'])
    xt2 = jax.random.normal(kq, (2, 14, 14, 2 * n_feat), jnp.float32)
    a2 = jax.block_until_ready(pallas_trans_conv2x2_s2(xt2, wup))
    b2 = ref_trans_conv2x2_s2(xt2, wup)
    a232, b232 = a2.astype(jnp.float32), b2.astype(jnp.float32)
    err2 = float(jnp.max(jnp.abs(a232 - b232)))
    assert bool(jnp.allclose(a232, b232, rtol=2e-2, atol=5e-2)), f"trans kernel max abs err {err2}"

    # ---- full forward (Pallas) vs pure-JAX reference ----
    fwd = jax.jit(functools.partial(_forward, use_pallas=True))
    out = jax.block_until_ready(fwd(params, x, c, t, context_mask))
    assert out.shape == (B, in_channels, H, W), out.shape
    assert bool(jnp.all(jnp.isfinite(out)))

    ref_fwd = jax.jit(functools.partial(_forward, use_pallas=False))
    ref = jax.block_until_ready(ref_fwd(params, x, c, t, context_mask))
    err = float(jnp.max(jnp.abs(out - ref)))
    # bf16 operand + bf16 activation quantization accumulates independently along
    # ~15 conv stages of each path, hence the looser end-to-end tolerance.
    assert bool(jnp.allclose(out, ref, rtol=5e-2, atol=5e-2)), f"max abs err {err}"

    print("KERNEL_OK")
</pallas_src>

<mosaic_0001>
module attributes {stable_mosaic.version = 11 : i64} {
  func.func @_conv_bn_gelu_kernel(%arg0: memref<392x384xbf16, #tpu.memory_space<vmem>>, %arg1: memref<384x128xbf16, #tpu.memory_space<vmem>>, %arg2: memref<1x128xf32, #tpu.memory_space<vmem>>, %arg3: memref<1x128xf32, #tpu.memory_space<vmem>>, %arg4: memref<1x128xf32, #tpu.memory_space<vmem>>, %arg5: memref<392x128xbf16, #tpu.memory_space<vmem>>) attributes {dimension_semantics = [], scalar_prefetch = 0 : i64, scratch_operands = 0 : i64, tpu.core_type = #tpu.core_type<tc>} {
    %c0 = arith.constant 0 : index
    %c0_0 = arith.constant 0 : index
    %0 = vector.load %arg0[%c0, %c0_0] : memref<392x384xbf16, #tpu.memory_space<vmem>>, vector<392x384xbf16>
    %c0_1 = arith.constant 0 : index
    %c0_2 = arith.constant 0 : index
    %1 = vector.load %arg1[%c0_1, %c0_2] : memref<384x128xbf16, #tpu.memory_space<vmem>>, vector<384x128xbf16>
    %cst = arith.constant dense<0.000000e+00> : vector<392x128xf32>
    %2 = tpu.matmul %0, %1, %cst {dimension_numbers = #tpu.dot_dimension_numbers<[1], [0], [0], [1], [0, 0, 1, 1], [], []>} : vector<392x384xbf16>, vector<384x128xbf16>, vector<392x128xf32> -> vector<392x128xf32>
    %c0_3 = arith.constant 0 : index
    %c0_4 = arith.constant 0 : index
    %3 = vector.load %arg2[%c0_3, %c0_4] : memref<1x128xf32, #tpu.memory_space<vmem>>, vector<1x128xf32>
    %4 = vector.broadcast %3 : vector<1x128xf32> to vector<392x128xf32>
    %5 = arith.addf %2, %4 : vector<392x128xf32>
    %cst_5 = arith.constant dense<0.000000e+00> : vector<128xf32>
    %6 = vector.multi_reduction <add>, %5, %cst_5 [0] : vector<392x128xf32> to vector<128xf32>
    %7 = vector.shape_cast %6 : vector<128xf32> to vector<1x128xf32>
    %cst_6 = arith.constant 0.00255102036 : f32
    %8 = vector.broadcast %cst_6 : f32 to vector<1x128xf32>
    %9 = arith.mulf %7, %8 : vector<1x128xf32>
    %10 = vector.broadcast %9 : vector<1x128xf32> to vector<392x128xf32>
    %11 = arith.subf %5, %10 : vector<392x128xf32>
    %12 = arith.mulf %11, %11 : vector<392x128xf32>
    %cst_7 = arith.constant dense<0.000000e+00> : vector<128xf32>
    %13 = vector.multi_reduction <add>, %12, %cst_7 [0] : vector<392x128xf32> to vector<128xf32>
    %14 = vector.shape_cast %13 : vector<128xf32> to vector<1x128xf32>
    %cst_8 = arith.constant 0.00255102036 : f32
    %15 = vector.broadcast %cst_8 : f32 to vector<1x128xf32>
    %16 = arith.mulf %14, %15 : vector<1x128xf32>
    %cst_9 = arith.constant 9.99999974E-6 : f32
    %17 = vector.broadcast %cst_9 : f32 to vector<1x128xf32>
    %18 = arith.addf %16, %17 : vector<1x128xf32>
    %19 = math.rsqrt %18 : vector<1x128xf32>
    %20 = vector.broadcast %19 : vector<1x128xf32> to vector<392x128xf32>
    %21 = arith.mulf %11, %20 : vector<392x128xf32>
    %c0_10 = arith.constant 0 : index
    %c0_11 = arith.constant 0 : index
    %22 = vector.load %arg3[%c0_10, %c0_11] : memref<1x128xf32, #tpu.memory_space<vmem>>, vector<1x128xf32>
    %23 = vector.broadcast %22 : vector<1x128xf32> to vector<392x128xf32>
    %24 = arith.mulf %21, %23 : vector<392x128xf32>
    %c0_12 = arith.constant 0 : index
    %c0_13 = arith.constant 0 : index
    %25 = vector.load %arg4[%c0_12, %c0_13] : memref<1x128xf32, #tpu.memory_space<vmem>>, vector<1x128xf32>
    %26 = vector.broadcast %25 : vector<1x128xf32> to vector<392x128xf32>
    %27 = arith.addf %24, %26 : vector<392x128xf32>
    %cst_14 = arith.constant 5.000000e-01 : f32
    %28 = vector.broadcast %cst_14 : f32 to vector<392x128xf32>
    %29 = arith.mulf %28, %27 : vector<392x128xf32>
    %cst_15 = arith.constant 0.707106769 : f32
    %30 = vector.broadcast %cst_15 : f32 to vector<392x128xf32>
    %31 = arith.mulf %27, %30 : vector<392x128xf32>
    %cst_16 = arith.constant 0.000000e+00 : f32
    %32 = vector.broadcast %cst_16 : f32 to vector<392x128xf32>
    %33 = arith.cmpf oge, %31, %32 : vector<392x128xf32>
    %cst_17 = arith.constant 1.000000e+00 : f32
    %cst_18 = arith.constant -1.000000e+00 : f32
    %34 = vector.broadcast %cst_17 : f32 to vector<392x128xf32>
    %35 = vector.broadcast %cst_18 : f32 to vector<392x128xf32>
    %36 = arith.select %33, %34, %35 : vector<392x128xi1>, vector<392x128xf32>
    %37 = math.absf %31 : vector<392x128xf32>
    %cst_19 = arith.constant 0.327591091 : f32
    %38 = vector.broadcast %cst_19 : f32 to vector<392x128xf32>
    %39 = arith.mulf %38, %37 : vector<392x128xf32>
    %cst_20 = arith.constant 1.000000e+00 : f32
    %40 = vector.broadcast %cst_20 : f32 to vector<392x128xf32>
    %41 = arith.addf %40, %39 : vector<392x128xf32>
    %cst_21 = arith.constant 1.000000e+00 : f32
    %42 = vector.broadcast %cst_21 : f32 to vector<392x128xf32>
    %43 = arith.divf %42, %41 : vector<392x128xf32>
    %cst_22 = arith.constant 1.06140542 : f32
    %44 = vector.broadcast %cst_22 : f32 to vector<392x128xf32>
    %45 = arith.mulf %44, %43 : vector<392x128xf32>
    %cst_23 = arith.constant -1.45315206 : f32
    %46 = vector.broadcast %cst_23 : f32 to vector<392x128xf32>
    %47 = arith.addf %45, %46 : vector<392x128xf32>
    %48 = arith.mulf %47, %43 : vector<392x128xf32>
    %cst_24 = arith.constant 1.42141378 : f32
    %49 = vector.broadcast %cst_24 : f32 to vector<392x128xf32>
    %50 = arith.addf %48, %49 : vector<392x128xf32>
    %51 = arith.mulf %50, %43 : vector<392x128xf32>
    %cst_25 = arith.constant -0.284496725 : f32
    %52 = vector.broadcast %cst_25 : f32 to vector<392x128xf32>
    %53 = arith.addf %51, %52 : vector<392x128xf32>
    %54 = arith.mulf %53, %43 : vector<392x128xf32>
    %cst_26 = arith.constant 0.254829586 : f32
    %55 = vector.broadcast %cst_26 : f32 to vector<392x128xf32>
    %56 = arith.addf %54, %55 : vector<392x128xf32>
    %57 = arith.mulf %56, %43 : vector<392x128xf32>
    %cst_27 = arith.constant 0.000000e+00 : f32
    %58 = vector.broadcast %cst_27 : f32 to vector<392x128xf32>
    %59 = arith.subf %58, %37 : vector<392x128xf32>
    %60 = arith.mulf %59, %37 : vector<392x128xf32>
    %61 = math.exp %60 : vector<392x128xf32>
    %62 = arith.mulf %57, %61 : vector<392x128xf32>
    %cst_28 = arith.constant 1.000000e+00 : f32
    %63 = vector.broadcast %cst_28 : f32 to vector<392x128xf32>
    %64 = arith.subf %63, %62 : vector<392x128xf32>
    %65 = arith.mulf %36, %64 : vector<392x128xf32>
    %cst_29 = arith.constant 1.000000e+00 : f32
    %66 = vector.broadcast %cst_29 : f32 to vector<392x128xf32>
    %67 = arith.addf %66, %65 : vector<392x128xf32>
    %68 = arith.mulf %29, %67 : vector<392x128xf32>
    %69 = arith.truncf %68 : vector<392x128xf32> to vector<392x128xbf16>
    %c0_30 = arith.constant 0 : index
    %c0_31 = arith.constant 0 : index
    %70 = vector.load %arg5[%c0_30, %c0_31] : memref<392x128xbf16, #tpu.memory_space<vmem>>, vector<392x128xbf16>
    tpu.vector_store %arg5[%c0_30, %c0_31], %69 {strides = array<i32>} : memref<392x128xbf16, #tpu.memory_space<vmem>>, vector<392x128xbf16>,
    return
  }
}

</mosaic_0001>

<llo_original>
// kernel: tpu_custom_call.1
$region0: #{tpu_custom_call.1}
  #allocation0 [shape = 'u32[]', space=smem, size = 0x4, offset = 0x4, fixed_abs, tag = 'smem constant byte address 0x4 - core index']
  #allocation1 [shape = 'u32[72,128]{1,0:T(1,128)}', space=vmem, size = 0x9000, scoped, tag = 'internal scratch']
  %s0 = inlined_call_operand.hbm [shape: bf16[392,384], index: 0, kind: input, shape index: {}]
  %s1 = inlined_call_operand.hbm [shape: bf16[384,128], index: 1, kind: input, shape index: {}]
  %s2 = inlined_call_operand.vmem [shape: f32[1,128], index: 2, kind: input, shape index: {}]
  %s3 = inlined_call_operand.vmem [shape: f32[1,128], index: 3, kind: input, shape index: {}]
  %s4 = inlined_call_operand.vmem [shape: f32[1,128], index: 4, kind: input, shape index: {}]
  %s5 = inlined_call_operand.hbm [shape: bf16[392,128], index: 5, kind: output, shape index: {}]
  %s6 = sld [smem:[#allocation0]]
  $region38: #{tpu_custom_call.1} parent=0
    _
  %s8 = ssub.s32 1, %s6
  %s9 = scalar_select 0, %s8, %s6
  $region1: #{tpu_custom_call.1} parent=0
    #allocation2 [shape = 'u8[301056]{0}', space=vmem, size = 0x49800, scoped, tag = 'input window, operand 0, single buffered']
    #allocation3 [shape = 's32[1]{0}', space=sflag, size = 0x4, scoped, tag = 'scoped memory for tpu_custom_call.1']
    #allocation4 [shape = 's32[1]{0}', space=sflag, size = 0x4, scoped, tag = 'scoped memory for tpu_custom_call.1']
    #allocation5 [shape = 'u8[98304]{0}', space=vmem, size = 0x18000, scoped, tag = 'input window, operand 1, single buffered']
    #allocation6 [shape = 's32[1]{0}', space=sflag, size = 0x4, scoped, tag = 'scoped memory for tpu_custom_call.1']
    #allocation7 [shape = 'u8[100352]{0}', space=vmem, size = 0x18800, scoped, tag = 'output window, operand 0, single buffered']
    %10 = vsyncpa [#allocation3], 0
    %11 = vsyncpa [#allocation6], 0
    %12 = vsyncpa [#allocation4], 0
    // Predicated region
    $region2: #{tpu_custom_call.1} parent=1 // pred_check
      _
    $region3: #{tpu_custom_call.1} parent=1 // pred_check_branch
      %14 = sbr.rel (0) target = $region5
    $region4: #{tpu_custom_call.1} parent=1 // pred_region
      %16 = vsyncadd [#allocation3], 0
      %s17 = sshll.u32 %s0, 4
      %s18 = int_to_ptr.hbm [resolvable:$true] %s17
      %s19 = sshll.u32 [#allocation2], 4
      %s20 = int_to_ptr.vmem [resolvable:$true] %s19
      %25 = dma.hbm_to_vmem [thread:$0]  %s18, 9408, %s20, [#allocation3], 192, 192, 12
    $region5: #{tpu_custom_call.1} parent=1 // pred_fallthru
      _
    // Predicated region
    $region6: #{tpu_custom_call.1} parent=1 // pred_check
      _
    $region7: #{tpu_custom_call.1} parent=1 // pred_check_branch
      %27 = sbr.rel (0) target = $region9
    $region8: #{tpu_custom_call.1} parent=1 // pred_region
      %29 = vsyncadd [#allocation6], 0
      %s30 = sshll.u32 %s1, 4
      %s31 = int_to_ptr.hbm [resolvable:$true] %s30
      %s32 = sshll.u32 [#allocation5], 4
      %s33 = int_to_ptr.vmem [resolvable:$true] %s32
      %38 = dma.hbm_to_vmem [thread:$0]  %s31, 3072, %s33, [#allocation6], 64, 64, 4
    $region9: #{tpu_custom_call.1} parent=1 // pred_fallthru
      _
    // Predicated region
    $region10: #{tpu_custom_call.1} parent=1 // pred_check
      _
    $region11: #{tpu_custom_call.1} parent=1 // pred_check_branch
      %40 = sbr.rel (0) target = $region13
    $region12: #{tpu_custom_call.1} parent=1 // pred_region
      _
    $region13: #{tpu_custom_call.1} parent=1 // pred_fallthru
      _
    // Predicated region
    $region14: #{tpu_custom_call.1} parent=1 // pred_check
      _
    $region15: #{tpu_custom_call.1} parent=1 // pred_check_branch
      %42 = sbr.rel (0) target = $region17
    $region16: #{tpu_custom_call.1} parent=1 // pred_region
      _
    $region17: #{tpu_custom_call.1} parent=1 // pred_fallthru
      _
    // Predicated region
    $region18: #{tpu_custom_call.1} parent=1 // pred_check
      _
    $region19: #{tpu_custom_call.1} parent=1 // pred_check_branch
      %44 = sbr.rel (0) target = $region21
    $region20: #{tpu_custom_call.1} parent=1 // pred_region
      _
    $region21: #{tpu_custom_call.1} parent=1 // pred_fallthru
      _
    // Predicated region
    $region22: #{tpu_custom_call.1} parent=1 // pred_check
      _
    $region23: #{tpu_custom_call.1} parent=1 // pred_check_branch
      %46 = sbr.rel (0) target = $region25
    $region24: #{tpu_custom_call.1} parent=1 // pred_region
      %48 = dma.done [#allocation3], 9408
    $region25: #{tpu_custom_call.1} parent=1 // pred_fallthru
      _
    // Predicated region
    $region26: #{tpu_custom_call.1} parent=1 // pred_check
      _
    $region27: #{tpu_custom_call.1} parent=1 // pred_check_branch
      %50 = sbr.rel (0) target = $region29
    $region28: #{tpu_custom_call.1} parent=1 // pred_region
      %52 = dma.done [#allocation6], 3072
    $region29: #{tpu_custom_call.1} parent=1 // pred_fallthru
      _
    %v53 = vld [vmem:[#allocation2] sm:$0xff]
    %v54 = vld [vmem:[#allocation2 + $0x8] sm:$0xf]
    %v55 = vld [vmem:[#allocation2 + $0xc] sm:$0xff]
    %v56 = vld [vmem:[#allocation2 + $0x14] sm:$0xf]
    %v57 = vld [vmem:[#allocation2 + $0x18] sm:$0xff]
    %v58 = vld [vmem:[#allocation2 + $0x20] sm:$0xf]
    %v59 = vld [vmem:[#allocation2 + $0x24] sm:$0xff]
    %v60 = vld [vmem:[#allocation2 + $0x2c] sm:$0xf]
    %v61 = vld [vmem:[#allocation2 + $0x30] sm:$0xff]
    %v62 = vld [vmem:[#allocation2 + $0x38] sm:$0xf]
    %v63 = vld [vmem:[#allocation2 + $0x3c] sm:$0xff]
    %v64 = vld [vmem:[#allocation2 + $0x44] sm:$0xf]
    %v65 = vld [vmem:[#allocation2 + $0x48] sm:$0xff]
    %v66 = vld [vmem:[#allocation2 + $0x50] sm:$0xf]
    %v67 = vld [vmem:[#allocation2 + $0x54] sm:$0xff]
    %v68 = vld [vmem:[#allocation2 + $0x5c] sm:$0xf]
    %v69 = vld [vmem:[#allocation2 + $0x60] sm:$0xff]
    %v70 = vld [vmem:[#allocation2 + $0x68] sm:$0xf]
    %v71 = vld [vmem:[#allocation2 + $0x6c] sm:$0xff]
    %v72 = vld [vmem:[#allocation2 + $0x74] sm:$0xf]
    %v73 = vld [vmem:[#allocation2 + $0x78] sm:$0xff]
    %v74 = vld [vmem:[#allocation2 + $0x80] sm:$0xf]
    %v75 = vld [vmem:[#allocation2 + $0x84] sm:$0xff]
    %v76 = vld [vmem:[#allocation2 + $0x8c] sm:$0xf]
    %v77 = vld [vmem:[#allocation2 + $0x90] sm:$0xff]
    %v78 = vld [vmem:[#allocation2 + $0x98] sm:$0xf]
    %v79 = vld [vmem:[#allocation2 + $0x9c] sm:$0xff]
    %v80 = vld [vmem:[#allocation2 + $0xa4] sm:$0xf]
    %v81 = vld [vmem:[#allocation2 + $0xa8] sm:$0xff]
    %v82 = vld [vmem:[#allocation2 + $0xb0] sm:$0xf]
    %v83 = vld [vmem:[#allocation2 + $0xb4] sm:$0xff]
    %v84 = vld [vmem:[#allocation2 + $0xbc] sm:$0xf]
    %v85 = vld [vmem:[#allocation2 + $0xc0] sm:$0xff]
    %v86 = vld [vmem:[#allocation2 + $0xc8] sm:$0xf]
    %v87 = vld [vmem:[#allocation2 + $0xcc] sm:$0xff]
    %v88 = vld [vmem:[#allocation2 + $0xd4] sm:$0xf]
    %v89 = vld [vmem:[#allocation2 + $0xd8] sm:$0xff]
    %v90 = vld [vmem:[#allocation2 + $0xe0] sm:$0xf]
    %v91 = vld [vmem:[#allocation2 + $0xe4] sm:$0xff]
    %v92 = vld [vmem:[#allocation2 + $0xec] sm:$0xf]
    %v93 = vld [vmem:[#allocation2 + $0xf0] sm:$0xff]
    %v94 = vld [vmem:[#allocation2 + $0xf8] sm:$0xf]
    %v95 = vld [vmem:[#allocation2 + $0xfc] sm:$0xff]
    %v96 = vld [vmem:[#allocation2 + $0x104] sm:$0xf]
    %v97 = vld [vmem:[#allocation2 + $0x108] sm:$0xff]
    %v98 = vld [vmem:[#allocation2 + $0x110] sm:$0xf]
    %v99 = vld [vmem:[#allocation2 + $0x114] sm:$0xff]
    %v100 = vld [vmem:[#allocation2 + $0x11c] sm:$0xf]
    %v101 = vld [vmem:[#allocation2 + $0x120] sm:$0xff]
    %v102 = vld [vmem:[#allocation2 + $0x128] sm:$0xf]
    %v103 = vld [vmem:[#allocation2 + $0x12c] sm:$0xff]
    %v104 = vld [vmem:[#allocation2 + $0x134] sm:$0xf]
    %v105 = vld [vmem:[#allocation2 + $0x138] sm:$0xff]
    %v106 = vld [vmem:[#allocation2 + $0x140] sm:$0xf]
    %v107 = vld [vmem:[#allocation2 + $0x144] sm:$0xff]
    %v108 = vld [vmem:[#allocation2 + $0x14c] sm:$0xf]
    %v109 = vld [vmem:[#allocation2 + $0x150] sm:$0xff]
    %v110 = vld [vmem:[#allocation2 + $0x158] sm:$0xf]
    %v111 = vld [vmem:[#allocation2 + $0x15c] sm:$0xff]
    %v112 = vld [vmem:[#allocation2 + $0x164] sm:$0xf]
    %v113 = vld [vmem:[#allocation2 + $0x168] sm:$0xff]
    %v114 = vld [vmem:[#allocation2 + $0x170] sm:$0xf]
    %v115 = vld [vmem:[#allocation2 + $0x174] sm:$0xff]
    %v116 = vld [vmem:[#allocation2 + $0x17c] sm:$0xf]
    %v117 = vld [vmem:[#allocation2 + $0x180] sm:$0xff]
    %v118 = vld [vmem:[#allocation2 + $0x188] sm:$0xf]
    %v119 = vld [vmem:[#allocation2 + $0x18c] sm:$0xff]
    %v120 = vld [vmem:[#allocation2 + $0x194] sm:$0xf]
    %v121 = vld [vmem:[#allocation2 + $0x198] sm:$0xff]
    %v122 = vld [vmem:[#allocation2 + $0x1a0] sm:$0xf]
    %v123 = vld [vmem:[#allocation2 + $0x1a4] sm:$0xff]
    %v124 = vld [vmem:[#allocation2 + $0x1ac] sm:$0xf]
    %v125 = vld [vmem:[#allocation2 + $0x1b0] sm:$0xff]
    %v126 = vld [vmem:[#allocation2 + $0x1b8] sm:$0xf]
    %v127 = vld [vmem:[#allocation2 + $0x1bc] sm:$0xff]
    %v128 = vld [vmem:[#allocation2 + $0x1c4] sm:$0xf]
    %v129 = vld [vmem:[#allocation2 + $0x1c8] sm:$0xff]
    %v130 = vld [vmem:[#allocation2 + $0x1d0] sm:$0xf]
    %v131 = vld [vmem:[#allocation2 + $0x1d4] sm:$0xff]
    %v132 = vld [vmem:[#allocation2 + $0x1dc] sm:$0xf]
    %v133 = vld [vmem:[#allocation2 + $0x1e0] sm:$0xff]
    %v134 = vld [vmem:[#allocation2 + $0x1e8] sm:$0xf]
    %v135 = vld [vmem:[#allocation2 + $0x1ec] sm:$0xff]
    %v136 = vld [vmem:[#allocation2 + $0x1f4] sm:$0xf]
    %v137 = vld [vmem:[#allocation2 + $0x1f8] sm:$0xff]
    %v138 = vld [vmem:[#allocation2 + $0x200] sm:$0xf]
    %v139 = vld [vmem:[#allocation2 + $0x204] sm:$0xff]
    %v140 = vld [vmem:[#allocation2 + $0x20c] sm:$0xf]
    %v141 = vld [vmem:[#allocation2 + $0x210] sm:$0xff]
    %v142 = vld [vmem:[#allocation2 + $0x218] sm:$0xf]
    %v143 = vld [vmem:[#allocation2 + $0x21c] sm:$0xff]
    %v144 = vld [vmem:[#allocation2 + $0x224] sm:$0xf]
    %v145 = vld [vmem:[#allocation2 + $0x228] sm:$0xff]
    %v146 = vld [vmem:[#allocation2 + $0x230] sm:$0xf]
    %v147 = vld [vmem:[#allocation2 + $0x234] sm:$0xff]
    %v148 = vld [vmem:[#allocation2 + $0x23c] sm:$0xf]
    %v149 = vld [vmem:[#allocation2 + $0x240] sm:$0xff]
    %v150 = vld [vmem:[#allocation2 + $0x248] sm:$0xf]
    %v151 = vld [vmem:[#allocation5] sm:$0xf]
    %v152 = vld [vmem:[#allocation5 + $0x4] sm:$0xf]
    %v153 = vld [vmem:[#allocation5 + $0x8] sm:$0xf]
    %v154 = vld [vmem:[#allocation5 + $0xc] sm:$0xf]
    %v155 = vld [vmem:[#allocation5 + $0x10] sm:$0xf]
    %v156 = vld [vmem:[#allocation5 + $0x14] sm:$0xf]
    %v157 = vld [vmem:[#allocation5 + $0x18] sm:$0xf]
    %v158 = vld [vmem:[#allocation5 + $0x1c] sm:$0xf]
    %v159 = vld [vmem:[#allocation5 + $0x20] sm:$0xf]
    %v160 = vld [vmem:[#allocation5 + $0x24] sm:$0xf]
    %v161 = vld [vmem:[#allocation5 + $0x28] sm:$0xf]
    %v162 = vld [vmem:[#allocation5 + $0x2c] sm:$0xf]
    %v163 = vld [vmem:[#allocation5 + $0x30] sm:$0xf]
    %v164 = vld [vmem:[#allocation5 + $0x34] sm:$0xf]
    %v165 = vld [vmem:[#allocation5 + $0x38] sm:$0xf]
    %v166 = vld [vmem:[#allocation5 + $0x3c] sm:$0xf]
    %v167 = vld [vmem:[#allocation5 + $0x40] sm:$0xf]
    %v168 = vld [vmem:[#allocation5 + $0x44] sm:$0xf]
    %v169 = vld [vmem:[#allocation5 + $0x48] sm:$0xf]
    %v170 = vld [vmem:[#allocation5 + $0x4c] sm:$0xf]
    %v171 = vld [vmem:[#allocation5 + $0x50] sm:$0xf]
    %v172 = vld [vmem:[#allocation5 + $0x54] sm:$0xf]
    %v173 = vld [vmem:[#allocation5 + $0x58] sm:$0xf]
    %v174 = vld [vmem:[#allocation5 + $0x5c] sm:$0xf]
    %v175 = vld [vmem:[#allocation5 + $0x60] sm:$0xf]
    %v176 = vld [vmem:[#allocation5 + $0x64] sm:$0xf]
    %v177 = vld [vmem:[#allocation5 + $0x68] sm:$0xf]
    %v178 = vld [vmem:[#allocation5 + $0x6c] sm:$0xf]
    %v179 = vld [vmem:[#allocation5 + $0x70] sm:$0xf]
    %v180 = vld [vmem:[#allocation5 + $0x74] sm:$0xf]
    %v181 = vld [vmem:[#allocation5 + $0x78] sm:$0xf]
    %v182 = vld [vmem:[#allocation5 + $0x7c] sm:$0xf]
    %v183 = vld [vmem:[#allocation5 + $0x80] sm:$0xf]
    %v184 = vld [vmem:[#allocation5 + $0x84] sm:$0xf]
    %v185 = vld [vmem:[#allocation5 + $0x88] sm:$0xf]
    %v186 = vld [vmem:[#allocation5 + $0x8c] sm:$0xf]
    %v187 = vld [vmem:[#allocation5 + $0x90] sm:$0xf]
    %v188 = vld [vmem:[#allocation5 + $0x94] sm:$0xf]
    %v189 = vld [vmem:[#allocation5 + $0x98] sm:$0xf]
    %v190 = vld [vmem:[#allocation5 + $0x9c] sm:$0xf]
    %v191 = vld [vmem:[#allocation5 + $0xa0] sm:$0xf]
    %v192 = vld [vmem:[#allocation5 + $0xa4] sm:$0xf]
    %v193 = vld [vmem:[#allocation5 + $0xa8] sm:$0xf]
    %v194 = vld [vmem:[#allocation5 + $0xac] sm:$0xf]
    %v195 = vld [vmem:[#allocation5 + $0xb0] sm:$0xf]
    %v196 = vld [vmem:[#allocation5 + $0xb4] sm:$0xf]
    %v197 = vld [vmem:[#allocation5 + $0xb8] sm:$0xf]
    %v198 = vld [vmem:[#allocation5 + $0xbc] sm:$0xf]
    %v199 = vld [vmem:[%s2] sm:$0x1]
    %v201 = vperm.slane %v199, 0
    %v301 = vunpack.c.l.b16 %v53
    %v302 = vunpack.c.h.b16 %v53
    %v303 = vunpack.c.l.b16 %v54
    %v304 = vunpack.c.l.b16 %v55
    %v305 = vunpack.c.h.b16 %v55
    %v306 = vunpack.c.l.b16 %v56
    %v307 = vunpack.c.l.b16 %v57
    %v308 = vunpack.c.h.b16 %v57
    %v309 = vunpack.c.l.b16 %v58
    %v310 = vunpack.c.l.b16 %v59
    %v311 = vunpack.c.h.b16 %v59
    %v312 = vunpack.c.l.b16 %v60
    %v313 = vunpack.c.l.b16 %v61
    %v314 = vunpack.c.h.b16 %v61
    %v315 = vunpack.c.l.b16 %v62
    %v316 = vunpack.c.l.b16 %v63
    %v317 = vunpack.c.h.b16 %v63
    %v318 = vunpack.c.l.b16 %v64
    %v319 = vunpack.c.l.b16 %v65
    %v320 = vunpack.c.h.b16 %v65
    %v321 = vunpack.c.l.b16 %v66
    %v322 = vunpack.c.l.b16 %v67
    %v323 = vunpack.c.h.b16 %v67
    %v324 = vunpack.c.l.b16 %v68
    %v325 = vunpack.c.l.b16 %v69
    %v326 = vunpack.c.h.b16 %v69
    %v327 = vunpack.c.l.b16 %v70
    %v328 = vunpack.c.l.b16 %v71
    %v329 = vunpack.c.h.b16 %v71
    %v330 = vunpack.c.l.b16 %v72
    %v331 = vunpack.c.l.b16 %v73
    %v332 = vunpack.c.h.b16 %v73
    %v333 = vunpack.c.l.b16 %v74
    %v334 = vunpack.c.l.b16 %v75
    %v335 = vunpack.c.h.b16 %v75
    %v336 = vunpack.c.l.b16 %v76
    %v337 = vunpack.c.l.b16 %v77
    %v338 = vunpack.c.h.b16 %v77
    %v339 = vunpack.c.l.b16 %v78
    %v340 = vunpack.c.l.b16 %v79
    %v341 = vunpack.c.h.b16 %v79
    %v342 = vunpack.c.l.b16 %v80
    %v343 = vunpack.c.l.b16 %v81
    %v344 = vunpack.c.h.b16 %v81
    %v345 = vunpack.c.l.b16 %v82
    %v346 = vunpack.c.l.b16 %v83
    %v347 = vunpack.c.h.b16 %v83
    %v348 = vunpack.c.l.b16 %v84
    %v349 = vunpack.c.l.b16 %v85
    %v350 = vunpack.c.h.b16 %v85
    %v351 = vunpack.c.l.b16 %v86
    %v352 = vunpack.c.l.b16 %v87
    %v353 = vunpack.c.h.b16 %v87
    %v354 = vunpack.c.l.b16 %v88
    %v355 = vunpack.c.l.b16 %v89
    %v356 = vunpack.c.h.b16 %v89
    %v357 = vunpack.c.l.b16 %v90
    %v358 = vunpack.c.l.b16 %v91
    %v359 = vunpack.c.h.b16 %v91
    %v360 = vunpack.c.l.b16 %v92
    %v361 = vunpack.c.l.b16 %v93
    %v362 = vunpack.c.h.b16 %v93
    %v363 = vunpack.c.l.b16 %v94
    %v364 = vunpack.c.l.b16 %v95
    %v365 = vunpack.c.h.b16 %v95
    %v366 = vunpack.c.l.b16 %v96
    %v367 = vunpack.c.l.b16 %v97
    %v368 = vunpack.c.h.b16 %v97
    %v369 = vunpack.c.l.b16 %v98
    %v370 = vunpack.c.l.b16 %v99
    %v371 = vunpack.c.h.b16 %v99
    %v372 = vunpack.c.l.b16 %v100
    %v373 = vunpack.c.l.b16 %v101
    %v374 = vunpack.c.h.b16 %v101
    %v375 = vunpack.c.l.b16 %v102
    %v376 = vunpack.c.l.b16 %v103
    %v377 = vunpack.c.h.b16 %v103
    %v378 = vunpack.c.l.b16 %v104
    %v379 = vunpack.c.l.b16 %v105
    %v380 = vunpack.c.h.b16 %v105
    %v381 = vunpack.c.l.b16 %v106
    %v382 = vunpack.c.l.b16 %v107
    %v383 = vunpack.c.h.b16 %v107
    %v384 = vunpack.c.l.b16 %v108
    %v385 = vunpack.c.l.b16 %v109
    %v386 = vunpack.c.h.b16 %v109
    %v387 = vunpack.c.l.b16 %v110
    %v388 = vunpack.c.l.b16 %v111
    %v389 = vunpack.c.h.b16 %v111
    %v390 = vunpack.c.l.b16 %v112
    %v391 = vunpack.c.l.b16 %v113
    %v392 = vunpack.c.h.b16 %v113
    %v393 = vunpack.c.l.b16 %v114
    %v394 = vunpack.c.l.b16 %v115
    %v395 = vunpack.c.h.b16 %v115
    %v396 = vunpack.c.l.b16 %v116
    %v397 = vunpack.c.l.b16 %v117
    %v398 = vunpack.c.h.b16 %v117
    %v399 = vunpack.c.l.b16 %v118
    %v400 = vunpack.c.l.b16 %v119
    %v401 = vunpack.c.h.b16 %v119
    %v402 = vunpack.c.l.b16 %v120
    %v403 = vunpack.c.l.b16 %v121
    %v404 = vunpack.c.h.b16 %v121
    %v405 = vunpack.c.l.b16 %v122
    %v406 = vunpack.c.l.b16 %v123
    %v407 = vunpack.c.h.b16 %v123
    %v408 = vunpack.c.l.b16 %v124
    %v409 = vunpack.c.l.b16 %v125
    %v410 = vunpack.c.h.b16 %v125
    %v411 = vunpack.c.l.b16 %v126
    %v412 = vunpack.c.l.b16 %v127
    %v413 = vunpack.c.h.b16 %v127
    %v414 = vunpack.c.l.b16 %v128
    %v415 = vunpack.c.l.b16 %v129
    %v416 = vunpack.c.h.b16 %v129
    %v417 = vunpack.c.l.b16 %v130
    %v418 = vunpack.c.l.b16 %v131
    %v419 = vunpack.c.h.b16 %v131
    %v420 = vunpack.c.l.b16 %v132
    %v421 = vunpack.c.l.b16 %v133
    %v422 = vunpack.c.h.b16 %v133
    %v423 = vunpack.c.l.b16 %v134
    %v424 = vunpack.c.l.b16 %v135
    %v425 = vunpack.c.h.b16 %v135
    %v426 = vunpack.c.l.b16 %v136
    %v427 = vunpack.c.l.b16 %v137
    %v428 = vunpack.c.h.b16 %v137
    %v429 = vunpack.c.l.b16 %v138
    %v430 = vunpack.c.l.b16 %v139
    %v431 = vunpack.c.h.b16 %v139
    %v432 = vunpack.c.l.b16 %v140
    %v433 = vunpack.c.l.b16 %v141
    %v434 = vunpack.c.h.b16 %v141
    %v435 = vunpack.c.l.b16 %v142
    %v436 = vunpack.c.l.b16 %v143
    %v437 = vunpack.c.h.b16 %v143
    %v438 = vunpack.c.l.b16 %v144
    %v439 = vunpack.c.l.b16 %v145
    %v440 = vunpack.c.h.b16 %v145
    %v441 = vunpack.c.l.b16 %v146
    %v442 = vunpack.c.l.b16 %v147
    %v443 = vunpack.c.h.b16 %v147
    %v444 = vunpack.c.l.b16 %v148
    %v445 = vunpack.c.l.b16 %v149
    %v446 = vunpack.c.h.b16 %v149
    %v447 = vunpack.c.l.b16 %v150
    %v448 = vpack.c.b16 %v304, %v301
    %v449 = vpack.c.b16 %v305, %v302
    %v450 = vpack.c.b16 %v306, %v303
    %v451 = vpack.c.b16 %v310, %v307
    %v452 = vpack.c.b16 %v311, %v308
    %v453 = vpack.c.b16 %v312, %v309
    %v454 = vpack.c.b16 %v316, %v313
    %v455 = vpack.c.b16 %v317, %v314
    %v456 = vpack.c.b16 %v318, %v315
    %v457 = vpack.c.b16 %v322, %v319
    %v458 = vpack.c.b16 %v323, %v320
    %v459 = vpack.c.b16 %v324, %v321
    %v460 = vpack.c.b16 %v328, %v325
    %v461 = vpack.c.b16 %v329, %v326
    %v462 = vpack.c.b16 %v330, %v327
    %v463 = vpack.c.b16 %v334, %v331
    %v464 = vpack.c.b16 %v335, %v332
    %v465 = vpack.c.b16 %v336, %v333
    %v466 = vpack.c.b16 %v340, %v337
    %v467 = vpack.c.b16 %v341, %v338
    %v468 = vpack.c.b16 %v342, %v339
    %v469 = vpack.c.b16 %v346, %v343
    %v470 = vpack.c.b16 %v347, %v344
    %v471 = vpack.c.b16 %v348, %v345
    %v472 = vpack.c.b16 %v352, %v349
    %v473 = vpack.c.b16 %v353, %v350
    %v474 = vpack.c.b16 %v354, %v351
    %v475 = vpack.c.b16 %v358, %v355
    %v476 = vpack.c.b16 %v359, %v356
    %v477 = vpack.c.b16 %v360, %v357
    %v478 = vpack.c.b16 %v364, %v361
    %v479 = vpack.c.b16 %v365, %v362
    %v480 = vpack.c.b16 %v366, %v363
    %v481 = vpack.c.b16 %v370, %v367
    %v482 = vpack.c.b16 %v371, %v368
    %v483 = vpack.c.b16 %v372, %v369
    %v484 = vpack.c.b16 %v376, %v373
    %v485 = vpack.c.b16 %v377, %v374
    %v486 = vpack.c.b16 %v378, %v375
    %v487 = vpack.c.b16 %v382, %v379
    %v488 = vpack.c.b16 %v383, %v380
    %v489 = vpack.c.b16 %v384, %v381
    %v490 = vpack.c.b16 %v388, %v385
    %v491 = vpack.c.b16 %v389, %v386
    %v492 = vpack.c.b16 %v390, %v387
    %v493 = vpack.c.b16 %v394, %v391
    %v494 = vpack.c.b16 %v395, %v392
    %v495 = vpack.c.b16 %v396, %v393
    %v496 = vpack.c.b16 %v400, %v397
    %v497 = vpack.c.b16 %v401, %v398
    %v498 = vpack.c.b16 %v402, %v399
    %v499 = vpack.c.b16 %v406, %v403
    %v500 = vpack.c.b16 %v407, %v404
    %v501 = vpack.c.b16 %v408, %v405
    %v502 = vpack.c.b16 %v412, %v409
    %v503 = vpack.c.b16 %v413, %v410
    %v504 = vpack.c.b16 %v414, %v411
    %v505 = vpack.c.b16 %v418, %v415
    %v506 = vpack.c.b16 %v419, %v416
    %v507 = vpack.c.b16 %v420, %v417
    %v508 = vpack.c.b16 %v424, %v421
    %v509 = vpack.c.b16 %v425, %v422
    %v510 = vpack.c.b16 %v426, %v423
    %v511 = vpack.c.b16 %v430, %v427
    %v512 = vpack.c.b16 %v431, %v428
    %v513 = vpack.c.b16 %v432, %v429
    %v514 = vpack.c.b16 %v436, %v433
    %v515 = vpack.c.b16 %v437, %v434
    %v516 = vpack.c.b16 %v438, %v435
    %v517 = vpack.c.b16 %v442, %v439
    %v518 = vpack.c.b16 %v443, %v440
    %v519 = vpack.c.b16 %v444, %v441
    %v520 = vpack.c.b16 %v445, %v445
    %v521 = vpack.c.b16 %v446, %v446
    %v522 = vpack.c.b16 %v447, %v447
    %v646 = vunpack.c.l.b16 %v151
    %v647 = vunpack.c.l.b16 %v152
    %v648 = vunpack.c.l.b16 %v153
    %v649 = vunpack.c.l.b16 %v154
    %v650 = vunpack.c.l.b16 %v155
    %v651 = vunpack.c.l.b16 %v156
    %v652 = vunpack.c.l.b16 %v157
    %v653 = vunpack.c.l.b16 %v158
    %v654 = vunpack.c.l.b16 %v159
    %v655 = vunpack.c.l.b16 %v160
    %v656 = vunpack.c.l.b16 %v161
    %v657 = vunpack.c.l.b16 %v162
    %v658 = vunpack.c.l.b16 %v163
    %v659 = vunpack.c.l.b16 %v164
    %v660 = vunpack.c.l.b16 %v165
    %v661 = vunpack.c.l.b16 %v166
    %v662 = vunpack.c.l.b16 %v167
    %v663 = vunpack.c.l.b16 %v168
    %v664 = vunpack.c.l.b16 %v169
    %v665 = vunpack.c.l.b16 %v170
    %v666 = vunpack.c.l.b16 %v171
    %v667 = vunpack.c.l.b16 %v172
    %v668 = vunpack.c.l.b16 %v173
    %v669 = vunpack.c.l.b16 %v174
    %v670 = vunpack.c.l.b16 %v175
    %v671 = vunpack.c.l.b16 %v176
    %v672 = vunpack.c.l.b16 %v177
    %v673 = vunpack.c.l.b16 %v178
    %v674 = vunpack.c.l.b16 %v179
    %v675 = vunpack.c.l.b16 %v180
    %v676 = vunpack.c.l.b16 %v181
    %v677 = vunpack.c.l.b16 %v182
    %v678 = vunpack.c.l.b16 %v183
    %v679 = vunpack.c.l.b16 %v184
    %v680 = vunpack.c.l.b16 %v185
    %v681 = vunpack.c.l.b16 %v186
    %v682 = vunpack.c.l.b16 %v187
    %v683 = vunpack.c.l.b16 %v188
    %v684 = vunpack.c.l.b16 %v189
    %v685 = vunpack.c.l.b16 %v190
    %v686 = vunpack.c.l.b16 %v191
    %v687 = vunpack.c.l.b16 %v192
    %v688 = vunpack.c.l.b16 %v193
    %v689 = vunpack.c.l.b16 %v194
    %v690 = vunpack.c.l.b16 %v195
    %v691 = vunpack.c.l.b16 %v196
    %v692 = vunpack.c.l.b16 %v197
    %v693 = vunpack.c.l.b16 %v198
    %v694 = vpack.c.b16 %v647, %v646
    %v695 = vpack.c.b16 %v649, %v648
    %v696 = vpack.c.b16 %v651, %v650
    %v697 = vpack.c.b16 %v653, %v652
    %v698 = vpack.c.b16 %v655, %v654
    %v699 = vpack.c.b16 %v657, %v656
    %v700 = vpack.c.b16 %v659, %v658
    %v701 = vpack.c.b16 %v661, %v660
    %v702 = vpack.c.b16 %v663, %v662
    %v703 = vpack.c.b16 %v665, %v664
    %v704 = vpack.c.b16 %v667, %v666
    %v705 = vpack.c.b16 %v669, %v668
    %v706 = vpack.c.b16 %v671, %v670
    %v707 = vpack.c.b16 %v673, %v672
    %v708 = vpack.c.b16 %v675, %v674
    %v709 = vpack.c.b16 %v677, %v676
    %v710 = vpack.c.b16 %v679, %v678
    %v711 = vpack.c.b16 %v681, %v680
    %v712 = vpack.c.b16 %v683, %v682
    %v713 = vpack.c.b16 %v685, %v684
    %v714 = vpack.c.b16 %v687, %v686
    %v715 = vpack.c.b16 %v689, %v688
    %v716 = vpack.c.b16 %v691, %v690
    %v717 = vpack.c.b16 %v693, %v692
    %742 = vmatpush.bf16.msra.mxu0 %v701
    %743 = vmatpush.bf16.msra.mxu0 %v700
    %744 = vmatpush.bf16.msra.mxu0 %v699
    %745 = vmatpush.bf16.msra.mxu0 %v698
    %746 = vmatpush.bf16.msra.mxu0 %v697
    %747 = vmatpush.bf16.msra.mxu0 %v696
    %748 = vmatpush.bf16.msra.mxu0 %v695
    %749 = vmatpush.bf16.msra.mxu0 %v694
    %750 = vmatmul.bf16.gmra.mxu0 %v448
    %v751 = vpop.f32.mrf.mxu0
    %v752 = vadd.f32 %v201, %v751
    %v753 = vpop.f32.mrf.mxu0
    %v754 = vadd.f32 %v201, %v753
    %755 = vmatmul.bf16.gmra.mxu0 %v451
    %v756 = vpop.f32.mrf.mxu0
    %v757 = vadd.f32 %v201, %v756
    %v758 = vpop.f32.mrf.mxu0
    %v759 = vadd.f32 %v201, %v758
    %760 = vmatmul.bf16.gmra.mxu0 %v454
    %v761 = vpop.f32.mrf.mxu0
    %v762 = vadd.f32 %v201, %v761
    %v763 = vpop.f32.mrf.mxu0
    %v764 = vadd.f32 %v201, %v763
    %765 = vmatmul.bf16.gmra.mxu0 %v457
    %v766 = vpop.f32.mrf.mxu0
    %v767 = vadd.f32 %v201, %v766
    %v768 = vpop.f32.mrf.mxu0
    %v769 = vadd.f32 %v201, %v768
    %770 = vmatmul.bf16.gmra.mxu0 %v460
    %v771 = vpop.f32.mrf.mxu0
    %v772 = vadd.f32 %v201, %v771
    %v773 = vpop.f32.mrf.mxu0
    %v774 = vadd.f32 %v201, %v773
    %775 = vmatmul.bf16.gmra.mxu0 %v463
    %v776 = vpop.f32.mrf.mxu0
    %v777 = vadd.f32 %v201, %v776
    %v778 = vpop.f32.mrf.mxu0
    %v779 = vadd.f32 %v201, %v778
    %780 = vmatmul.bf16.gmra.mxu0 %v466
    %v781 = vpop.f32.mrf.mxu0
    %v782 = vadd.f32 %v201, %v781
    %v783 = vpop.f32.mrf.mxu0
    %v784 = vadd.f32 %v201, %v783
    %785 = vmatmul.bf16.gmra.mxu0 %v469
    %v786 = vpop.f32.mrf.mxu0
    %v787 = vadd.f32 %v201, %v786
    %v788 = vpop.f32.mrf.mxu0
    %v789 = vadd.f32 %v201, %v788
    %790 = vmatmul.bf16.gmra.mxu0 %v472
    %v791 = vpop.f32.mrf.mxu0
    %v792 = vadd.f32 %v201, %v791
    %v793 = vpop.f32.mrf.mxu0
    %v794 = vadd.f32 %v201, %v793
    %795 = vmatmul.bf16.gmra.mxu0 %v475
    %v796 = vpop.f32.mrf.mxu0
    %v797 = vadd.f32 %v201, %v796
    %v798 = vpop.f32.mrf.mxu0
    %v799 = vadd.f32 %v201, %v798
    %800 = vmatmul.bf16.gmra.mxu0 %v478
    %v801 = vpop.f32.mrf.mxu0
    %v802 = vadd.f32 %v201, %v801
    %v803 = vpop.f32.mrf.mxu0
    %v804 = vadd.f32 %v201, %v803
    %805 = vmatmul.bf16.gmra.mxu0 %v481
    %v806 = vpop.f32.mrf.mxu0
    %v807 = vadd.f32 %v201, %v806
    %v808 = vpop.f32.mrf.mxu0
    %v809 = vadd.f32 %v201, %v808
    %810 = vmatmul.bf16.gmra.mxu0 %v484
    %v811 = vpop.f32.mrf.mxu0
    %v812 = vadd.f32 %v201, %v811
    %v813 = vpop.f32.mrf.mxu0
    %v814 = vadd.f32 %v201, %v813
    %815 = vmatmul.bf16.gmra.mxu0 %v487
    %v816 = vpop.f32.mrf.mxu0
    %v817 = vadd.f32 %v201, %v816
    %v818 = vpop.f32.mrf.mxu0
    %v819 = vadd.f32 %v201, %v818
    %820 = vmatmul.bf16.gmra.mxu0 %v490
    %v821 = vpop.f32.mrf.mxu0
    %v822 = vadd.f32 %v201, %v821
    %v823 = vpop.f32.mrf.mxu0
    %v824 = vadd.f32 %v201, %v823
    %825 = vmatmul.bf16.gmra.mxu0 %v493
    %v826 = vpop.f32.mrf.mxu0
    %v827 = vadd.f32 %v201, %v826
    %v828 = vpop.f32.mrf.mxu0
    %v829 = vadd.f32 %v201, %v828
    %830 = vmatmul.bf16.gmra.mxu0 %v496
    %v831 = vpop.f32.mrf.mxu0
    %v832 = vadd.f32 %v201, %v831
    %v833 = vpop.f32.mrf.mxu0
    %v834 = vadd.f32 %v201, %v833
    %835 = vmatmul.bf16.gmra.mxu0 %v499
    %v836 = vpop.f32.mrf.mxu0
    %v837 = vadd.f32 %v201, %v836
    %v838 = vpop.f32.mrf.mxu0
    %v839 = vadd.f32 %v201, %v838
    %840 = vmatmul.bf16.gmra.mxu0 %v502
    %v841 = vpop.f32.mrf.mxu0
    %v842 = vadd.f32 %v201, %v841
    %v843 = vpop.f32.mrf.mxu0
    %v844 = vadd.f32 %v201, %v843
    %845 = vmatmul.bf16.gmra.mxu0 %v505
    %v846 = vpop.f32.mrf.mxu0
    %v847 = vadd.f32 %v201, %v846
    %v848 = vpop.f32.mrf.mxu0
    %v849 = vadd.f32 %v201, %v848
    %850 = vmatmul.bf16.gmra.mxu0 %v508
    %v851 = vpop.f32.mrf.mxu0
    %v852 = vadd.f32 %v201, %v851
    %v853 = vpop.f32.mrf.mxu0
    %v854 = vadd.f32 %v201, %v853
    %855 = vmatmul.bf16.gmra.mxu0 %v511
    %v856 = vpop.f32.mrf.mxu0
    %v857 = vadd.f32 %v201, %v856
    %v858 = vpop.f32.mrf.mxu0
    %v859 = vadd.f32 %v201, %v858
    %860 = vmatmul.bf16.gmra.mxu0 %v514
    %v861 = vpop.f32.mrf.mxu0
    %v862 = vadd.f32 %v201, %v861
    %v863 = vpop.f32.mrf.mxu0
    %v864 = vadd.f32 %v201, %v863
    %865 = vmatmul.bf16.gmra.mxu0 %v517
    %v866 = vpop.f32.mrf.mxu0
    %v867 = vadd.f32 %v201, %v866
    %v868 = vpop.f32.mrf.mxu0
    %v869 = vadd.f32 %v201, %v868
    %870 = vmatmul.bf16.gmra.mxu0 %v520
    %v871 = vpop.f32.mrf.mxu0
    %v872 = vadd.f32 %v201, %v871
    %v873 = vpop.f32.mrf.mxu0
    %874 = vdwg.mxu0
    %875 = vmatpush.bf16.msra.mxu0 %v709
    %876 = vmatpush.bf16.msra.mxu0 %v708
    %877 = vmatpush.bf16.msra.mxu0 %v707
    %878 = vmatpush.bf16.msra.mxu0 %v706
    %879 = vmatpush.bf16.msra.mxu0 %v705
    %880 = vmatpush.bf16.msra.mxu0 %v704
    %881 = vmatpush.bf16.msra.mxu0 %v703
    %882 = vmatpush.bf16.msra.mxu0 %v702
    %883 = vmatmul.bf16.gmra.mxu0 %v449
    %v884 = vpop.f32.mrf.mxu0
    %v885 = vadd.f32 %v752, %v884
    %v886 = vpop.f32.mrf.mxu0
    %v887 = vadd.f32 %v754, %v886
    %888 = vmatmul.bf16.gmra.mxu0 %v452
    %v889 = vpop.f32.mrf.mxu0
    %v890 = vadd.f32 %v757, %v889
    %v891 = vpop.f32.mrf.mxu0
    %v892 = vadd.f32 %v759, %v891
    %893 = vmatmul.bf16.gmra.mxu0 %v455
    %v894 = vpop.f32.mrf.mxu0
    %v895 = vadd.f32 %v762, %v894
    %v896 = vpop.f32.mrf.mxu0
    %v897 = vadd.f32 %v764, %v896
    %898 = vmatmul.bf16.gmra.mxu0 %v458
    %v899 = vpop.f32.mrf.mxu0
    %v900 = vadd.f32 %v767, %v899
    %v901 = vpop.f32.mrf.mxu0
    %v902 = vadd.f32 %v769, %v901
    %903 = vmatmul.bf16.gmra.mxu0 %v461
    %v904 = vpop.f32.mrf.mxu0
    %v905 = vadd.f32 %v772, %v904
    %v906 = vpop.f32.mrf.mxu0
    %v907 = vadd.f32 %v774, %v906
    %908 = vmatmul.bf16.gmra.mxu0 %v464
    %v909 = vpop.f32.mrf.mxu0
    %v910 = vadd.f32 %v777, %v909
    %v911 = vpop.f32.mrf.mxu0
    %v912 = vadd.f32 %v779, %v911
    %913 = vmatmul.bf16.gmra.mxu0 %v467
    %v914 = vpop.f32.mrf.mxu0
    %v915 = vadd.f32 %v782, %v914
    %v916 = vpop.f32.mrf.mxu0
    %v917 = vadd.f32 %v784, %v916
    %918 = vmatmul.bf16.gmra.mxu0 %v470
    %v919 = vpop.f32.mrf.mxu0
    %v920 = vadd.f32 %v787, %v919
    %v921 = vpop.f32.mrf.mxu0
    %v922 = vadd.f32 %v789, %v921
    %923 = vmatmul.bf16.gmra.mxu0 %v473
    %v924 = vpop.f32.mrf.mxu0
    %v925 = vadd.f32 %v792, %v924
    %v926 = vpop.f32.mrf.mxu0
    %v927 = vadd.f32 %v794, %v926
    %928 = vmatmul.bf16.gmra.mxu0 %v476
    %v929 = vpop.f32.mrf.mxu0
    %v930 = vadd.f32 %v797, %v929
    %v931 = vpop.f32.mrf.mxu0
    %v932 = vadd.f32 %v799, %v931
    %933 = vmatmul.bf16.gmra.mxu0 %v479
    %v934 = vpop.f32.mrf.mxu0
    %v935 = vadd.f32 %v802, %v934
    %v936 = vpop.f32.mrf.mxu0
    %v937 = vadd.f32 %v804, %v936
    %938 = vmatmul.bf16.gmra.mxu0 %v482
    %v939 = vpop.f32.mrf.mxu0
    %v940 = vadd.f32 %v807, %v939
    %v941 = vpop.f32.mrf.mxu0
    %v942 = vadd.f32 %v809, %v941
    %943 = vmatmul.bf16.gmra.mxu0 %v485
    %v944 = vpop.f32.mrf.mxu0
    %v945 = vadd.f32 %v812, %v944
    %v946 = vpop.f32.mrf.mxu0
    %v947 = vadd.f32 %v814, %v946
    %948 = vmatmul.bf16.gmra.mxu0 %v488
    %v949 = vpop.f32.mrf.mxu0
    %v950 = vadd.f32 %v817, %v949
    %v951 = vpop.f32.mrf.mxu0
    %v952 = vadd.f32 %v819, %v951
    %953 = vmatmul.bf16.gmra.mxu0 %v491
    %v954 = vpop.f32.mrf.mxu0
    %v955 = vadd.f32 %v822, %v954
    %v956 = vpop.f32.mrf.mxu0
    %v957 = vadd.f32 %v824, %v956
    %958 = vmatmul.bf16.gmra.mxu0 %v494
    %v959 = vpop.f32.mrf.mxu0
    %v960 = vadd.f32 %v827, %v959
    %v961 = vpop.f32.mrf.mxu0
    %v962 = vadd.f32 %v829, %v961
    %963 = vmatmul.bf16.gmra.mxu0 %v497
    %v964 = vpop.f32.mrf.mxu0
    %v965 = vadd.f32 %v832, %v964
    %v966 = vpop.f32.mrf.mxu0
    %v967 = vadd.f32 %v834, %v966
    %968 = vmatmul.bf16.gmra.mxu0 %v500
    %v969 = vpop.f32.mrf.mxu0
    %v970 = vadd.f32 %v837, %v969
    %v971 = vpop.f32.mrf.mxu0
    %v972 = vadd.f32 %v839, %v971
    %973 = vmatmul.bf16.gmra.mxu0 %v503
    %v974 = vpop.f32.mrf.mxu0
    %v975 = vadd.f32 %v842, %v974
    %v976 = vpop.f32.mrf.mxu0
    %v977 = vadd.f32 %v844, %v976
    %978 = vmatmul.bf16.gmra.mxu0 %v506
    %v979 = vpop.f32.mrf.mxu0
    %v980 = vadd.f32 %v847, %v979
    %v981 = vpop.f32.mrf.mxu0
    %v982 = vadd.f32 %v849, %v981
    %983 = vmatmul.bf16.gmra.mxu0 %v509
    %v984 = vpop.f32.mrf.mxu0
    %v985 = vadd.f32 %v852, %v984
    %v986 = vpop.f32.mrf.mxu0
    %v987 = vadd.f32 %v854, %v986
    %988 = vmatmul.bf16.gmra.mxu0 %v512
    %v989 = vpop.f32.mrf.mxu0
    %v990 = vadd.f32 %v857, %v989
    %v991 = vpop.f32.mrf.mxu0
    %v992 = vadd.f32 %v859, %v991
    %993 = vmatmul.bf16.gmra.mxu0 %v515
    %v994 = vpop.f32.mrf.mxu0
    %v995 = vadd.f32 %v862, %v994
    %v996 = vpop.f32.mrf.mxu0
    %v997 = vadd.f32 %v864, %v996
    %998 = vmatmul.bf16.gmra.mxu0 %v518
    %v999 = vpop.f32.mrf.mxu0
    %v1000 = vadd.f32 %v867, %v999
    %v1001 = vpop.f32.mrf.mxu0
    %v1002 = vadd.f32 %v869, %v1001
    %1003 = vmatmul.bf16.gmra.mxu0 %v521
    %v1004 = vpop.f32.mrf.mxu0
    %v1005 = vadd.f32 %v872, %v1004
    %v1006 = vpop.f32.mrf.mxu0
    %1007 = vdwg.mxu0
    %1008 = vmatpush.bf16.msra.mxu0 %v717
    %1009 = vmatpush.bf16.msra.mxu0 %v716
    %1010 = vmatpush.bf16.msra.mxu0 %v715
    %1011 = vmatpush.bf16.msra.mxu0 %v714
    %1012 = vmatpush.bf16.msra.mxu0 %v713
    %1013 = vmatpush.bf16.msra.mxu0 %v712
    %1014 = vmatpush.bf16.msra.mxu0 %v711
    %1015 = vmatpush.bf16.msra.mxu0 %v710
    %1016 = vmatmul.bf16.gmra.mxu0 %v450
    %v1017 = vpop.f32.mrf.mxu0
    %v1018 = vadd.f32 %v885, %v1017
    %v1019 = vpop.f32.mrf.mxu0
    %v1020 = vadd.f32 %v887, %v1019
    %1021 = vmatmul.bf16.gmra.mxu0 %v453
    %v1022 = vpop.f32.mrf.mxu0
    %v1023 = vadd.f32 %v890, %v1022
    %v1024 = vpop.f32.mrf.mxu0
    %v1025 = vadd.f32 %v892, %v1024
    %1026 = vmatmul.bf16.gmra.mxu0 %v456
    %v1027 = vpop.f32.mrf.mxu0
    %v1028 = vadd.f32 %v895, %v1027
    %v1029 = vpop.f32.mrf.mxu0
    %v1030 = vadd.f32 %v897, %v1029
    %1031 = vmatmul.bf16.gmra.mxu0 %v459
    %v1032 = vpop.f32.mrf.mxu0
    %v1033 = vadd.f32 %v900, %v1032
    %v1034 = vpop.f32.mrf.mxu0
    %v1035 = vadd.f32 %v902, %v1034
    %1036 = vmatmul.bf16.gmra.mxu0 %v462
    %v1037 = vpop.f32.mrf.mxu0
    %v1038 = vadd.f32 %v905, %v1037
    %v1039 = vpop.f32.mrf.mxu0
    %v1040 = vadd.f32 %v907, %v1039
    %1041 = vmatmul.bf16.gmra.mxu0 %v465
    %v1042 = vpop.f32.mrf.mxu0
    %v1043 = vadd.f32 %v910, %v1042
    %v1044 = vpop.f32.mrf.mxu0
    %v1045 = vadd.f32 %v912, %v1044
    %1046 = vmatmul.bf16.gmra.mxu0 %v468
    %v1047 = vpop.f32.mrf.mxu0
    %v1048 = vadd.f32 %v915, %v1047
    %v1049 = vpop.f32.mrf.mxu0
    %v1050 = vadd.f32 %v917, %v1049
    %1051 = vmatmul.bf16.gmra.mxu0 %v471
    %v1052 = vpop.f32.mrf.mxu0
    %v1053 = vadd.f32 %v920, %v1052
    %v1054 = vpop.f32.mrf.mxu0
    %v1055 = vadd.f32 %v922, %v1054
    %1056 = vmatmul.bf16.gmra.mxu0 %v474
    %v1057 = vpop.f32.mrf.mxu0
    %v1058 = vadd.f32 %v925, %v1057
    %v1059 = vpop.f32.mrf.mxu0
    %v1060 = vadd.f32 %v927, %v1059
    %1061 = vmatmul.bf16.gmra.mxu0 %v477
    %v1062 = vpop.f32.mrf.mxu0
    %v1063 = vadd.f32 %v930, %v1062
    %v1064 = vpop.f32.mrf.mxu0
    %v1065 = vadd.f32 %v932, %v1064
    %1066 = vmatmul.bf16.gmra.mxu0 %v480
    %v1067 = vpop.f32.mrf.mxu0
    %v1068 = vadd.f32 %v935, %v1067
    %v1069 = vpop.f32.mrf.mxu0
    %v1070 = vadd.f32 %v937, %v1069
    %1071 = vmatmul.bf16.gmra.mxu0 %v483
    %v1072 = vpop.f32.mrf.mxu0
    %v1073 = vadd.f32 %v940, %v1072
    %v1074 = vpop.f32.mrf.mxu0
    %v1075 = vadd.f32 %v942, %v1074
    %1076 = vmatmul.bf16.gmra.mxu0 %v486
    %v1077 = vpop.f32.mrf.mxu0
    %v1078 = vadd.f32 %v945, %v1077
    %v1079 = vpop.f32.mrf.mxu0
    %v1080 = vadd.f32 %v947, %v1079
    %1081 = vmatmul.bf16.gmra.mxu0 %v489
    %v1082 = vpop.f32.mrf.mxu0
    %v1083 = vadd.f32 %v950, %v1082
    %v1084 = vpop.f32.mrf.mxu0
    %v1085 = vadd.f32 %v952, %v1084
    %1086 = vmatmul.bf16.gmra.mxu0 %v492
    %v1087 = vpop.f32.mrf.mxu0
    %v1088 = vadd.f32 %v955, %v1087
    %v1089 = vpop.f32.mrf.mxu0
    %v1090 = vadd.f32 %v957, %v1089
    %1091 = vmatmul.bf16.gmra.mxu0 %v495
    %v1092 = vpop.f32.mrf.mxu0
    %v1093 = vadd.f32 %v960, %v1092
    %v1094 = vpop.f32.mrf.mxu0
    %v1095 = vadd.f32 %v962, %v1094
    %1096 = vmatmul.bf16.gmra.mxu0 %v498
    %v1097 = vpop.f32.mrf.mxu0
    %v1098 = vadd.f32 %v965, %v1097
    %v1099 = vpop.f32.mrf.mxu0
    %v1100 = vadd.f32 %v967, %v1099
    %1101 = vmatmul.bf16.gmra.mxu0 %v501
    %v1102 = vpop.f32.mrf.mxu0
    %v1103 = vadd.f32 %v970, %v1102
    %v1104 = vpop.f32.mrf.mxu0
    %v1105 = vadd.f32 %v972, %v1104
    %1106 = vmatmul.bf16.gmra.mxu0 %v504
    %v1107 = vpop.f32.mrf.mxu0
    %v1108 = vadd.f32 %v975, %v1107
    %v1109 = vpop.f32.mrf.mxu0
    %v1110 = vadd.f32 %v977, %v1109
    %1111 = vmatmul.bf16.gmra.mxu0 %v507
    %v1112 = vpop.f32.mrf.mxu0
    %v1113 = vadd.f32 %v980, %v1112
    %v1114 = vpop.f32.mrf.mxu0
    %v1115 = vadd.f32 %v982, %v1114
    %1116 = vmatmul.bf16.gmra.mxu0 %v510
    %v1117 = vpop.f32.mrf.mxu0
    %v1118 = vadd.f32 %v985, %v1117
    %v1119 = vpop.f32.mrf.mxu0
    %v1120 = vadd.f32 %v987, %v1119
    %1121 = vmatmul.bf16.gmra.mxu0 %v513
    %v1122 = vpop.f32.mrf.mxu0
    %v1123 = vadd.f32 %v990, %v1122
    %v1124 = vpop.f32.mrf.mxu0
    %v1125 = vadd.f32 %v992, %v1124
    %1126 = vmatmul.bf16.gmra.mxu0 %v516
    %v1127 = vpop.f32.mrf.mxu0
    %v1128 = vadd.f32 %v995, %v1127
    %v1129 = vpop.f32.mrf.mxu0
    %v1130 = vadd.f32 %v997, %v1129
    %1131 = vmatmul.bf16.gmra.mxu0 %v519
    %v1132 = vpop.f32.mrf.mxu0
    %v1133 = vadd.f32 %v1000, %v1132
    %v1134 = vpop.f32.mrf.mxu0
    %v1135 = vadd.f32 %v1002, %v1134
    %1136 = vmatmul.bf16.gmra.mxu0 %v522
    %v1137 = vpop.f32.mrf.mxu0
    %v1138 = vadd.f32 %v1005, %v1137
    %v1139 = vpop.f32.mrf.mxu0
    %1140 = vdwg.mxu0
    %v1141 = vadd.f32 %v1018, %v1020
    %v1142 = vadd.f32 %v1141, %v1023
    %v1143 = vadd.f32 %v1142, %v1025
    %v1144 = vadd.f32 %v1143, %v1028
    %v1145 = vadd.f32 %v1144, %v1030
    %v1146 = vadd.f32 %v1145, %v1033
    %v1147 = vadd.f32 %v1146, %v1035
    %v1148 = vadd.f32 %v1147, %v1038
    %v1149 = vadd.f32 %v1148, %v1040
    %v1150 = vadd.f32 %v1149, %v1043
    %v1151 = vadd.f32 %v1150, %v1045
    %v1152 = vadd.f32 %v1151, %v1048
    %v1153 = vadd.f32 %v1152, %v1050
    %v1154 = vadd.f32 %v1153, %v1053
    %v1155 = vadd.f32 %v1154, %v1055
    %v1156 = vadd.f32 %v1155, %v1058
    %v1157 = vadd.f32 %v1156, %v1060
    %v1158 = vadd.f32 %v1157, %v1063
    %v1159 = vadd.f32 %v1158, %v1065
    %v1160 = vadd.f32 %v1159, %v1068
    %v1161 = vadd.f32 %v1160, %v1070
    %v1162 = vadd.f32 %v1161, %v1073
    %v1163 = vadd.f32 %v1162, %v1075
    %v1164 = vadd.f32 %v1163, %v1078
    %v1165 = vadd.f32 %v1164, %v1080
    %v1166 = vadd.f32 %v1165, %v1083
    %v1167 = vadd.f32 %v1166, %v1085
    %v1168 = vadd.f32 %v1167, %v1088
    %v1169 = vadd.f32 %v1168, %v1090
    %v1170 = vadd.f32 %v1169, %v1093
    %v1171 = vadd.f32 %v1170, %v1095
    %v1172 = vadd.f32 %v1171, %v1098
    %v1173 = vadd.f32 %v1172, %v1100
    %v1174 = vadd.f32 %v1173, %v1103
    %v1175 = vadd.f32 %v1174, %v1105
    %v1176 = vadd.f32 %v1175, %v1108
    %v1177 = vadd.f32 %v1176, %v1110
    %v1178 = vadd.f32 %v1177, %v1113
    %v1179 = vadd.f32 %v1178, %v1115
    %v1180 = vadd.f32 %v1179, %v1118
    %v1181 = vadd.f32 %v1180, %v1120
    %v1182 = vadd.f32 %v1181, %v1123
    %v1183 = vadd.f32 %v1182, %v1125
    %v1184 = vadd.f32 %v1183, %v1128
    %v1185 = vadd.f32 %v1184, %v1130
    %v1186 = vadd.f32 %v1185, %v1133
    %v1187 = vadd.f32 %v1186, %v1135
    %v1188 = vadd.f32 %v1187, %v1138
    %v1189 = vrot.slane %v1188, 4
    %v1190 = vadd.f32 %v1188, %v1189
    %v1191 = vrot.slane %v1190, 2
    %v1192 = vadd.f32 %v1190, %v1191
    %v1193 = vrot.slane %v1192, 1
    %v1194 = vadd.f32 %v1192, %v1193
    %v1195 = vmul.f32 %v1194, 0.0025510204
    %v1196 = vsub.f32 %v1018, %v1195
    %v1197 = vsub.f32 %v1020, %v1195
    %v1198 = vsub.f32 %v1023, %v1195
    %v1199 = vsub.f32 %v1025, %v1195
    %v1200 = vsub.f32 %v1028, %v1195
    %v1201 = vsub.f32 %v1030, %v1195
    %v1202 = vsub.f32 %v1033, %v1195
    %v1203 = vsub.f32 %v1035, %v1195
    %v1204 = vsub.f32 %v1038, %v1195
    %v1205 = vsub.f32 %v1040, %v1195
    %v1206 = vsub.f32 %v1043, %v1195
    %v1207 = vsub.f32 %v1045, %v1195
    %v1208 = vsub.f32 %v1048, %v1195
    %v1209 = vsub.f32 %v1050, %v1195
    %v1210 = vsub.f32 %v1053, %v1195
    %v1211 = vsub.f32 %v1055, %v1195
    %v1212 = vsub.f32 %v1058, %v1195
    %v1213 = vsub.f32 %v1060, %v1195
    %v1214 = vsub.f32 %v1063, %v1195
    %v1215 = vsub.f32 %v1065, %v1195
    %v1216 = vsub.f32 %v1068, %v1195
    %v1217 = vsub.f32 %v1070, %v1195
    %v1218 = vsub.f32 %v1073, %v1195
    %v1219 = vsub.f32 %v1075, %v1195
    %v1220 = vsub.f32 %v1078, %v1195
    %v1221 = vsub.f32 %v1080, %v1195
    %v1222 = vsub.f32 %v1083, %v1195
    %v1223 = vsub.f32 %v1085, %v1195
    %v1224 = vsub.f32 %v1088, %v1195
    %v1225 = vsub.f32 %v1090, %v1195
    %v1226 = vsub.f32 %v1093, %v1195
    %v1227 = vsub.f32 %v1095, %v1195
    %v1228 = vsub.f32 %v1098, %v1195
    %v1229 = vsub.f32 %v1100, %v1195
    %v1230 = vsub.f32 %v1103, %v1195
    %v1231 = vsub.f32 %v1105, %v1195
    %v1232 = vsub.f32 %v1108, %v1195
    %v1233 = vsub.f32 %v1110, %v1195
    %v1234 = vsub.f32 %v1113, %v1195
    %v1235 = vsub.f32 %v1115, %v1195
    %v1236 = vsub.f32 %v1118, %v1195
    %v1237 = vsub.f32 %v1120, %v1195
    %v1238 = vsub.f32 %v1123, %v1195
    %v1239 = vsub.f32 %v1125, %v1195
    %v1240 = vsub.f32 %v1128, %v1195
    %v1241 = vsub.f32 %v1130, %v1195
    %v1242 = vsub.f32 %v1133, %v1195
    %v1243 = vsub.f32 %v1135, %v1195
    %v1244 = vsub.f32 %v1138, %v1195
    %v1245 = vmul.f32 %v1196, %v1196
    %v1246 = vmul.f32 %v1197, %v1197
    %v1247 = vmul.f32 %v1198, %v1198
    %v1248 = vmul.f32 %v1199, %v1199
    %v1249 = vmul.f32 %v1200, %v1200
    %v1250 = vmul.f32 %v1201, %v1201
    %v1251 = vmul.f32 %v1202, %v1202
    %v1252 = vmul.f32 %v1203, %v1203
    %v1253 = vmul.f32 %v1204, %v1204
    %v1254 = vmul.f32 %v1205, %v1205
    %v1255 = vmul.f32 %v1206, %v1206
    %v1256 = vmul.f32 %v1207, %v1207
    %v1257 = vmul.f32 %v1208, %v1208
    %v1258 = vmul.f32 %v1209, %v1209
    %v1259 = vmul.f32 %v1210, %v1210
    %v1260 = vmul.f32 %v1211, %v1211
    %v1261 = vmul.f32 %v1212, %v1212
    %v1262 = vmul.f32 %v1213, %v1213
    %v1263 = vmul.f32 %v1214, %v1214
    %v1264 = vmul.f32 %v1215, %v1215
    %v1265 = vmul.f32 %v1216, %v1216
    %v1266 = vmul.f32 %v1217, %v1217
    %v1267 = vmul.f32 %v1218, %v1218
    %v1268 = vmul.f32 %v1219, %v1219
    %v1269 = vmul.f32 %v1220, %v1220
    %v1270 = vmul.f32 %v1221, %v1221
    %v1271 = vmul.f32 %v1222, %v1222
    %v1272 = vmul.f32 %v1223, %v1223
    %v1273 = vmul.f32 %v1224, %v1224
    %v1274 = vmul.f32 %v1225, %v1225
    %v1275 = vmul.f32 %v1226, %v1226
    %v1276 = vmul.f32 %v1227, %v1227
    %v1277 = vmul.f32 %v1228, %v1228
    %v1278 = vmul.f32 %v1229, %v1229
    %v1279 = vmul.f32 %v1230, %v1230
    %v1280 = vmul.f32 %v1231, %v1231
    %v1281 = vmul.f32 %v1232, %v1232
    %v1282 = vmul.f32 %v1233, %v1233
    %v1283 = vmul.f32 %v1234, %v1234
    %v1284 = vmul.f32 %v1235, %v1235
    %v1285 = vmul.f32 %v1236, %v1236
    %v1286 = vmul.f32 %v1237, %v1237
    %v1287 = vmul.f32 %v1238, %v1238
    %v1288 = vmul.f32 %v1239, %v1239
    %v1289 = vmul.f32 %v1240, %v1240
    %v1290 = vmul.f32 %v1241, %v1241
    %v1291 = vmul.f32 %v1242, %v1242
    %v1292 = vmul.f32 %v1243, %v1243
    %v1293 = vmul.f32 %v1244, %v1244
    %v1294 = vadd.f32 %v1245, %v1246
    %v1295 = vadd.f32 %v1294, %v1247
    %v1296 = vadd.f32 %v1295, %v1248
    %v1297 = vadd.f32 %v1296, %v1249
    %v1298 = vadd.f32 %v1297, %v1250
    %v1299 = vadd.f32 %v1298, %v1251
    %v1300 = vadd.f32 %v1299, %v1252
    %v1301 = vadd.f32 %v1300, %v1253
    %v1302 = vadd.f32 %v1301, %v1254
    %v1303 = vadd.f32 %v1302, %v1255
    %v1304 = vadd.f32 %v1303, %v1256
    %v1305 = vadd.f32 %v1304, %v1257
    %v1306 = vadd.f32 %v1305, %v1258
    %v1307 = vadd.f32 %v1306, %v1259
    %v1308 = vadd.f32 %v1307, %v1260
    %v1309 = vadd.f32 %v1308, %v1261
    %v1310 = vadd.f32 %v1309, %v1262
    %v1311 = vadd.f32 %v1310, %v1263
    %v1312 = vadd.f32 %v1311, %v1264
    %v1313 = vadd.f32 %v1312, %v1265
    %v1314 = vadd.f32 %v1313, %v1266
    %v1315 = vadd.f32 %v1314, %v1267
    %v1316 = vadd.f32 %v1315, %v1268
    %v1317 = vadd.f32 %v1316, %v1269
    %v1318 = vadd.f32 %v1317, %v1270
    %v1319 = vadd.f32 %v1318, %v1271
    %v1320 = vadd.f32 %v1319, %v1272
    %v1321 = vadd.f32 %v1320, %v1273
    %v1322 = vadd.f32 %v1321, %v1274
    %v1323 = vadd.f32 %v1322, %v1275
    %v1324 = vadd.f32 %v1323, %v1276
    %v1325 = vadd.f32 %v1324, %v1277
    %v1326 = vadd.f32 %v1325, %v1278
    %v1327 = vadd.f32 %v1326, %v1279
    %v1328 = vadd.f32 %v1327, %v1280
    %v1329 = vadd.f32 %v1328, %v1281
    %v1330 = vadd.f32 %v1329, %v1282
    %v1331 = vadd.f32 %v1330, %v1283
    %v1332 = vadd.f32 %v1331, %v1284
    %v1333 = vadd.f32 %v1332, %v1285
    %v1334 = vadd.f32 %v1333, %v1286
    %v1335 = vadd.f32 %v1334, %v1287
    %v1336 = vadd.f32 %v1335, %v1288
    %v1337 = vadd.f32 %v1336, %v1289
    %v1338 = vadd.f32 %v1337, %v1290
    %v1339 = vadd.f32 %v1338, %v1291
    %v1340 = vadd.f32 %v1339, %v1292
    %v1341 = vadd.f32 %v1340, %v1293
    %v1342 = vrot.slane %v1341, 4
    %v1343 = vadd.f32 %v1341, %v1342
    %v1344 = vrot.slane %v1343, 2
    %v1345 = vadd.f32 %v1343, %v1344
    %v1346 = vrot.slane %v1345, 1
    %v1347 = vadd.f32 %v1345, %v1346
    %v1348 = vmul.f32 %v1347, 0.0025510204
    %v1349 = vadd.f32 %v1348, 1e-05
    %v1350 = vrsqrt.pop %v1349
    %v1351 = vmul.f32 %v1350, %v1349
    %v1352 = vmul.f32 %v1351, %v1350
    %v1353 = vmul.f32 0.5, %v1352
    %v1354 = vsub.f32 1.5, %v1353
    %v1355 = vmul.f32 %v1350, %v1354
    %vm1356 = vweird.f32 %v1349
    %vm1357 = vweird.f32 %v1350
    %vm1358 = vmor %vm1356, %vm1357
    %v1359 = vsel %vm1358, %v1350, %v1355
    %v1360 = vmul.f32 %v1196, %v1359
    %v1361 = vmul.f32 %v1197, %v1359
    %v1362 = vmul.f32 %v1198, %v1359
    %v1363 = vmul.f32 %v1199, %v1359
    %v1364 = vmul.f32 %v1200, %v1359
    %v1365 = vmul.f32 %v1201, %v1359
    %v1366 = vmul.f32 %v1202, %v1359
    %v1367 = vmul.f32 %v1203, %v1359
    %v1368 = vmul.f32 %v1204, %v1359
    %v1369 = vmul.f32 %v1205, %v1359
    %v1370 = vmul.f32 %v1206, %v1359
    %v1371 = vmul.f32 %v1207, %v1359
    %v1372 = vmul.f32 %v1208, %v1359
    %v1373 = vmul.f32 %v1209, %v1359
    %v1374 = vmul.f32 %v1210, %v1359
    %v1375 = vmul.f32 %v1211, %v1359
    %v1376 = vmul.f32 %v1212, %v1359
    %v1377 = vmul.f32 %v1213, %v1359
    %v1378 = vmul.f32 %v1214, %v1359
    %v1379 = vmul.f32 %v1215, %v1359
    %v1380 = vmul.f32 %v1216, %v1359
    %v1381 = vmul.f32 %v1217, %v1359
    %v1382 = vmul.f32 %v1218, %v1359
    %v1383 = vmul.f32 %v1219, %v1359
    %v1384 = vmul.f32 %v1220, %v1359
    %v1385 = vmul.f32 %v1221, %v1359
    %v1386 = vmul.f32 %v1222, %v1359
    %v1387 = vmul.f32 %v1223, %v1359
    %v1388 = vmul.f32 %v1224, %v1359
    %v1389 = vmul.f32 %v1225, %v1359
    %v1390 = vmul.f32 %v1226, %v1359
    %v1391 = vmul.f32 %v1227, %v1359
    %v1392 = vmul.f32 %v1228, %v1359
    %v1393 = vmul.f32 %v1229, %v1359
    %v1394 = vmul.f32 %v1230, %v1359
    %v1395 = vmul.f32 %v1231, %v1359
    %v1396 = vmul.f32 %v1232, %v1359
    %v1397 = vmul.f32 %v1233, %v1359
    %v1398 = vmul.f32 %v1234, %v1359
    %v1399 = vmul.f32 %v1235, %v1359
    %v1400 = vmul.f32 %v1236, %v1359
    %v1401 = vmul.f32 %v1237, %v1359
    %v1402 = vmul.f32 %v1238, %v1359
    %v1403 = vmul.f32 %v1239, %v1359
    %v1404 = vmul.f32 %v1240, %v1359
    %v1405 = vmul.f32 %v1241, %v1359
    %v1406 = vmul.f32 %v1242, %v1359
    %v1407 = vmul.f32 %v1243, %v1359
    %v1408 = vmul.f32 %v1244, %v1359
    %v1409 = vld [vmem:[%s3] sm:$0x1]
    %v1411 = vperm.slane %v1409, 0
    %v1413 = vmul.f32 %v1360, %v1411
    %v1414 = vmul.f32 %v1361, %v1411
    %v1415 = vmul.f32 %v1362, %v1411
    %v1416 = vmul.f32 %v1363, %v1411
    %v1417 = vmul.f32 %v1364, %v1411
    %v1418 = vmul.f32 %v1365, %v1411
    %v1419 = vmul.f32 %v1366, %v1411
    %v1420 = vmul.f32 %v1367, %v1411
    %v1421 = vmul.f32 %v1368, %v1411
    %v1422 = vmul.f32 %v1369, %v1411
    %v1423 = vmul.f32 %v1370, %v1411
    %v1424 = vmul.f32 %v1371, %v1411
    %v1425 = vmul.f32 %v1372, %v1411
    %v1426 = vmul.f32 %v1373, %v1411
    %v1427 = vmul.f32 %v1374, %v1411
    %v1428 = vmul.f32 %v1375, %v1411
    %v1429 = vmul.f32 %v1376, %v1411
    %v1430 = vmul.f32 %v1377, %v1411
    %v1431 = vmul.f32 %v1378, %v1411
    %v1432 = vmul.f32 %v1379, %v1411
    %v1433 = vmul.f32 %v1380, %v1411
    %v1434 = vmul.f32 %v1381, %v1411
    %v1435 = vmul.f32 %v1382, %v1411
    %v1436 = vmul.f32 %v1383, %v1411
    %v1437 = vmul.f32 %v1384, %v1411
    %v1438 = vmul.f32 %v1385, %v1411
    %v1439 = vmul.f32 %v1386, %v1411
    %v1440 = vmul.f32 %v1387, %v1411
    %v1441 = vmul.f32 %v1388, %v1411
    %v1442 = vmul.f32 %v1389, %v1411
    %v1443 = vmul.f32 %v1390, %v1411
    %v1444 = vmul.f32 %v1391, %v1411
    %v1445 = vmul.f32 %v1392, %v1411
    %v1446 = vmul.f32 %v1393, %v1411
    %v1447 = vmul.f32 %v1394, %v1411
    %v1448 = vmul.f32 %v1395, %v1411
    %v1449 = vmul.f32 %v1396, %v1411
    %v1450 = vmul.f32 %v1397, %v1411
    %v1451 = vmul.f32 %v1398, %v1411
    %v1452 = vmul.f32 %v1399, %v1411
    %v1453 = vmul.f32 %v1400, %v1411
    %v1454 = vmul.f32 %v1401, %v1411
    %v1455 = vmul.f32 %v1402, %v1411
    %v1456 = vmul.f32 %v1403, %v1411
    %v1457 = vmul.f32 %v1404, %v1411
    %v1458 = vmul.f32 %v1405, %v1411
    %v1459 = vmul.f32 %v1406, %v1411
    %v1460 = vmul.f32 %v1407, %v1411
    %v1461 = vmul.f32 %v1408, %v1411
    %v1462 = vld [vmem:[%s4] sm:$0x1]
    %v1464 = vperm.slane %v1462, 0
    %v1466 = vadd.f32 %v1413, %v1464
    %v1467 = vadd.f32 %v1414, %v1464
    %v1468 = vadd.f32 %v1415, %v1464
    %v1469 = vadd.f32 %v1416, %v1464
    %v1470 = vadd.f32 %v1417, %v1464
    %v1471 = vadd.f32 %v1418, %v1464
    %v1472 = vadd.f32 %v1419, %v1464
    %v1473 = vadd.f32 %v1420, %v1464
    %v1474 = vadd.f32 %v1421, %v1464
    %v1475 = vadd.f32 %v1422, %v1464
    %v1476 = vadd.f32 %v1423, %v1464
    %v1477 = vadd.f32 %v1424, %v1464
    %v1478 = vadd.f32 %v1425, %v1464
    %v1479 = vadd.f32 %v1426, %v1464
    %v1480 = vadd.f32 %v1427, %v1464
    %v1481 = vadd.f32 %v1428, %v1464
    %v1482 = vadd.f32 %v1429, %v1464
    %v1483 = vadd.f32 %v1430, %v1464
    %v1484 = vadd.f32 %v1431, %v1464
    %v1485 = vadd.f32 %v1432, %v1464
    %v1486 = vadd.f32 %v1433, %v1464
    %v1487 = vadd.f32 %v1434, %v1464
    %v1488 = vadd.f32 %v1435, %v1464
    %v1489 = vadd.f32 %v1436, %v1464
    %v1490 = vadd.f32 %v1437, %v1464
    %v1491 = vadd.f32 %v1438, %v1464
    %v1492 = vadd.f32 %v1439, %v1464
    %v1493 = vadd.f32 %v1440, %v1464
    %v1494 = vadd.f32 %v1441, %v1464
    %v1495 = vadd.f32 %v1442, %v1464
    %v1496 = vadd.f32 %v1443, %v1464
    %v1497 = vadd.f32 %v1444, %v1464
    %v1498 = vadd.f32 %v1445, %v1464
    %v1499 = vadd.f32 %v1446, %v1464
    %v1500 = vadd.f32 %v1447, %v1464
    %v1501 = vadd.f32 %v1448, %v1464
    %v1502 = vadd.f32 %v1449, %v1464
    %v1503 = vadd.f32 %v1450, %v1464
    %v1504 = vadd.f32 %v1451, %v1464
    %v1505 = vadd.f32 %v1452, %v1464
    %v1506 = vadd.f32 %v1453, %v1464
    %v1507 = vadd.f32 %v1454, %v1464
    %v1508 = vadd.f32 %v1455, %v1464
    %v1509 = vadd.f32 %v1456, %v1464
    %v1510 = vadd.f32 %v1457, %v1464
    %v1511 = vadd.f32 %v1458, %v1464
    %v1512 = vadd.f32 %v1459, %v1464
    %v1513 = vadd.f32 %v1460, %v1464
    %v1514 = vadd.f32 %v1461, %v1464
    %v1515 = vmul.f32 %v1466, 0.5
    %v1516 = vmul.f32 %v1467, 0.5
    %v1517 = vmul.f32 %v1468, 0.5
    %v1518 = vmul.f32 %v1469, 0.5
    %v1519 = vmul.f32 %v1470, 0.5
    %v1520 = vmul.f32 %v1471, 0.5
    %v1521 = vmul.f32 %v1472, 0.5
    %v1522 = vmul.f32 %v1473, 0.5
    %v1523 = vmul.f32 %v1474, 0.5
    %v1524 = vmul.f32 %v1475, 0.5
    %v1525 = vmul.f32 %v1476, 0.5
    %v1526 = vmul.f32 %v1477, 0.5
    %v1527 = vmul.f32 %v1478, 0.5
    %v1528 = vmul.f32 %v1479, 0.5
    %v1529 = vmul.f32 %v1480, 0.5
    %v1530 = vmul.f32 %v1481, 0.5
    %v1531 = vmul.f32 %v1482, 0.5
    %v1532 = vmul.f32 %v1483, 0.5
    %v1533 = vmul.f32 %v1484, 0.5
    %v1534 = vmul.f32 %v1485, 0.5
    %v1535 = vmul.f32 %v1486, 0.5
    %v1536 = vmul.f32 %v1487, 0.5
    %v1537 = vmul.f32 %v1488, 0.5
    %v1538 = vmul.f32 %v1489, 0.5
    %v1539 = vmul.f32 %v1490, 0.5
    %v1540 = vmul.f32 %v1491, 0.5
    %v1541 = vmul.f32 %v1492, 0.5
    %v1542 = vmul.f32 %v1493, 0.5
    %v1543 = vmul.f32 %v1494, 0.5
    %v1544 = vmul.f32 %v1495, 0.5
    %v1545 = vmul.f32 %v1496, 0.5
    %v1546 = vmul.f32 %v1497, 0.5
    %v1547 = vmul.f32 %v1498, 0.5
    %v1548 = vmul.f32 %v1499, 0.5
    %v1549 = vmul.f32 %v1500, 0.5
    %v1550 = vmul.f32 %v1501, 0.5
    %v1551 = vmul.f32 %v1502, 0.5
    %v1552 = vmul.f32 %v1503, 0.5
    %v1553 = vmul.f32 %v1504, 0.5
    %v1554 = vmul.f32 %v1505, 0.5
    %v1555 = vmul.f32 %v1506, 0.5
    %v1556 = vmul.f32 %v1507, 0.5
    %v1557 = vmul.f32 %v1508, 0.5
    %v1558 = vmul.f32 %v1509, 0.5
    %v1559 = vmul.f32 %v1510, 0.5
    %v1560 = vmul.f32 %v1511, 0.5
    %v1561 = vmul.f32 %v1512, 0.5
    %v1562 = vmul.f32 %v1513, 0.5
    %v1563 = vmul.f32 %v1514, 0.5
    %v1564 = vmul.f32 %v1466, 0.70710677
    %v1565 = vmul.f32 %v1467, 0.70710677
    %v1566 = vmul.f32 %v1468, 0.70710677
    %v1567 = vmul.f32 %v1469, 0.70710677
    %v1568 = vmul.f32 %v1470, 0.70710677
    %v1569 = vmul.f32 %v1471, 0.70710677
    %v1570 = vmul.f32 %v1472, 0.70710677
    %v1571 = vmul.f32 %v1473, 0.70710677
    %v1572 = vmul.f32 %v1474, 0.70710677
    %v1573 = vmul.f32 %v1475, 0.70710677
    %v1574 = vmul.f32 %v1476, 0.70710677
    %v1575 = vmul.f32 %v1477, 0.70710677
    %v1576 = vmul.f32 %v1478, 0.70710677
    %v1577 = vmul.f32 %v1479, 0.70710677
    %v1578 = vmul.f32 %v1480, 0.70710677
    %v1579 = vmul.f32 %v1481, 0.70710677
    %v1580 = vmul.f32 %v1482, 0.70710677
    %v1581 = vmul.f32 %v1483, 0.70710677
    %v1582 = vmul.f32 %v1484, 0.70710677
    %v1583 = vmul.f32 %v1485, 0.70710677
    %v1584 = vmul.f32 %v1486, 0.70710677
    %v1585 = vmul.f32 %v1487, 0.70710677
    %v1586 = vmul.f32 %v1488, 0.70710677
    %v1587 = vmul.f32 %v1489, 0.70710677
    %v1588 = vmul.f32 %v1490, 0.70710677
    %v1589 = vmul.f32 %v1491, 0.70710677
    %v1590 = vmul.f32 %v1492, 0.70710677
    %v1591 = vmul.f32 %v1493, 0.70710677
    %v1592 = vmul.f32 %v1494, 0.70710677
    %v1593 = vmul.f32 %v1495, 0.70710677
    %v1594 = vmul.f32 %v1496, 0.70710677
    %v1595 = vmul.f32 %v1497, 0.70710677
    %v1596 = vmul.f32 %v1498, 0.70710677
    %v1597 = vmul.f32 %v1499, 0.70710677
    %v1598 = vmul.f32 %v1500, 0.70710677
    %v1599 = vmul.f32 %v1501, 0.70710677
    %v1600 = vmul.f32 %v1502, 0.70710677
    %v1601 = vmul.f32 %v1503, 0.70710677
    %v1602 = vmul.f32 %v1504, 0.70710677
    %v1603 = vmul.f32 %v1505, 0.70710677
    %v1604 = vmul.f32 %v1506, 0.70710677
    %v1605 = vmul.f32 %v1507, 0.70710677
    %v1606 = vmul.f32 %v1508, 0.70710677
    %v1607 = vmul.f32 %v1509, 0.70710677
    %v1608 = vmul.f32 %v1510, 0.70710677
    %v1609 = vmul.f32 %v1511, 0.70710677
    %v1610 = vmul.f32 %v1512, 0.70710677
    %v1611 = vmul.f32 %v1513, 0.70710677
    %v1612 = vmul.f32 %v1514, 0.70710677
    %vm1613 = vcmp.ge.f32.partialorder %v1564, 0.0
    %vm1614 = vcmp.ge.f32.partialorder %v1565, 0.0
    %vm1615 = vcmp.ge.f32.partialorder %v1566, 0.0
    %vm1616 = vcmp.ge.f32.partialorder %v1567, 0.0
    %vm1617 = vcmp.ge.f32.partialorder %v1568, 0.0
    %vm1618 = vcmp.ge.f32.partialorder %v1569, 0.0
    %vm1619 = vcmp.ge.f32.partialorder %v1570, 0.0
    %vm1620 = vcmp.ge.f32.partialorder %v1571, 0.0
    %vm1621 = vcmp.ge.f32.partialorder %v1572, 0.0
    %vm1622 = vcmp.ge.f32.partialorder %v1573, 0.0
    %vm1623 = vcmp.ge.f32.partialorder %v1574, 0.0
    %vm1624 = vcmp.ge.f32.partialorder %v1575, 0.0
    %vm1625 = vcmp.ge.f32.partialorder %v1576, 0.0
    %vm1626 = vcmp.ge.f32.partialorder %v1577, 0.0
    %vm1627 = vcmp.ge.f32.partialorder %v1578, 0.0
    %vm1628 = vcmp.ge.f32.partialorder %v1579, 0.0
    %vm1629 = vcmp.ge.f32.partialorder %v1580, 0.0
    %vm1630 = vcmp.ge.f32.partialorder %v1581, 0.0
    %vm1631 = vcmp.ge.f32.partialorder %v1582, 0.0
    %vm1632 = vcmp.ge.f32.partialorder %v1583, 0.0
    %vm1633 = vcmp.ge.f32.partialorder %v1584, 0.0
    %vm1634 = vcmp.ge.f32.partialorder %v1585, 0.0
    %vm1635 = vcmp.ge.f32.partialorder %v1586, 0.0
    %vm1636 = vcmp.ge.f32.partialorder %v1587, 0.0
    %vm1637 = vcmp.ge.f32.partialorder %v1588, 0.0
    %vm1638 = vcmp.ge.f32.partialorder %v1589, 0.0
    %vm1639 = vcmp.ge.f32.partialorder %v1590, 0.0
    %vm1640 = vcmp.ge.f32.partialorder %v1591, 0.0
    %vm1641 = vcmp.ge.f32.partialorder %v1592, 0.0
    %vm1642 = vcmp.ge.f32.partialorder %v1593, 0.0
    %vm1643 = vcmp.ge.f32.partialorder %v1594, 0.0
    %vm1644 = vcmp.ge.f32.partialorder %v1595, 0.0
    %vm1645 = vcmp.ge.f32.partialorder %v1596, 0.0
    %vm1646 = vcmp.ge.f32.partialorder %v1597, 0.0
    %vm1647 = vcmp.ge.f32.partialorder %v1598, 0.0
    %vm1648 = vcmp.ge.f32.partialorder %v1599, 0.0
    %vm1649 = vcmp.ge.f32.partialorder %v1600, 0.0
    %vm1650 = vcmp.ge.f32.partialorder %v1601, 0.0
    %vm1651 = vcmp.ge.f32.partialorder %v1602, 0.0
    %vm1652 = vcmp.ge.f32.partialorder %v1603, 0.0
    %vm1653 = vcmp.ge.f32.partialorder %v1604, 0.0
    %vm1654 = vcmp.ge.f32.partialorder %v1605, 0.0
    %vm1655 = vcmp.ge.f32.partialorder %v1606, 0.0
    %vm1656 = vcmp.ge.f32.partialorder %v1607, 0.0
    %vm1657 = vcmp.ge.f32.partialorder %v1608, 0.0
    %vm1658 = vcmp.ge.f32.partialorder %v1609, 0.0
    %vm1659 = vcmp.ge.f32.partialorder %v1610, 0.0
    %vm1660 = vcmp.ge.f32.partialorder %v1611, 0.0
    %vm1661 = vcmp.ge.f32.partialorder %v1612, 0.0
    %v1662 = vsel %vm1613, 1.0, -1.0
    %v1663 = vsel %vm1614, 1.0, -1.0
    %v1664 = vsel %vm1615, 1.0, -1.0
    %v1665 = vsel %vm1616, 1.0, -1.0
    %v1666 = vsel %vm1617, 1.0, -1.0
    %v1667 = vsel %vm1618, 1.0, -1.0
    %v1668 = vsel %vm1619, 1.0, -1.0
    %v1669 = vsel %vm1620, 1.0, -1.0
    %v1670 = vsel %vm1621, 1.0, -1.0
    %v1671 = vsel %vm1622, 1.0, -1.0
    %v1672 = vsel %vm1623, 1.0, -1.0
    %v1673 = vsel %vm1624, 1.0, -1.0
    %v1674 = vsel %vm1625, 1.0, -1.0
    %v1675 = vsel %vm1626, 1.0, -1.0
    %v1676 = vsel %vm1627, 1.0, -1.0
    %v1677 = vsel %vm1628, 1.0, -1.0
    %v1678 = vsel %vm1629, 1.0, -1.0
    %v1679 = vsel %vm1630, 1.0, -1.0
    %v1680 = vsel %vm1631, 1.0, -1.0
    %v1681 = vsel %vm1632, 1.0, -1.0
    %v1682 = vsel %vm1633, 1.0, -1.0
    %v1683 = vsel %vm1634, 1.0, -1.0
    %v1684 = vsel %vm1635, 1.0, -1.0
    %v1685 = vsel %vm1636, 1.0, -1.0
    %v1686 = vsel %vm1637, 1.0, -1.0
    %v1687 = vsel %vm1638, 1.0, -1.0
    %v1688 = vsel %vm1639, 1.0, -1.0
    %v1689 = vsel %vm1640, 1.0, -1.0
    %v1690 = vsel %vm1641, 1.0, -1.0
    %v1691 = vsel %vm1642, 1.0, -1.0
    %v1692 = vsel %vm1643, 1.0, -1.0
    %v1693 = vsel %vm1644, 1.0, -1.0
    %v1694 = vsel %vm1645, 1.0, -1.0
    %v1695 = vsel %vm1646, 1.0, -1.0
    %v1696 = vsel %vm1647, 1.0, -1.0
    %v1697 = vsel %vm1648, 1.0, -1.0
    %v1698 = vsel %vm1649, 1.0, -1.0
    %v1699 = vsel %vm1650, 1.0, -1.0
    %v1700 = vsel %vm1651, 1.0, -1.0
    %v1701 = vsel %vm1652, 1.0, -1.0
    %v1702 = vsel %vm1653, 1.0, -1.0
    %v1703 = vsel %vm1654, 1.0, -1.0
    %v1704 = vsel %vm1655, 1.0, -1.0
    %v1705 = vsel %vm1656, 1.0, -1.0
    %v1706 = vsel %vm1657, 1.0, -1.0
    %v1707 = vsel %vm1658, 1.0, -1.0
    %v1708 = vsel %vm1659, 1.0, -1.0
    %v1709 = vsel %vm1660, 1.0, -1.0
    %v1710 = vsel %vm1661, 1.0, -1.0
    %v1711 = vand.u32 2147483647, %v1564
    %v1712 = vand.u32 2147483647, %v1565
    %v1713 = vand.u32 2147483647, %v1566
    %v1714 = vand.u32 2147483647, %v1567
    %v1715 = vand.u32 2147483647, %v1568
    %v1716 = vand.u32 2147483647, %v1569
    %v1717 = vand.u32 2147483647, %v1570
    %v1718 = vand.u32 2147483647, %v1571
    %v1719 = vand.u32 2147483647, %v1572
    %v1720 = vand.u32 2147483647, %v1573
    %v1721 = vand.u32 2147483647, %v1574
    %v1722 = vand.u32 2147483647, %v1575
    %v1723 = vand.u32 2147483647, %v1576
    %v1724 = vand.u32 2147483647, %v1577
    %v1725 = vand.u32 2147483647, %v1578
    %v1726 = vand.u32 2147483647, %v1579
    %v1727 = vand.u32 2147483647, %v1580
    %v1728 = vand.u32 2147483647, %v1581
    %v1729 = vand.u32 2147483647, %v1582
    %v1730 = vand.u32 2147483647, %v1583
    %v1731 = vand.u32 2147483647, %v1584
    %v1732 = vand.u32 2147483647, %v1585
    %v1733 = vand.u32 2147483647, %v1586
    %v1734 = vand.u32 2147483647, %v1587
    %v1735 = vand.u32 2147483647, %v1588
    %v1736 = vand.u32 2147483647, %v1589
    %v1737 = vand.u32 2147483647, %v1590
    %v1738 = vand.u32 2147483647, %v1591
    %v1739 = vand.u32 2147483647, %v1592
    %v1740 = vand.u32 2147483647, %v1593
    %v1741 = vand.u32 2147483647, %v1594
    %v1742 = vand.u32 2147483647, %v1595
    %v1743 = vand.u32 2147483647, %v1596
    %v1744 = vand.u32 2147483647, %v1597
    %v1745 = vand.u32 2147483647, %v1598
    %v1746 = vand.u32 2147483647, %v1599
    %v1747 = vand.u32 2147483647, %v1600
    %v1748 = vand.u32 2147483647, %v1601
    %v1749 = vand.u32 2147483647, %v1602
    %v1750 = vand.u32 2147483647, %v1603
    %v1751 = vand.u32 2147483647, %v1604
    %v1752 = vand.u32 2147483647, %v1605
    %v1753 = vand.u32 2147483647, %v1606
    %v1754 = vand.u32 2147483647, %v1607
    %v1755 = vand.u32 2147483647, %v1608
    %v1756 = vand.u32 2147483647, %v1609
    %v1757 = vand.u32 2147483647, %v1610
    %v1758 = vand.u32 2147483647, %v1611
    %v1759 = vand.u32 2147483647, %v1612
    %v1760 = vmul.f32 %v1711, 0.3275911
    %v1761 = vmul.f32 %v1712, 0.3275911
    %v1762 = vmul.f32 %v1713, 0.3275911
    %v1763 = vmul.f32 %v1714, 0.3275911
    %v1764 = vmul.f32 %v1715, 0.3275911
    %v1765 = vmul.f32 %v1716, 0.3275911
    %v1766 = vmul.f32 %v1717, 0.3275911
    %v1767 = vmul.f32 %v1718, 0.3275911
    %v1768 = vmul.f32 %v1719, 0.3275911
    %v1769 = vmul.f32 %v1720, 0.3275911
    %v1770 = vmul.f32 %v1721, 0.3275911
    %v1771 = vmul.f32 %v1722, 0.3275911
    %v1772 = vmul.f32 %v1723, 0.3275911
    %v1773 = vmul.f32 %v1724, 0.3275911
    %v1774 = vmul.f32 %v1725, 0.3275911
    %v1775 = vmul.f32 %v1726, 0.3275911
    %v1776 = vmul.f32 %v1727, 0.3275911
    %v1777 = vmul.f32 %v1728, 0.3275911
    %v1778 = vmul.f32 %v1729, 0.3275911
    %v1779 = vmul.f32 %v1730, 0.3275911
    %v1780 = vmul.f32 %v1731, 0.3275911
    %v1781 = vmul.f32 %v1732, 0.3275911
    %v1782 = vmul.f32 %v1733, 0.3275911
    %v1783 = vmul.f32 %v1734, 0.3275911
    %v1784 = vmul.f32 %v1735, 0.3275911
    %v1785 = vmul.f32 %v1736, 0.3275911
    %v1786 = vmul.f32 %v1737, 0.3275911
    %v1787 = vmul.f32 %v1738, 0.3275911
    %v1788 = vmul.f32 %v1739, 0.3275911
    %v1789 = vmul.f32 %v1740, 0.3275911
    %v1790 = vmul.f32 %v1741, 0.3275911
    %v1791 = vmul.f32 %v1742, 0.3275911
    %v1792 = vmul.f32 %v1743, 0.3275911
    %v1793 = vmul.f32 %v1744, 0.3275911
    %v1794 = vmul.f32 %v1745, 0.3275911
    %v1795 = vmul.f32 %v1746, 0.3275911
    %v1796 = vmul.f32 %v1747, 0.3275911
    %v1797 = vmul.f32 %v1748, 0.3275911
    %v1798 = vmul.f32 %v1749, 0.3275911
    %v1799 = vmul.f32 %v1750, 0.3275911
    %v1800 = vmul.f32 %v1751, 0.3275911
    %v1801 = vmul.f32 %v1752, 0.3275911
    %v1802 = vmul.f32 %v1753, 0.3275911
    %v1803 = vmul.f32 %v1754, 0.3275911
    %v1804 = vmul.f32 %v1755, 0.3275911
    %v1805 = vmul.f32 %v1756, 0.3275911
    %v1806 = vmul.f32 %v1757, 0.3275911
    %v1807 = vmul.f32 %v1758, 0.3275911
    %v1808 = vmul.f32 %v1759, 0.3275911
    %v1809 = vadd.f32 %v1760, 1.0
    %v1810 = vadd.f32 %v1761, 1.0
    %v1811 = vadd.f32 %v1762, 1.0
    %v1812 = vadd.f32 %v1763, 1.0
    %v1813 = vadd.f32 %v1764, 1.0
    %v1814 = vadd.f32 %v1765, 1.0
    %v1815 = vadd.f32 %v1766, 1.0
    %v1816 = vadd.f32 %v1767, 1.0
    %v1817 = vadd.f32 %v1768, 1.0
    %v1818 = vadd.f32 %v1769, 1.0
    %v1819 = vadd.f32 %v1770, 1.0
    %v1820 = vadd.f32 %v1771, 1.0
    %v1821 = vadd.f32 %v1772, 1.0
    %v1822 = vadd.f32 %v1773, 1.0
    %v1823 = vadd.f32 %v1774, 1.0
    %v1824 = vadd.f32 %v1775, 1.0
    %v1825 = vadd.f32 %v1776, 1.0
    %v1826 = vadd.f32 %v1777, 1.0
    %v1827 = vadd.f32 %v1778, 1.0
    %v1828 = vadd.f32 %v1779, 1.0
    %v1829 = vadd.f32 %v1780, 1.0
    %v1830 = vadd.f32 %v1781, 1.0
    %v1831 = vadd.f32 %v1782, 1.0
    %v1832 = vadd.f32 %v1783, 1.0
    %v1833 = vadd.f32 %v1784, 1.0
    %v1834 = vadd.f32 %v1785, 1.0
    %v1835 = vadd.f32 %v1786, 1.0
    %v1836 = vadd.f32 %v1787, 1.0
    %v1837 = vadd.f32 %v1788, 1.0
    %v1838 = vadd.f32 %v1789, 1.0
    %v1839 = vadd.f32 %v1790, 1.0
    %v1840 = vadd.f32 %v1791, 1.0
    %v1841 = vadd.f32 %v1792, 1.0
    %v1842 = vadd.f32 %v1793, 1.0
    %v1843 = vadd.f32 %v1794, 1.0
    %v1844 = vadd.f32 %v1795, 1.0
    %v1845 = vadd.f32 %v1796, 1.0
    %v1846 = vadd.f32 %v1797, 1.0
    %v1847 = vadd.f32 %v1798, 1.0
    %v1848 = vadd.f32 %v1799, 1.0
    %v1849 = vadd.f32 %v1800, 1.0
    %v1850 = vadd.f32 %v1801, 1.0
    %v1851 = vadd.f32 %v1802, 1.0
    %v1852 = vadd.f32 %v1803, 1.0
    %v1853 = vadd.f32 %v1804, 1.0
    %v1854 = vadd.f32 %v1805, 1.0
    %v1855 = vadd.f32 %v1806, 1.0
    %v1856 = vadd.f32 %v1807, 1.0
    %v1857 = vadd.f32 %v1808, 1.0
    %v1858 = vrcp.pop %v1809
    %v1859 = vmul.f32 %v1809, %v1858
    %v1860 = vsub.f32 1.0, %v1859
    %v1861 = vmul.f32 %v1858, %v1860
    %v1862 = vadd.f32 %v1858, %v1861
    %vm1863 = vweird.f32 %v1809
    %vm1864 = vweird.f32 %v1858
    %vm1865 = vmor %vm1863, %vm1864
    %v1866 = vsel %vm1865, %v1858, %v1862
    %v1867 = vand.u32 2147483647, %v1809
    %vm1868 = vcmp.eq.f32.partialorder %v1867, 8.507059e+37
    %v1869 = vand.u32 %v1809, 2147483648
    %v1870 = vor.u32 1.1754944e-38, %v1869
    %v1871 = vsel %vm1868, %v1870, %v1866
    %v1872 = vmul.f32 1.0, %v1871
    %v1873 = vrcp.pop %v1810
    %v1874 = vmul.f32 %v1810, %v1873
    %v1875 = vsub.f32 1.0, %v1874
    %v1876 = vmul.f32 %v1873, %v1875
    %v1877 = vadd.f32 %v1873, %v1876
    %vm1878 = vweird.f32 %v1810
    %vm1879 = vweird.f32 %v1873
    %vm1880 = vmor %vm1878, %vm1879
    %v1881 = vsel %vm1880, %v1873, %v1877
    %v1882 = vand.u32 2147483647, %v1810
    %vm1883 = vcmp.eq.f32.partialorder %v1882, 8.507059e+37
    %v1884 = vand.u32 %v1810, 2147483648
    %v1885 = vor.u32 1.1754944e-38, %v1884
    %v1886 = vsel %vm1883, %v1885, %v1881
    %v1887 = vmul.f32 1.0, %v1886
    %v1888 = vrcp.pop %v1811
    %v1889 = vmul.f32 %v1811, %v1888
    %v1890 = vsub.f32 1.0, %v1889
    %v1891 = vmul.f32 %v1888, %v1890
    %v1892 = vadd.f32 %v1888, %v1891
    %vm1893 = vweird.f32 %v1811
    %vm1894 = vweird.f32 %v1888
    %vm1895 = vmor %vm1893, %vm1894
    %v1896 = vsel %vm1895, %v1888, %v1892
    %v1897 = vand.u32 2147483647, %v1811
    %vm1898 = vcmp.eq.f32.partialorder %v1897, 8.507059e+37
    %v1899 = vand.u32 %v1811, 2147483648
    %v1900 = vor.u32 1.1754944e-38, %v1899
    %v1901 = vsel %vm1898, %v1900, %v1896
    %v1902 = vmul.f32 1.0, %v1901
    %v1903 = vrcp.pop %v1812
    %v1904 = vmul.f32 %v1812, %v1903
    %v1905 = vsub.f32 1.0, %v1904
    %v1906 = vmul.f32 %v1903, %v1905
    %v1907 = vadd.f32 %v1903, %v1906
    %vm1908 = vweird.f32 %v1812
    %vm1909 = vweird.f32 %v1903
    %vm1910 = vmor %vm1908, %vm1909
    %v1911 = vsel %vm1910, %v1903, %v1907
    %v1912 = vand.u32 2147483647, %v1812
    %vm1913 = vcmp.eq.f32.partialorder %v1912, 8.507059e+37
    %v1914 = vand.u32 %v1812, 2147483648
    %v1915 = vor.u32 1.1754944e-38, %v1914
    %v1916 = vsel %vm1913, %v1915, %v1911
    %v1917 = vmul.f32 1.0, %v1916
    %v1918 = vrcp.pop %v1813
    %v1919 = vmul.f32 %v1813, %v1918
    %v1920 = vsub.f32 1.0, %v1919
    %v1921 = vmul.f32 %v1918, %v1920
    %v1922 = vadd.f32 %v1918, %v1921
    %vm1923 = vweird.f32 %v1813
    %vm1924 = vweird.f32 %v1918
    %vm1925 = vmor %vm1923, %vm1924
    %v1926 = vsel %vm1925, %v1918, %v1922
    %v1927 = vand.u32 2147483647, %v1813
    %vm1928 = vcmp.eq.f32.partialorder %v1927, 8.507059e+37
    %v1929 = vand.u32 %v1813, 2147483648
    %v1930 = vor.u32 1.1754944e-38, %v1929
    %v1931 = vsel %vm1928, %v1930, %v1926
    %v1932 = vmul.f32 1.0, %v1931
    %v1933 = vrcp.pop %v1814
    %v1934 = vmul.f32 %v1814, %v1933
    %v1935 = vsub.f32 1.0, %v1934
    %v1936 = vmul.f32 %v1933, %v1935
    %v1937 = vadd.f32 %v1933, %v1936
    %vm1938 = vweird.f32 %v1814
    %vm1939 = vweird.f32 %v1933
    %vm1940 = vmor %vm1938, %vm1939
    %v1941 = vsel %vm1940, %v1933, %v1937
    %v1942 = vand.u32 2147483647, %v1814
    %vm1943 = vcmp.eq.f32.partialorder %v1942, 8.507059e+37
    %v1944 = vand.u32 %v1814, 2147483648
    %v1945 = vor.u32 1.1754944e-38, %v1944
    %v1946 = vsel %vm1943, %v1945, %v1941
    %v1947 = vmul.f32 1.0, %v1946
    %v1948 = vrcp.pop %v1815
    %v1949 = vmul.f32 %v1815, %v1948
    %v1950 = vsub.f32 1.0, %v1949
    %v1951 = vmul.f32 %v1948, %v1950
    %v1952 = vadd.f32 %v1948, %v1951
    %vm1953 = vweird.f32 %v1815
    %vm1954 = vweird.f32 %v1948
    %vm1955 = vmor %vm1953, %vm1954
    %v1956 = vsel %vm1955, %v1948, %v1952
    %v1957 = vand.u32 2147483647, %v1815
    %vm1958 = vcmp.eq.f32.partialorder %v1957, 8.507059e+37
    %v1959 = vand.u32 %v1815, 2147483648
    %v1960 = vor.u32 1.1754944e-38, %v1959
    %v1961 = vsel %vm1958, %v1960, %v1956
    %v1962 = vmul.f32 1.0, %v1961
    %v1963 = vrcp.pop %v1816
    %v1964 = vmul.f32 %v1816, %v1963
    %v1965 = vsub.f32 1.0, %v1964
    %v1966 = vmul.f32 %v1963, %v1965
    %v1967 = vadd.f32 %v1963, %v1966
    %vm1968 = vweird.f32 %v1816
    %vm1969 = vweird.f32 %v1963
    %vm1970 = vmor %vm1968, %vm1969
    %v1971 = vsel %vm1970, %v1963, %v1967
    %v1972 = vand.u32 2147483647, %v1816
    %vm1973 = vcmp.eq.f32.partialorder %v1972, 8.507059e+37
    %v1974 = vand.u32 %v1816, 2147483648
    %v1975 = vor.u32 1.1754944e-38, %v1974
    %v1976 = vsel %vm1973, %v1975, %v1971
    %v1977 = vmul.f32 1.0, %v1976
    %v1978 = vrcp.pop %v1817
    %v1979 = vmul.f32 %v1817, %v1978
    %v1980 = vsub.f32 1.0, %v1979
    %v1981 = vmul.f32 %v1978, %v1980
    %v1982 = vadd.f32 %v1978, %v1981
    %vm1983 = vweird.f32 %v1817
    %vm1984 = vweird.f32 %v1978
    %vm1985 = vmor %vm1983, %vm1984
    %v1986 = vsel %vm1985, %v1978, %v1982
    %v1987 = vand.u32 2147483647, %v1817
    %vm1988 = vcmp.eq.f32.partialorder %v1987, 8.507059e+37
    %v1989 = vand.u32 %v1817, 2147483648
    %v1990 = vor.u32 1.1754944e-38, %v1989
    %v1991 = vsel %vm1988, %v1990, %v1986
    %v1992 = vmul.f32 1.0, %v1991
    %v1993 = vrcp.pop %v1818
    %v1994 = vmul.f32 %v1818, %v1993
    %v1995 = vsub.f32 1.0, %v1994
    %v1996 = vmul.f32 %v1993, %v1995
    %v1997 = vadd.f32 %v1993, %v1996
    %vm1998 = vweird.f32 %v1818
    %vm1999 = vweird.f32 %v1993
    %vm2000 = vmor %vm1998, %vm1999
    %v2001 = vsel %vm2000, %v1993, %v1997
    %v2002 = vand.u32 2147483647, %v1818
    %vm2003 = vcmp.eq.f32.partialorder %v2002, 8.507059e+37
    %v2004 = vand.u32 %v1818, 2147483648
    %v2005 = vor.u32 1.1754944e-38, %v2004
    %v2006 = vsel %vm2003, %v2005, %v2001
    %v2007 = vmul.f32 1.0, %v2006
    %v2008 = vrcp.pop %v1819
    %v2009 = vmul.f32 %v1819, %v2008
    %v2010 = vsub.f32 1.0, %v2009
    %v2011 = vmul.f32 %v2008, %v2010
    %v2012 = vadd.f32 %v2008, %v2011
    %vm2013 = vweird.f32 %v1819
    %vm2014 = vweird.f32 %v2008
    %vm2015 = vmor %vm2013, %vm2014
    %v2016 = vsel %vm2015, %v2008, %v2012
    %v2017 = vand.u32 2147483647, %v1819
    %vm2018 = vcmp.eq.f32.partialorder %v2017, 8.507059e+37
    %v2019 = vand.u32 %v1819, 2147483648
    %v2020 = vor.u32 1.1754944e-38, %v2019
    %v2021 = vsel %vm2018, %v2020, %v2016
    %v2022 = vmul.f32 1.0, %v2021
    %v2023 = vrcp.pop %v1820
    %v2024 = vmul.f32 %v1820, %v2023
    %v2025 = vsub.f32 1.0, %v2024
    %v2026 = vmul.f32 %v2023, %v2025
    %v2027 = vadd.f32 %v2023, %v2026
    %vm2028 = vweird.f32 %v1820
    %vm2029 = vweird.f32 %v2023
    %vm2030 = vmor %vm2028, %vm2029
    %v2031 = vsel %vm2030, %v2023, %v2027
    %v2032 = vand.u32 2147483647, %v1820
    %vm2033 = vcmp.eq.f32.partialorder %v2032, 8.507059e+37
    %v2034 = vand.u32 %v1820, 2147483648
    %v2035 = vor.u32 1.1754944e-38, %v2034
    %v2036 = vsel %vm2033, %v2035, %v2031
    %v2037 = vmul.f32 1.0, %v2036
    %v2038 = vrcp.pop %v1821
    %v2039 = vmul.f32 %v1821, %v2038
    %v2040 = vsub.f32 1.0, %v2039
    %v2041 = vmul.f32 %v2038, %v2040
    %v2042 = vadd.f32 %v2038, %v2041
    %vm2043 = vweird.f32 %v1821
    %vm2044 = vweird.f32 %v2038
    %vm2045 = vmor %vm2043, %vm2044
    %v2046 = vsel %vm2045, %v2038, %v2042
    %v2047 = vand.u32 2147483647, %v1821
    %vm2048 = vcmp.eq.f32.partialorder %v2047, 8.507059e+37
    %v2049 = vand.u32 %v1821, 2147483648
    %v2050 = vor.u32 1.1754944e-38, %v2049
    %v2051 = vsel %vm2048, %v2050, %v2046
    %v2052 = vmul.f32 1.0, %v2051
    %v2053 = vrcp.pop %v1822
    %v2054 = vmul.f32 %v1822, %v2053
    %v2055 = vsub.f32 1.0, %v2054
    %v2056 = vmul.f32 %v2053, %v2055
    %v2057 = vadd.f32 %v2053, %v2056
    %vm2058 = vweird.f32 %v1822
    %vm2059 = vweird.f32 %v2053
    %vm2060 = vmor %vm2058, %vm2059
    %v2061 = vsel %vm2060, %v2053, %v2057
    %v2062 = vand.u32 2147483647, %v1822
    %vm2063 = vcmp.eq.f32.partialorder %v2062, 8.507059e+37
    %v2064 = vand.u32 %v1822, 2147483648
    %v2065 = vor.u32 1.1754944e-38, %v2064
    %v2066 = vsel %vm2063, %v2065, %v2061
    %v2067 = vmul.f32 1.0, %v2066
    %v2068 = vrcp.pop %v1823
    %v2069 = vmul.f32 %v1823, %v2068
    %v2070 = vsub.f32 1.0, %v2069
    %v2071 = vmul.f32 %v2068, %v2070
    %v2072 = vadd.f32 %v2068, %v2071
    %vm2073 = vweird.f32 %v1823
    %vm2074 = vweird.f32 %v2068
    %vm2075 = vmor %vm2073, %vm2074
    %v2076 = vsel %vm2075, %v2068, %v2072
    %v2077 = vand.u32 2147483647, %v1823
    %vm2078 = vcmp.eq.f32.partialorder %v2077, 8.507059e+37
    %v2079 = vand.u32 %v1823, 2147483648
    %v2080 = vor.u32 1.1754944e-38, %v2079
    %v2081 = vsel %vm2078, %v2080, %v2076
    %v2082 = vmul.f32 1.0, %v2081
    %v2083 = vrcp.pop %v1824
    %v2084 = vmul.f32 %v1824, %v2083
    %v2085 = vsub.f32 1.0, %v2084
    %v2086 = vmul.f32 %v2083, %v2085
    %v2087 = vadd.f32 %v2083, %v2086
    %vm2088 = vweird.f32 %v1824
    %vm2089 = vweird.f32 %v2083
    %vm2090 = vmor %vm2088, %vm2089
    %v2091 = vsel %vm2090, %v2083, %v2087
    %v2092 = vand.u32 2147483647, %v1824
    %vm2093 = vcmp.eq.f32.partialorder %v2092, 8.507059e+37
    %v2094 = vand.u32 %v1824, 2147483648
    %v2095 = vor.u32 1.1754944e-38, %v2094
    %v2096 = vsel %vm2093, %v2095, %v2091
    %v2097 = vmul.f32 1.0, %v2096
    %v2098 = vrcp.pop %v1825
    %v2099 = vmul.f32 %v1825, %v2098
    %v2100 = vsub.f32 1.0, %v2099
    %v2101 = vmul.f32 %v2098, %v2100
    %v2102 = vadd.f32 %v2098, %v2101
    %vm2103 = vweird.f32 %v1825
    %vm2104 = vweird.f32 %v2098
    %vm2105 = vmor %vm2103, %vm2104
    %v2106 = vsel %vm2105, %v2098, %v2102
    %v2107 = vand.u32 2147483647, %v1825
    %vm2108 = vcmp.eq.f32.partialorder %v2107, 8.507059e+37
    %v2109 = vand.u32 %v1825, 2147483648
    %v2110 = vor.u32 1.1754944e-38, %v2109
    %v2111 = vsel %vm2108, %v2110, %v2106
    %v2112 = vmul.f32 1.0, %v2111
    %v2113 = vrcp.pop %v1826
    %v2114 = vmul.f32 %v1826, %v2113
    %v2115 = vsub.f32 1.0, %v2114
    %v2116 = vmul.f32 %v2113, %v2115
    %v2117 = vadd.f32 %v2113, %v2116
    %vm2118 = vweird.f32 %v1826
    %vm2119 = vweird.f32 %v2113
    %vm2120 = vmor %vm2118, %vm2119
    %v2121 = vsel %vm2120, %v2113, %v2117
    %v2122 = vand.u32 2147483647, %v1826
    %vm2123 = vcmp.eq.f32.partialorder %v2122, 8.507059e+37
    %v2124 = vand.u32 %v1826, 2147483648
    %v2125 = vor.u32 1.1754944e-38, %v2124
    %v2126 = vsel %vm2123, %v2125, %v2121
    %v2127 = vmul.f32 1.0, %v2126
    %v2128 = vrcp.pop %v1827
    %v2129 = vmul.f32 %v1827, %v2128
    %v2130 = vsub.f32 1.0, %v2129
    %v2131 = vmul.f32 %v2128, %v2130
    %v2132 = vadd.f32 %v2128, %v2131
    %vm2133 = vweird.f32 %v1827
    %vm2134 = vweird.f32 %v2128
    %vm2135 = vmor %vm2133, %vm2134
    %v2136 = vsel %vm2135, %v2128, %v2132
    %v2137 = vand.u32 2147483647, %v1827
    %vm2138 = vcmp.eq.f32.partialorder %v2137, 8.507059e+37
    %v2139 = vand.u32 %v1827, 2147483648
    %v2140 = vor.u32 1.1754944e-38, %v2139
    %v2141 = vsel %vm2138, %v2140, %v2136
    %v2142 = vmul.f32 1.0, %v2141
    %v2143 = vrcp.pop %v1828
    %v2144 = vmul.f32 %v1828, %v2143
    %v2145 = vsub.f32 1.0, %v2144
    %v2146 = vmul.f32 %v2143, %v2145
    %v2147 = vadd.f32 %v2143, %v2146
    %vm2148 = vweird.f32 %v1828
    %vm2149 = vweird.f32 %v2143
    %vm2150 = vmor %vm2148, %vm2149
    %v2151 = vsel %vm2150, %v2143, %v2147
    %v2152 = vand.u32 2147483647, %v1828
    %vm2153 = vcmp.eq.f32.partialorder %v2152, 8.507059e+37
    %v2154 = vand.u32 %v1828, 2147483648
    %v2155 = vor.u32 1.1754944e-38, %v2154
    %v2156 = vsel %vm2153, %v2155, %v2151
    %v2157 = vmul.f32 1.0, %v2156
    %v2158 = vrcp.pop %v1829
    %v2159 = vmul.f32 %v1829, %v2158
    %v2160 = vsub.f32 1.0, %v2159
    %v2161 = vmul.f32 %v2158, %v2160
    %v2162 = vadd.f32 %v2158, %v2161
    %vm2163 = vweird.f32 %v1829
    %vm2164 = vweird.f32 %v2158
    %vm2165 = vmor %vm2163, %vm2164
    %v2166 = vsel %vm2165, %v2158, %v2162
    %v2167 = vand.u32 2147483647, %v1829
    %vm2168 = vcmp.eq.f32.partialorder %v2167, 8.507059e+37
    %v2169 = vand.u32 %v1829, 2147483648
    %v2170 = vor.u32 1.1754944e-38, %v2169
    %v2171 = vsel %vm2168, %v2170, %v2166
    %v2172 = vmul.f32 1.0, %v2171
    %v2173 = vrcp.pop %v1830
    %v2174 = vmul.f32 %v1830, %v2173
    %v2175 = vsub.f32 1.0, %v2174
    %v2176 = vmul.f32 %v2173, %v2175
    %v2177 = vadd.f32 %v2173, %v2176
    %vm2178 = vweird.f32 %v1830
    %vm2179 = vweird.f32 %v2173
    %vm2180 = vmor %vm2178, %vm2179
    %v2181 = vsel %vm2180, %v2173, %v2177
    %v2182 = vand.u32 2147483647, %v1830
    %vm2183 = vcmp.eq.f32.partialorder %v2182, 8.507059e+37
    %v2184 = vand.u32 %v1830, 2147483648
    %v2185 = vor.u32 1.1754944e-38, %v2184
    %v2186 = vsel %vm2183, %v2185, %v2181
    %v2187 = vmul.f32 1.0, %v2186
    %v2188 = vrcp.pop %v1831
    %v2189 = vmul.f32 %v1831, %v2188
    %v2190 = vsub.f32 1.0, %v2189
    %v2191 = vmul.f32 %v2188, %v2190
    %v2192 = vadd.f32 %v2188, %v2191
    %vm2193 = vweird.f32 %v1831
    %vm2194 = vweird.f32 %v2188
    %vm2195 = vmor %vm2193, %vm2194
    %v2196 = vsel %vm2195, %v2188, %v2192
    %v2197 = vand.u32 2147483647, %v1831
    %vm2198 = vcmp.eq.f32.partialorder %v2197, 8.507059e+37
    %v2199 = vand.u32 %v1831, 2147483648
    %v2200 = vor.u32 1.1754944e-38, %v2199
    %v2201 = vsel %vm2198, %v2200, %v2196
    %v2202 = vmul.f32 1.0, %v2201
    %v2203 = vrcp.pop %v1832
    %v2204 = vmul.f32 %v1832, %v2203
    %v2205 = vsub.f32 1.0, %v2204
    %v2206 = vmul.f32 %v2203, %v2205
    %v2207 = vadd.f32 %v2203, %v2206
    %vm2208 = vweird.f32 %v1832
    %vm2209 = vweird.f32 %v2203
    %vm2210 = vmor %vm2208, %vm2209
    %v2211 = vsel %vm2210, %v2203, %v2207
    %v2212 = vand.u32 2147483647, %v1832
    %vm2213 = vcmp.eq.f32.partialorder %v2212, 8.507059e+37
    %v2214 = vand.u32 %v1832, 2147483648
    %v2215 = vor.u32 1.1754944e-38, %v2214
    %v2216 = vsel %vm2213, %v2215, %v2211
    %v2217 = vmul.f32 1.0, %v2216
    %v2218 = vrcp.pop %v1833
    %v2219 = vmul.f32 %v1833, %v2218
    %v2220 = vsub.f32 1.0, %v2219
    %v2221 = vmul.f32 %v2218, %v2220
    %v2222 = vadd.f32 %v2218, %v2221
    %vm2223 = vweird.f32 %v1833
    %vm2224 = vweird.f32 %v2218
    %vm2225 = vmor %vm2223, %vm2224
    %v2226 = vsel %vm2225, %v2218, %v2222
    %v2227 = vand.u32 2147483647, %v1833
    %vm2228 = vcmp.eq.f32.partialorder %v2227, 8.507059e+37
    %v2229 = vand.u32 %v1833, 2147483648
    %v2230 = vor.u32 1.1754944e-38, %v2229
    %v2231 = vsel %vm2228, %v2230, %v2226
    %v2232 = vmul.f32 1.0, %v2231
    %v2233 = vrcp.pop %v1834
    %v2234 = vmul.f32 %v1834, %v2233
    %v2235 = vsub.f32 1.0, %v2234
    %v2236 = vmul.f32 %v2233, %v2235
    %v2237 = vadd.f32 %v2233, %v2236
    %vm2238 = vweird.f32 %v1834
    %vm2239 = vweird.f32 %v2233
    %vm2240 = vmor %vm2238, %vm2239
    %v2241 = vsel %vm2240, %v2233, %v2237
    %v2242 = vand.u32 2147483647, %v1834
    %vm2243 = vcmp.eq.f32.partialorder %v2242, 8.507059e+37
    %v2244 = vand.u32 %v1834, 2147483648
    %v2245 = vor.u32 1.1754944e-38, %v2244
    %v2246 = vsel %vm2243, %v2245, %v2241
    %v2247 = vmul.f32 1.0, %v2246
    %v2248 = vrcp.pop %v1835
    %v2249 = vmul.f32 %v1835, %v2248
    %v2250 = vsub.f32 1.0, %v2249
    %v2251 = vmul.f32 %v2248, %v2250
    %v2252 = vadd.f32 %v2248, %v2251
    %vm2253 = vweird.f32 %v1835
    %vm2254 = vweird.f32 %v2248
    %vm2255 = vmor %vm2253, %vm2254
    %v2256 = vsel %vm2255, %v2248, %v2252
    %v2257 = vand.u32 2147483647, %v1835
    %vm2258 = vcmp.eq.f32.partialorder %v2257, 8.507059e+37
    %v2259 = vand.u32 %v1835, 2147483648
    %v2260 = vor.u32 1.1754944e-38, %v2259
    %v2261 = vsel %vm2258, %v2260, %v2256
    %v2262 = vmul.f32 1.0, %v2261
    %v2263 = vrcp.pop %v1836
    %v2264 = vmul.f32 %v1836, %v2263
    %v2265 = vsub.f32 1.0, %v2264
    %v2266 = vmul.f32 %v2263, %v2265
    %v2267 = vadd.f32 %v2263, %v2266
    %vm2268 = vweird.f32 %v1836
    %vm2269 = vweird.f32 %v2263
    %vm2270 = vmor %vm2268, %vm2269
    %v2271 = vsel %vm2270, %v2263, %v2267
    %v2272 = vand.u32 2147483647, %v1836
    %vm2273 = vcmp.eq.f32.partialorder %v2272, 8.507059e+37
    %v2274 = vand.u32 %v1836, 2147483648
    %v2275 = vor.u32 1.1754944e-38, %v2274
    %v2276 = vsel %vm2273, %v2275, %v2271
    %v2277 = vmul.f32 1.0, %v2276
    %v2278 = vrcp.pop %v1837
    %v2279 = vmul.f32 %v1837, %v2278
    %v2280 = vsub.f32 1.0, %v2279
    %v2281 = vmul.f32 %v2278, %v2280
    %v2282 = vadd.f32 %v2278, %v2281
    %vm2283 = vweird.f32 %v1837
    %vm2284 = vweird.f32 %v2278
    %vm2285 = vmor %vm2283, %vm2284
    %v2286 = vsel %vm2285, %v2278, %v2282
    %v2287 = vand.u32 2147483647, %v1837
    %vm2288 = vcmp.eq.f32.partialorder %v2287, 8.507059e+37
    %v2289 = vand.u32 %v1837, 2147483648
    %v2290 = vor.u32 1.1754944e-38, %v2289
    %v2291 = vsel %vm2288, %v2290, %v2286
    %v2292 = vmul.f32 1.0, %v2291
    %v2293 = vrcp.pop %v1838
    %v2294 = vmul.f32 %v1838, %v2293
    %v2295 = vsub.f32 1.0, %v2294
    %v2296 = vmul.f32 %v2293, %v2295
    %v2297 = vadd.f32 %v2293, %v2296
    %vm2298 = vweird.f32 %v1838
    %vm2299 = vweird.f32 %v2293
    %vm2300 = vmor %vm2298, %vm2299
    %v2301 = vsel %vm2300, %v2293, %v2297
    %v2302 = vand.u32 2147483647, %v1838
    %vm2303 = vcmp.eq.f32.partialorder %v2302, 8.507059e+37
    %v2304 = vand.u32 %v1838, 2147483648
    %v2305 = vor.u32 1.1754944e-38, %v2304
    %v2306 = vsel %vm2303, %v2305, %v2301
    %v2307 = vmul.f32 1.0, %v2306
    %v2308 = vrcp.pop %v1839
    %v2309 = vmul.f32 %v1839, %v2308
    %v2310 = vsub.f32 1.0, %v2309
    %v2311 = vmul.f32 %v2308, %v2310
    %v2312 = vadd.f32 %v2308, %v2311
    %vm2313 = vweird.f32 %v1839
    %vm2314 = vweird.f32 %v2308
    %vm2315 = vmor %vm2313, %vm2314
    %v2316 = vsel %vm2315, %v2308, %v2312
    %v2317 = vand.u32 2147483647, %v1839
    %vm2318 = vcmp.eq.f32.partialorder %v2317, 8.507059e+37
    %v2319 = vand.u32 %v1839, 2147483648
    %v2320 = vor.u32 1.1754944e-38, %v2319
    %v2321 = vsel %vm2318, %v2320, %v2316
    %v2322 = vmul.f32 1.0, %v2321
    %v2323 = vrcp.pop %v1840
    %v2324 = vmul.f32 %v1840, %v2323
    %v2325 = vsub.f32 1.0, %v2324
    %v2326 = vmul.f32 %v2323, %v2325
    %v2327 = vadd.f32 %v2323, %v2326
    %vm2328 = vweird.f32 %v1840
    %vm2329 = vweird.f32 %v2323
    %vm2330 = vmor %vm2328, %vm2329
    %v2331 = vsel %vm2330, %v2323, %v2327
    %v2332 = vand.u32 2147483647, %v1840
    %vm2333 = vcmp.eq.f32.partialorder %v2332, 8.507059e+37
    %v2334 = vand.u32 %v1840, 2147483648
    %v2335 = vor.u32 1.1754944e-38, %v2334
    %v2336 = vsel %vm2333, %v2335, %v2331
    %v2337 = vmul.f32 1.0, %v2336
    %v2338 = vrcp.pop %v1841
    %v2339 = vmul.f32 %v1841, %v2338
    %v2340 = vsub.f32 1.0, %v2339
    %v2341 = vmul.f32 %v2338, %v2340
    %v2342 = vadd.f32 %v2338, %v2341
    %vm2343 = vweird.f32 %v1841
    %vm2344 = vweird.f32 %v2338
    %vm2345 = vmor %vm2343, %vm2344
    %v2346 = vsel %vm2345, %v2338, %v2342
    %v2347 = vand.u32 2147483647, %v1841
    %vm2348 = vcmp.eq.f32.partialorder %v2347, 8.507059e+37
    %v2349 = vand.u32 %v1841, 2147483648
    %v2350 = vor.u32 1.1754944e-38, %v2349
    %v2351 = vsel %vm2348, %v2350, %v2346
    %v2352 = vmul.f32 1.0, %v2351
    %v2353 = vrcp.pop %v1842
    %v2354 = vmul.f32 %v1842, %v2353
    %v2355 = vsub.f32 1.0, %v2354
    %v2356 = vmul.f32 %v2353, %v2355
    %v2357 = vadd.f32 %v2353, %v2356
    %vm2358 = vweird.f32 %v1842
    %vm2359 = vweird.f32 %v2353
    %vm2360 = vmor %vm2358, %vm2359
    %v2361 = vsel %vm2360, %v2353, %v2357
    %v2362 = vand.u32 2147483647, %v1842
    %vm2363 = vcmp.eq.f32.partialorder %v2362, 8.507059e+37
    %v2364 = vand.u32 %v1842, 2147483648
    %v2365 = vor.u32 1.1754944e-38, %v2364
    %v2366 = vsel %vm2363, %v2365, %v2361
    %v2367 = vmul.f32 1.0, %v2366
    %v2368 = vrcp.pop %v1843
    %v2369 = vmul.f32 %v1843, %v2368
    %v2370 = vsub.f32 1.0, %v2369
    %v2371 = vmul.f32 %v2368, %v2370
    %v2372 = vadd.f32 %v2368, %v2371
    %vm2373 = vweird.f32 %v1843
    %vm2374 = vweird.f32 %v2368
    %vm2375 = vmor %vm2373, %vm2374
    %v2376 = vsel %vm2375, %v2368, %v2372
    %v2377 = vand.u32 2147483647, %v1843
    %vm2378 = vcmp.eq.f32.partialorder %v2377, 8.507059e+37
    %v2379 = vand.u32 %v1843, 2147483648
    %v2380 = vor.u32 1.1754944e-38, %v2379
    %v2381 = vsel %vm2378, %v2380, %v2376
    %v2382 = vmul.f32 1.0, %v2381
    %v2383 = vrcp.pop %v1844
    %v2384 = vmul.f32 %v1844, %v2383
    %v2385 = vsub.f32 1.0, %v2384
    %v2386 = vmul.f32 %v2383, %v2385
    %v2387 = vadd.f32 %v2383, %v2386
    %vm2388 = vweird.f32 %v1844
    %vm2389 = vweird.f32 %v2383
    %vm2390 = vmor %vm2388, %vm2389
    %v2391 = vsel %vm2390, %v2383, %v2387
    %v2392 = vand.u32 2147483647, %v1844
    %vm2393 = vcmp.eq.f32.partialorder %v2392, 8.507059e+37
    %v2394 = vand.u32 %v1844, 2147483648
    %v2395 = vor.u32 1.1754944e-38, %v2394
    %v2396 = vsel %vm2393, %v2395, %v2391
    %v2397 = vmul.f32 1.0, %v2396
    %v2398 = vrcp.pop %v1845
    %v2399 = vmul.f32 %v1845, %v2398
    %v2400 = vsub.f32 1.0, %v2399
    %v2401 = vmul.f32 %v2398, %v2400
    %v2402 = vadd.f32 %v2398, %v2401
    %vm2403 = vweird.f32 %v1845
    %vm2404 = vweird.f32 %v2398
    %vm2405 = vmor %vm2403, %vm2404
    %v2406 = vsel %vm2405, %v2398, %v2402
    %v2407 = vand.u32 2147483647, %v1845
    %vm2408 = vcmp.eq.f32.partialorder %v2407, 8.507059e+37
    %v2409 = vand.u32 %v1845, 2147483648
    %v2410 = vor.u32 1.1754944e-38, %v2409
    %v2411 = vsel %vm2408, %v2410, %v2406
    %v2412 = vmul.f32 1.0, %v2411
    %v2413 = vrcp.pop %v1846
    %v2414 = vmul.f32 %v1846, %v2413
    %v2415 = vsub.f32 1.0, %v2414
    %v2416 = vmul.f32 %v2413, %v2415
    %v2417 = vadd.f32 %v2413, %v2416
    %vm2418 = vweird.f32 %v1846
    %vm2419 = vweird.f32 %v2413
    %vm2420 = vmor %vm2418, %vm2419
    %v2421 = vsel %vm2420, %v2413, %v2417
    %v2422 = vand.u32 2147483647, %v1846
    %vm2423 = vcmp.eq.f32.partialorder %v2422, 8.507059e+37
    %v2424 = vand.u32 %v1846, 2147483648
    %v2425 = vor.u32 1.1754944e-38, %v2424
    %v2426 = vsel %vm2423, %v2425, %v2421
    %v2427 = vmul.f32 1.0, %v2426
    %v2428 = vrcp.pop %v1847
    %v2429 = vmul.f32 %v1847, %v2428
    %v2430 = vsub.f32 1.0, %v2429
    %v2431 = vmul.f32 %v2428, %v2430
    %v2432 = vadd.f32 %v2428, %v2431
    %vm2433 = vweird.f32 %v1847
    %vm2434 = vweird.f32 %v2428
    %vm2435 = vmor %vm2433, %vm2434
    %v2436 = vsel %vm2435, %v2428, %v2432
    %v2437 = vand.u32 2147483647, %v1847
    %vm2438 = vcmp.eq.f32.partialorder %v2437, 8.507059e+37
    %v2439 = vand.u32 %v1847, 2147483648
    %v2440 = vor.u32 1.1754944e-38, %v2439
    %v2441 = vsel %vm2438, %v2440, %v2436
    %v2442 = vmul.f32 1.0, %v2441
    %v2443 = vrcp.pop %v1848
    %v2444 = vmul.f32 %v1848, %v2443
    %v2445 = vsub.f32 1.0, %v2444
    %v2446 = vmul.f32 %v2443, %v2445
    %v2447 = vadd.f32 %v2443, %v2446
    %vm2448 = vweird.f32 %v1848
    %vm2449 = vweird.f32 %v2443
    %vm2450 = vmor %vm2448, %vm2449
    %v2451 = vsel %vm2450, %v2443, %v2447
    %v2452 = vand.u32 2147483647, %v1848
    %vm2453 = vcmp.eq.f32.partialorder %v2452, 8.507059e+37
    %v2454 = vand.u32 %v1848, 2147483648
    %v2455 = vor.u32 1.1754944e-38, %v2454
    %v2456 = vsel %vm2453, %v2455, %v2451
    %v2457 = vmul.f32 1.0, %v2456
    %v2458 = vrcp.pop %v1849
    %v2459 = vmul.f32 %v1849, %v2458
    %v2460 = vsub.f32 1.0, %v2459
    %v2461 = vmul.f32 %v2458, %v2460
    %v2462 = vadd.f32 %v2458, %v2461
    %vm2463 = vweird.f32 %v1849
    %vm2464 = vweird.f32 %v2458
    %vm2465 = vmor %vm2463, %vm2464
    %v2466 = vsel %vm2465, %v2458, %v2462
    %v2467 = vand.u32 2147483647, %v1849
    %vm2468 = vcmp.eq.f32.partialorder %v2467, 8.507059e+37
    %v2469 = vand.u32 %v1849, 2147483648
    %v2470 = vor.u32 1.1754944e-38, %v2469
    %v2471 = vsel %vm2468, %v2470, %v2466
    %v2472 = vmul.f32 1.0, %v2471
    %v2473 = vrcp.pop %v1850
    %v2474 = vmul.f32 %v1850, %v2473
    %v2475 = vsub.f32 1.0, %v2474
    %v2476 = vmul.f32 %v2473, %v2475
    %v2477 = vadd.f32 %v2473, %v2476
    %vm2478 = vweird.f32 %v1850
    %vm2479 = vweird.f32 %v2473
    %vm2480 = vmor %vm2478, %vm2479
    %v2481 = vsel %vm2480, %v2473, %v2477
    %v2482 = vand.u32 2147483647, %v1850
    %vm2483 = vcmp.eq.f32.partialorder %v2482, 8.507059e+37
    %v2484 = vand.u32 %v1850, 2147483648
    %v2485 = vor.u32 1.1754944e-38, %v2484
    %v2486 = vsel %vm2483, %v2485, %v2481
    %v2487 = vmul.f32 1.0, %v2486
    %v2488 = vrcp.pop %v1851
    %v2489 = vmul.f32 %v1851, %v2488
    %v2490 = vsub.f32 1.0, %v2489
    %v2491 = vmul.f32 %v2488, %v2490
    %v2492 = vadd.f32 %v2488, %v2491
    %vm2493 = vweird.f32 %v1851
    %vm2494 = vweird.f32 %v2488
    %vm2495 = vmor %vm2493, %vm2494
    %v2496 = vsel %vm2495, %v2488, %v2492
    %v2497 = vand.u32 2147483647, %v1851
    %vm2498 = vcmp.eq.f32.partialorder %v2497, 8.507059e+37
    %v2499 = vand.u32 %v1851, 2147483648
    %v2500 = vor.u32 1.1754944e-38, %v2499
    %v2501 = vsel %vm2498, %v2500, %v2496
    %v2502 = vmul.f32 1.0, %v2501
    %v2503 = vrcp.pop %v1852
    %v2504 = vmul.f32 %v1852, %v2503
    %v2505 = vsub.f32 1.0, %v2504
    %v2506 = vmul.f32 %v2503, %v2505
    %v2507 = vadd.f32 %v2503, %v2506
    %vm2508 = vweird.f32 %v1852
    %vm2509 = vweird.f32 %v2503
    %vm2510 = vmor %vm2508, %vm2509
    %v2511 = vsel %vm2510, %v2503, %v2507
    %v2512 = vand.u32 2147483647, %v1852
    %vm2513 = vcmp.eq.f32.partialorder %v2512, 8.507059e+37
    %v2514 = vand.u32 %v1852, 2147483648
    %v2515 = vor.u32 1.1754944e-38, %v2514
    %v2516 = vsel %vm2513, %v2515, %v2511
    %v2517 = vmul.f32 1.0, %v2516
    %v2518 = vrcp.pop %v1853
    %v2519 = vmul.f32 %v1853, %v2518
    %v2520 = vsub.f32 1.0, %v2519
    %v2521 = vmul.f32 %v2518, %v2520
    %v2522 = vadd.f32 %v2518, %v2521
    %vm2523 = vweird.f32 %v1853
    %vm2524 = vweird.f32 %v2518
    %vm2525 = vmor %vm2523, %vm2524
    %v2526 = vsel %vm2525, %v2518, %v2522
    %v2527 = vand.u32 2147483647, %v1853
    %vm2528 = vcmp.eq.f32.partialorder %v2527, 8.507059e+37
    %v2529 = vand.u32 %v1853, 2147483648
    %v2530 = vor.u32 1.1754944e-38, %v2529
    %v2531 = vsel %vm2528, %v2530, %v2526
    %v2532 = vmul.f32 1.0, %v2531
    %v2533 = vrcp.pop %v1854
    %v2534 = vmul.f32 %v1854, %v2533
    %v2535 = vsub.f32 1.0, %v2534
    %v2536 = vmul.f32 %v2533, %v2535
    %v2537 = vadd.f32 %v2533, %v2536
    %vm2538 = vweird.f32 %v1854
    %vm2539 = vweird.f32 %v2533
    %vm2540 = vmor %vm2538, %vm2539
    %v2541 = vsel %vm2540, %v2533, %v2537
    %v2542 = vand.u32 2147483647, %v1854
    %vm2543 = vcmp.eq.f32.partialorder %v2542, 8.507059e+37
    %v2544 = vand.u32 %v1854, 2147483648
    %v2545 = vor.u32 1.1754944e-38, %v2544
    %v2546 = vsel %vm2543, %v2545, %v2541
    %v2547 = vmul.f32 1.0, %v2546
    %v2548 = vrcp.pop %v1855
    %v2549 = vmul.f32 %v1855, %v2548
    %v2550 = vsub.f32 1.0, %v2549
    %v2551 = vmul.f32 %v2548, %v2550
    %v2552 = vadd.f32 %v2548, %v2551
    %vm2553 = vweird.f32 %v1855
    %vm2554 = vweird.f32 %v2548
    %vm2555 = vmor %vm2553, %vm2554
    %v2556 = vsel %vm2555, %v2548, %v2552
    %v2557 = vand.u32 2147483647, %v1855
    %vm2558 = vcmp.eq.f32.partialorder %v2557, 8.507059e+37
    %v2559 = vand.u32 %v1855, 2147483648
    %v2560 = vor.u32 1.1754944e-38, %v2559
    %v2561 = vsel %vm2558, %v2560, %v2556
    %v2562 = vmul.f32 1.0, %v2561
    %v2563 = vrcp.pop %v1856
    %v2564 = vmul.f32 %v1856, %v2563
    %v2565 = vsub.f32 1.0, %v2564
    %v2566 = vmul.f32 %v2563, %v2565
    %v2567 = vadd.f32 %v2563, %v2566
    %vm2568 = vweird.f32 %v1856
    %vm2569 = vweird.f32 %v2563
    %vm2570 = vmor %vm2568, %vm2569
    %v2571 = vsel %vm2570, %v2563, %v2567
    %v2572 = vand.u32 2147483647, %v1856
    %vm2573 = vcmp.eq.f32.partialorder %v2572, 8.507059e+37
    %v2574 = vand.u32 %v1856, 2147483648
    %v2575 = vor.u32 1.1754944e-38, %v2574
    %v2576 = vsel %vm2573, %v2575, %v2571
    %v2577 = vmul.f32 1.0, %v2576
    %v2578 = vrcp.pop %v1857
    %v2579 = vmul.f32 %v1857, %v2578
    %v2580 = vsub.f32 1.0, %v2579
    %v2581 = vmul.f32 %v2578, %v2580
    %v2582 = vadd.f32 %v2578, %v2581
    %vm2583 = vweird.f32 %v1857
    %vm2584 = vweird.f32 %v2578
    %vm2585 = vmor %vm2583, %vm2584
    %v2586 = vsel %vm2585, %v2578, %v2582
    %v2587 = vand.u32 2147483647, %v1857
    %vm2588 = vcmp.eq.f32.partialorder %v2587, 8.507059e+37
    %v2589 = vand.u32 %v1857, 2147483648
    %v2590 = vor.u32 1.1754944e-38, %v2589
    %v2591 = vsel %vm2588, %v2590, %v2586
    %v2592 = vmul.f32 1.0, %v2591
    %v2593 = vmul.f32 %v1872, 1.0614054
    %v2594 = vmul.f32 %v1887, 1.0614054
    %v2595 = vmul.f32 %v1902, 1.0614054
    %v2596 = vmul.f32 %v1917, 1.0614054
    %v2597 = vmul.f32 %v1932, 1.0614054
    %v2598 = vmul.f32 %v1947, 1.0614054
    %v2599 = vmul.f32 %v1962, 1.0614054
    %v2600 = vmul.f32 %v1977, 1.0614054
    %v2601 = vmul.f32 %v1992, 1.0614054
    %v2602 = vmul.f32 %v2007, 1.0614054
    %v2603 = vmul.f32 %v2022, 1.0614054
    %v2604 = vmul.f32 %v2037, 1.0614054
    %v2605 = vmul.f32 %v2052, 1.0614054
    %v2606 = vmul.f32 %v2067, 1.0614054
    %v2607 = vmul.f32 %v2082, 1.0614054
    %v2608 = vmul.f32 %v2097, 1.0614054
    %v2609 = vmul.f32 %v2112, 1.0614054
    %v2610 = vmul.f32 %v2127, 1.0614054
    %v2611 = vmul.f32 %v2142, 1.0614054
    %v2612 = vmul.f32 %v2157, 1.0614054
    %v2613 = vmul.f32 %v2172, 1.0614054
    %v2614 = vmul.f32 %v2187, 1.0614054
    %v2615 = vmul.f32 %v2202, 1.0614054
    %v2616 = vmul.f32 %v2217, 1.0614054
    %v2617 = vmul.f32 %v2232, 1.0614054
    %v2618 = vmul.f32 %v2247, 1.0614054
    %v2619 = vmul.f32 %v2262, 1.0614054
    %v2620 = vmul.f32 %v2277, 1.0614054
    %v2621 = vmul.f32 %v2292, 1.0614054
    %v2622 = vmul.f32 %v2307, 1.0614054
    %v2623 = vmul.f32 %v2322, 1.0614054
    %v2624 = vmul.f32 %v2337, 1.0614054
    %v2625 = vmul.f32 %v2352, 1.0614054
    %v2626 = vmul.f32 %v2367, 1.0614054
    %v2627 = vmul.f32 %v2382, 1.0614054
    %v2628 = vmul.f32 %v2397, 1.0614054
    %v2629 = vmul.f32 %v2412, 1.0614054
    %v2630 = vmul.f32 %v2427, 1.0614054
    %v2631 = vmul.f32 %v2442, 1.0614054
    %v2632 = vmul.f32 %v2457, 1.0614054
    %v2633 = vmul.f32 %v2472, 1.0614054
    %v2634 = vmul.f32 %v2487, 1.0614054
    %v2635 = vmul.f32 %v2502, 1.0614054
    %v2636 = vmul.f32 %v2517, 1.0614054
    %v2637 = vmul.f32 %v2532, 1.0614054
    %v2638 = vmul.f32 %v2547, 1.0614054
    %v2639 = vmul.f32 %v2562, 1.0614054
    %v2640 = vmul.f32 %v2577, 1.0614054
    %v2641 = vmul.f32 %v2592, 1.0614054
    %v2642 = vadd.f32 %v2593, -1.4531521
    %v2643 = vadd.f32 %v2594, -1.4531521
    %v2644 = vadd.f32 %v2595, -1.4531521
    %v2645 = vadd.f32 %v2596, -1.4531521
    %v2646 = vadd.f32 %v2597, -1.4531521
    %v2647 = vadd.f32 %v2598, -1.4531521
    %v2648 = vadd.f32 %v2599, -1.4531521
    %v2649 = vadd.f32 %v2600, -1.4531521
    %v2650 = vadd.f32 %v2601, -1.4531521
    %v2651 = vadd.f32 %v2602, -1.4531521
    %v2652 = vadd.f32 %v2603, -1.4531521
    %v2653 = vadd.f32 %v2604, -1.4531521
    %v2654 = vadd.f32 %v2605, -1.4531521
    %v2655 = vadd.f32 %v2606, -1.4531521
    %v2656 = vadd.f32 %v2607, -1.4531521
    %v2657 = vadd.f32 %v2608, -1.4531521
    %v2658 = vadd.f32 %v2609, -1.4531521
    %v2659 = vadd.f32 %v2610, -1.4531521
    %v2660 = vadd.f32 %v2611, -1.4531521
    %v2661 = vadd.f32 %v2612, -1.4531521
    %v2662 = vadd.f32 %v2613, -1.4531521
    %v2663 = vadd.f32 %v2614, -1.4531521
    %v2664 = vadd.f32 %v2615, -1.4531521
    %v2665 = vadd.f32 %v2616, -1.4531521
    %v2666 = vadd.f32 %v2617, -1.4531521
    %v2667 = vadd.f32 %v2618, -1.4531521
    %v2668 = vadd.f32 %v2619, -1.4531521
    %v2669 = vadd.f32 %v2620, -1.4531521
    %v2670 = vadd.f32 %v2621, -1.4531521
    %v2671 = vadd.f32 %v2622, -1.4531521
    %v2672 = vadd.f32 %v2623, -1.4531521
    %v2673 = vadd.f32 %v2624, -1.4531521
    %v2674 = vadd.f32 %v2625, -1.4531521
    %v2675 = vadd.f32 %v2626, -1.4531521
    %v2676 = vadd.f32 %v2627, -1.4531521
    %v2677 = vadd.f32 %v2628, -1.4531521
    %v2678 = vadd.f32 %v2629, -1.4531521
    %v2679 = vadd.f32 %v2630, -1.4531521
    %v2680 = vadd.f32 %v2631, -1.4531521
    %v2681 = vadd.f32 %v2632, -1.4531521
    %v2682 = vadd.f32 %v2633, -1.4531521
    %v2683 = vadd.f32 %v2634, -1.4531521
    %v2684 = vadd.f32 %v2635, -1.4531521
    %v2685 = vadd.f32 %v2636, -1.4531521
    %v2686 = vadd.f32 %v2637, -1.4531521
    %v2687 = vadd.f32 %v2638, -1.4531521
    %v2688 = vadd.f32 %v2639, -1.4531521
    %v2689 = vadd.f32 %v2640, -1.4531521
    %v2690 = vadd.f32 %v2641, -1.4531521
    %v2691 = vmul.f32 %v2642, %v1872
    %v2692 = vmul.f32 %v2643, %v1887
    %v2693 = vmul.f32 %v2644, %v1902
    %v2694 = vmul.f32 %v2645, %v1917
    %v2695 = vmul.f32 %v2646, %v1932
    %v2696 = vmul.f32 %v2647, %v1947
    %v2697 = vmul.f32 %v2648, %v1962
    %v2698 = vmul.f32 %v2649, %v1977
    %v2699 = vmul.f32 %v2650, %v1992
    %v2700 = vmul.f32 %v2651, %v2007
    %v2701 = vmul.f32 %v2652, %v2022
    %v2702 = vmul.f32 %v2653, %v2037
    %v2703 = vmul.f32 %v2654, %v2052
    %v2704 = vmul.f32 %v2655, %v2067
    %v2705 = vmul.f32 %v2656, %v2082
    %v2706 = vmul.f32 %v2657, %v2097
    %v2707 = vmul.f32 %v2658, %v2112
    %v2708 = vmul.f32 %v2659, %v2127
    %v2709 = vmul.f32 %v2660, %v2142
    %v2710 = vmul.f32 %v2661, %v2157
    %v2711 = vmul.f32 %v2662, %v2172
    %v2712 = vmul.f32 %v2663, %v2187
    %v2713 = vmul.f32 %v2664, %v2202
    %v2714 = vmul.f32 %v2665, %v2217
    %v2715 = vmul.f32 %v2666, %v2232
    %v2716 = vmul.f32 %v2667, %v2247
    %v2717 = vmul.f32 %v2668, %v2262
    %v2718 = vmul.f32 %v2669, %v2277
    %v2719 = vmul.f32 %v2670, %v2292
    %v2720 = vmul.f32 %v2671, %v2307
    %v2721 = vmul.f32 %v2672, %v2322
    %v2722 = vmul.f32 %v2673, %v2337
    %v2723 = vmul.f32 %v2674, %v2352
    %v2724 = vmul.f32 %v2675, %v2367
    %v2725 = vmul.f32 %v2676, %v2382
    %v2726 = vmul.f32 %v2677, %v2397
    %v2727 = vmul.f32 %v2678, %v2412
    %v2728 = vmul.f32 %v2679, %v2427
    %v2729 = vmul.f32 %v2680, %v2442
    %v2730 = vmul.f32 %v2681, %v2457
    %v2731 = vmul.f32 %v2682, %v2472
    %v2732 = vmul.f32 %v2683, %v2487
    %v2733 = vmul.f32 %v2684, %v2502
    %v2734 = vmul.f32 %v2685, %v2517
    %v2735 = vmul.f32 %v2686, %v2532
    %v2736 = vmul.f32 %v2687, %v2547
    %v2737 = vmul.f32 %v2688, %v2562
    %v2738 = vmul.f32 %v2689, %v2577
    %v2739 = vmul.f32 %v2690, %v2592
    %v2740 = vadd.f32 %v2691, 1.4214138
    %v2741 = vadd.f32 %v2692, 1.4214138
    %v2742 = vadd.f32 %v2693, 1.4214138
    %v2743 = vadd.f32 %v2694, 1.4214138
    %v2744 = vadd.f32 %v2695, 1.4214138
    %v2745 = vadd.f32 %v2696, 1.4214138
    %v2746 = vadd.f32 %v2697, 1.4214138
    %v2747 = vadd.f32 %v2698, 1.4214138
    %v2748 = vadd.f32 %v2699, 1.4214138
    %v2749 = vadd.f32 %v2700, 1.4214138
    %v2750 = vadd.f32 %v2701, 1.4214138
    %v2751 = vadd.f32 %v2702, 1.4214138
    %v2752 = vadd.f32 %v2703, 1.4214138
    %v2753 = vadd.f32 %v2704, 1.4214138
    %v2754 = vadd.f32 %v2705, 1.4214138
    %v2755 = vadd.f32 %v2706, 1.4214138
    %v2756 = vadd.f32 %v2707, 1.4214138
    %v2757 = vadd.f32 %v2708, 1.4214138
    %v2758 = vadd.f32 %v2709, 1.4214138
    %v2759 = vadd.f32 %v2710, 1.4214138
    %v2760 = vadd.f32 %v2711, 1.4214138
    %v2761 = vadd.f32 %v2712, 1.4214138
    %v2762 = vadd.f32 %v2713, 1.4214138
    %v2763 = vadd.f32 %v2714, 1.4214138
    %v2764 = vadd.f32 %v2715, 1.4214138
    %v2765 = vadd.f32 %v2716, 1.4214138
    %v2766 = vadd.f32 %v2717, 1.4214138
    %v2767 = vadd.f32 %v2718, 1.4214138
    %v2768 = vadd.f32 %v2719, 1.4214138
    %v2769 = vadd.f32 %v2720, 1.4214138
    %v2770 = vadd.f32 %v2721, 1.4214138
    %v2771 = vadd.f32 %v2722, 1.4214138
    %v2772 = vadd.f32 %v2723, 1.4214138
    %v2773 = vadd.f32 %v2724, 1.4214138
    %v2774 = vadd.f32 %v2725, 1.4214138
    %v2775 = vadd.f32 %v2726, 1.4214138
    %v2776 = vadd.f32 %v2727, 1.4214138
    %v2777 = vadd.f32 %v2728, 1.4214138
    %v2778 = vadd.f32 %v2729, 1.4214138
    %v2779 = vadd.f32 %v2730, 1.4214138
    %v2780 = vadd.f32 %v2731, 1.4214138
    %v2781 = vadd.f32 %v2732, 1.4214138
    %v2782 = vadd.f32 %v2733, 1.4214138
    %v2783 = vadd.f32 %v2734, 1.4214138
    %v2784 = vadd.f32 %v2735, 1.4214138
    %v2785 = vadd.f32 %v2736, 1.4214138
    %v2786 = vadd.f32 %v2737, 1.4214138
    %v2787 = vadd.f32 %v2738, 1.4214138
    %v2788 = vadd.f32 %v2739, 1.4214138
    %v2789 = vmul.f32 %v2740, %v1872
    %v2790 = vmul.f32 %v2741, %v1887
    %v2791 = vmul.f32 %v2742, %v1902
    %v2792 = vmul.f32 %v2743, %v1917
    %v2793 = vmul.f32 %v2744, %v1932
    %v2794 = vmul.f32 %v2745, %v1947
    %v2795 = vmul.f32 %v2746, %v1962
    %v2796 = vmul.f32 %v2747, %v1977
    %v2797 = vmul.f32 %v2748, %v1992
    %v2798 = vmul.f32 %v2749, %v2007
    %v2799 = vmul.f32 %v2750, %v2022
    %v2800 = vmul.f32 %v2751, %v2037
    %v2801 = vmul.f32 %v2752, %v2052
    %v2802 = vmul.f32 %v2753, %v2067
    %v2803 = vmul.f32 %v2754, %v2082
    %v2804 = vmul.f32 %v2755, %v2097
    %v2805 = vmul.f32 %v2756, %v2112
    %v2806 = vmul.f32 %v2757, %v2127
    %v2807 = vmul.f32 %v2758, %v2142
    %v2808 = vmul.f32 %v2759, %v2157
    %v2809 = vmul.f32 %v2760, %v2172
    %v2810 = vmul.f32 %v2761, %v2187
    %v2811 = vmul.f32 %v2762, %v2202
    %v2812 = vmul.f32 %v2763, %v2217
    %v2813 = vmul.f32 %v2764, %v2232
    %v2814 = vmul.f32 %v2765, %v2247
    %v2815 = vmul.f32 %v2766, %v2262
    %v2816 = vmul.f32 %v2767, %v2277
    %v2817 = vmul.f32 %v2768, %v2292
    %v2818 = vmul.f32 %v2769, %v2307
    %v2819 = vmul.f32 %v2770, %v2322
    %v2820 = vmul.f32 %v2771, %v2337
    %v2821 = vmul.f32 %v2772, %v2352
    %v2822 = vmul.f32 %v2773, %v2367
    %v2823 = vmul.f32 %v2774, %v2382
    %v2824 = vmul.f32 %v2775, %v2397
    %v2825 = vmul.f32 %v2776, %v2412
    %v2826 = vmul.f32 %v2777, %v2427
    %v2827 = vmul.f32 %v2778, %v2442
    %v2828 = vmul.f32 %v2779, %v2457
    %v2829 = vmul.f32 %v2780, %v2472
    %v2830 = vmul.f32 %v2781, %v2487
    %v2831 = vmul.f32 %v2782, %v2502
    %v2832 = vmul.f32 %v2783, %v2517
    %v2833 = vmul.f32 %v2784, %v2532
    %v2834 = vmul.f32 %v2785, %v2547
    %v2835 = vmul.f32 %v2786, %v2562
    %v2836 = vmul.f32 %v2787, %v2577
    %v2837 = vmul.f32 %v2788, %v2592
    %v2838 = vadd.f32 %v2789, -0.28449672
    %v2839 = vadd.f32 %v2790, -0.28449672
    %v2840 = vadd.f32 %v2791, -0.28449672
    %v2841 = vadd.f32 %v2792, -0.28449672
    %v2842 = vadd.f32 %v2793, -0.28449672
    %v2843 = vadd.f32 %v2794, -0.28449672
    %v2844 = vadd.f32 %v2795, -0.28449672
    %v2845 = vadd.f32 %v2796, -0.28449672
    %v2846 = vadd.f32 %v2797, -0.28449672
    %v2847 = vadd.f32 %v2798, -0.28449672
    %v2848 = vadd.f32 %v2799, -0.28449672
    %v2849 = vadd.f32 %v2800, -0.28449672
    %v2850 = vadd.f32 %v2801, -0.28449672
    %v2851 = vadd.f32 %v2802, -0.28449672
    %v2852 = vadd.f32 %v2803, -0.28449672
    %v2853 = vadd.f32 %v2804, -0.28449672
    %v2854 = vadd.f32 %v2805, -0.28449672
    %v2855 = vadd.f32 %v2806, -0.28449672
    %v2856 = vadd.f32 %v2807, -0.28449672
    %v2857 = vadd.f32 %v2808, -0.28449672
    %v2858 = vadd.f32 %v2809, -0.28449672
    %v2859 = vadd.f32 %v2810, -0.28449672
    %v2860 = vadd.f32 %v2811, -0.28449672
    %v2861 = vadd.f32 %v2812, -0.28449672
    %v2862 = vadd.f32 %v2813, -0.28449672
    %v2863 = vadd.f32 %v2814, -0.28449672
    %v2864 = vadd.f32 %v2815, -0.28449672
    %v2865 = vadd.f32 %v2816, -0.28449672
    %v2866 = vadd.f32 %v2817, -0.28449672
    %v2867 = vadd.f32 %v2818, -0.28449672
    %v2868 = vadd.f32 %v2819, -0.28449672
    %v2869 = vadd.f32 %v2820, -0.28449672
    %v2870 = vadd.f32 %v2821, -0.28449672
    %v2871 = vadd.f32 %v2822, -0.28449672
    %v2872 = vadd.f32 %v2823, -0.28449672
    %v2873 = vadd.f32 %v2824, -0.28449672
    %v2874 = vadd.f32 %v2825, -0.28449672
    %v2875 = vadd.f32 %v2826, -0.28449672
    %v2876 = vadd.f32 %v2827, -0.28449672
    %v2877 = vadd.f32 %v2828, -0.28449672
    %v2878 = vadd.f32 %v2829, -0.28449672
    %v2879 = vadd.f32 %v2830, -0.28449672
    %v2880 = vadd.f32 %v2831, -0.28449672
    %v2881 = vadd.f32 %v2832, -0.28449672
    %v2882 = vadd.f32 %v2833, -0.28449672
    %v2883 = vadd.f32 %v2834, -0.28449672
    %v2884 = vadd.f32 %v2835, -0.28449672
    %v2885 = vadd.f32 %v2836, -0.28449672
    %v2886 = vadd.f32 %v2837, -0.28449672
    %v2887 = vmul.f32 %v2838, %v1872
    %v2888 = vmul.f32 %v2839, %v1887
    %v2889 = vmul.f32 %v2840, %v1902
    %v2890 = vmul.f32 %v2841, %v1917
    %v2891 = vmul.f32 %v2842, %v1932
    %v2892 = vmul.f32 %v2843, %v1947
    %v2893 = vmul.f32 %v2844, %v1962
    %v2894 = vmul.f32 %v2845, %v1977
    %v2895 = vmul.f32 %v2846, %v1992
    %v2896 = vmul.f32 %v2847, %v2007
    %v2897 = vmul.f32 %v2848, %v2022
    %v2898 = vmul.f32 %v2849, %v2037
    %v2899 = vmul.f32 %v2850, %v2052
    %v2900 = vmul.f32 %v2851, %v2067
    %v2901 = vmul.f32 %v2852, %v2082
    %v2902 = vmul.f32 %v2853, %v2097
    %v2903 = vmul.f32 %v2854, %v2112
    %v2904 = vmul.f32 %v2855, %v2127
    %v2905 = vmul.f32 %v2856, %v2142
    %v2906 = vmul.f32 %v2857, %v2157
    %v2907 = vmul.f32 %v2858, %v2172
    %v2908 = vmul.f32 %v2859, %v2187
    %v2909 = vmul.f32 %v2860, %v2202
    %v2910 = vmul.f32 %v2861, %v2217
    %v2911 = vmul.f32 %v2862, %v2232
    %v2912 = vmul.f32 %v2863, %v2247
    %v2913 = vmul.f32 %v2864, %v2262
    %v2914 = vmul.f32 %v2865, %v2277
    %v2915 = vmul.f32 %v2866, %v2292
    %v2916 = vmul.f32 %v2867, %v2307
    %v2917 = vmul.f32 %v2868, %v2322
    %v2918 = vmul.f32 %v2869, %v2337
    %v2919 = vmul.f32 %v2870, %v2352
    %v2920 = vmul.f32 %v2871, %v2367
    %v2921 = vmul.f32 %v2872, %v2382
    %v2922 = vmul.f32 %v2873, %v2397
    %v2923 = vmul.f32 %v2874, %v2412
    %v2924 = vmul.f32 %v2875, %v2427
    %v2925 = vmul.f32 %v2876, %v2442
    %v2926 = vmul.f32 %v2877, %v2457
    %v2927 = vmul.f32 %v2878, %v2472
    %v2928 = vmul.f32 %v2879, %v2487
    %v2929 = vmul.f32 %v2880, %v2502
    %v2930 = vmul.f32 %v2881, %v2517
    %v2931 = vmul.f32 %v2882, %v2532
    %v2932 = vmul.f32 %v2883, %v2547
    %v2933 = vmul.f32 %v2884, %v2562
    %v2934 = vmul.f32 %v2885, %v2577
    %v2935 = vmul.f32 %v2886, %v2592
    %v2936 = vadd.f32 %v2887, 0.2548296
    %v2937 = vadd.f32 %v2888, 0.2548296
    %v2938 = vadd.f32 %v2889, 0.2548296
    %v2939 = vadd.f32 %v2890, 0.2548296
    %v2940 = vadd.f32 %v2891, 0.2548296
    %v2941 = vadd.f32 %v2892, 0.2548296
    %v2942 = vadd.f32 %v2893, 0.2548296
    %v2943 = vadd.f32 %v2894, 0.2548296
    %v2944 = vadd.f32 %v2895, 0.2548296
    %v2945 = vadd.f32 %v2896, 0.2548296
    %v2946 = vadd.f32 %v2897, 0.2548296
    %v2947 = vadd.f32 %v2898, 0.2548296
    %v2948 = vadd.f32 %v2899, 0.2548296
    %v2949 = vadd.f32 %v2900, 0.2548296
    %v2950 = vadd.f32 %v2901, 0.2548296
    %v2951 = vadd.f32 %v2902, 0.2548296
    %v2952 = vadd.f32 %v2903, 0.2548296
    %v2953 = vadd.f32 %v2904, 0.2548296
    %v2954 = vadd.f32 %v2905, 0.2548296
    %v2955 = vadd.f32 %v2906, 0.2548296
    %v2956 = vadd.f32 %v2907, 0.2548296
    %v2957 = vadd.f32 %v2908, 0.2548296
    %v2958 = vadd.f32 %v2909, 0.2548296
    %v2959 = vadd.f32 %v2910, 0.2548296
    %v2960 = vadd.f32 %v2911, 0.2548296
    %v2961 = vadd.f32 %v2912, 0.2548296
    %v2962 = vadd.f32 %v2913, 0.2548296
    %v2963 = vadd.f32 %v2914, 0.2548296
    %v2964 = vadd.f32 %v2915, 0.2548296
    %v2965 = vadd.f32 %v2916, 0.2548296
    %v2966 = vadd.f32 %v2917, 0.2548296
    %v2967 = vadd.f32 %v2918, 0.2548296
    %v2968 = vadd.f32 %v2919, 0.2548296
    %v2969 = vadd.f32 %v2920, 0.2548296
    %v2970 = vadd.f32 %v2921, 0.2548296
    %v2971 = vadd.f32 %v2922, 0.2548296
    %v2972 = vadd.f32 %v2923, 0.2548296
    %v2973 = vadd.f32 %v2924, 0.2548296
    %v2974 = vadd.f32 %v2925, 0.2548296
    %v2975 = vadd.f32 %v2926, 0.2548296
    %v2976 = vadd.f32 %v2927, 0.2548296
    %v2977 = vadd.f32 %v2928, 0.2548296
    %v2978 = vadd.f32 %v2929, 0.2548296
    %v2979 = vadd.f32 %v2930, 0.2548296
    %v2980 = vadd.f32 %v2931, 0.2548296
    %v2981 = vadd.f32 %v2932, 0.2548296
    %v2982 = vadd.f32 %v2933, 0.2548296
    %v2983 = vadd.f32 %v2934, 0.2548296
    %v2984 = vadd.f32 %v2935, 0.2548296
    %v2985 = vmul.f32 %v2936, %v1872
    %v2986 = vmul.f32 %v2937, %v1887
    %v2987 = vmul.f32 %v2938, %v1902
    %v2988 = vmul.f32 %v2939, %v1917
    %v2989 = vmul.f32 %v2940, %v1932
    %v2990 = vmul.f32 %v2941, %v1947
    %v2991 = vmul.f32 %v2942, %v1962
    %v2992 = vmul.f32 %v2943, %v1977
    %v2993 = vmul.f32 %v2944, %v1992
    %v2994 = vmul.f32 %v2945, %v2007
    %v2995 = vmul.f32 %v2946, %v2022
    %v2996 = vmul.f32 %v2947, %v2037
    %v2997 = vmul.f32 %v2948, %v2052
    %v2998 = vmul.f32 %v2949, %v2067
    %v2999 = vmul.f32 %v2950, %v2082
    %v3000 = vmul.f32 %v2951, %v2097
    %v3001 = vmul.f32 %v2952, %v2112
    %v3002 = vmul.f32 %v2953, %v2127
    %v3003 = vmul.f32 %v2954, %v2142
    %v3004 = vmul.f32 %v2955, %v2157
    %v3005 = vmul.f32 %v2956, %v2172
    %v3006 = vmul.f32 %v2957, %v2187
    %v3007 = vmul.f32 %v2958, %v2202
    %v3008 = vmul.f32 %v2959, %v2217
    %v3009 = vmul.f32 %v2960, %v2232
    %v3010 = vmul.f32 %v2961, %v2247
    %v3011 = vmul.f32 %v2962, %v2262
    %v3012 = vmul.f32 %v2963, %v2277
    %v3013 = vmul.f32 %v2964, %v2292
    %v3014 = vmul.f32 %v2965, %v2307
    %v3015 = vmul.f32 %v2966, %v2322
    %v3016 = vmul.f32 %v2967, %v2337
    %v3017 = vmul.f32 %v2968, %v2352
    %v3018 = vmul.f32 %v2969, %v2367
    %v3019 = vmul.f32 %v2970, %v2382
    %v3020 = vmul.f32 %v2971, %v2397
    %v3021 = vmul.f32 %v2972, %v2412
    %v3022 = vmul.f32 %v2973, %v2427
    %v3023 = vmul.f32 %v2974, %v2442
    %v3024 = vmul.f32 %v2975, %v2457
    %v3025 = vmul.f32 %v2976, %v2472
    %v3026 = vmul.f32 %v2977, %v2487
    %v3027 = vmul.f32 %v2978, %v2502
    %v3028 = vmul.f32 %v2979, %v2517
    %v3029 = vmul.f32 %v2980, %v2532
    %v3030 = vmul.f32 %v2981, %v2547
    %v3031 = vmul.f32 %v2982, %v2562
    %v3032 = vmul.f32 %v2983, %v2577
    %v3033 = vmul.f32 %v2984, %v2592
    %v3034 = vsub.f32 0.0, %v1711
    %v3035 = vsub.f32 0.0, %v1712
    %v3036 = vsub.f32 0.0, %v1713
    %v3037 = vsub.f32 0.0, %v1714
    %v3038 = vsub.f32 0.0, %v1715
    %v3039 = vsub.f32 0.0, %v1716
    %v3040 = vsub.f32 0.0, %v1717
    %v3041 = vsub.f32 0.0, %v1718
    %v3042 = vsub.f32 0.0, %v1719
    %v3043 = vsub.f32 0.0, %v1720
    %v3044 = vsub.f32 0.0, %v1721
    %v3045 = vsub.f32 0.0, %v1722
    %v3046 = vsub.f32 0.0, %v1723
    %v3047 = vsub.f32 0.0, %v1724
    %v3048 = vsub.f32 0.0, %v1725
    %v3049 = vsub.f32 0.0, %v1726
    %v3050 = vsub.f32 0.0, %v1727
    %v3051 = vsub.f32 0.0, %v1728
    %v3052 = vsub.f32 0.0, %v1729
    %v3053 = vsub.f32 0.0, %v1730
    %v3054 = vsub.f32 0.0, %v1731
    %v3055 = vsub.f32 0.0, %v1732
    %v3056 = vsub.f32 0.0, %v1733
    %v3057 = vsub.f32 0.0, %v1734
    %v3058 = vsub.f32 0.0, %v1735
    %v3059 = vsub.f32 0.0, %v1736
    %v3060 = vsub.f32 0.0, %v1737
    %v3061 = vsub.f32 0.0, %v1738
    %v3062 = vsub.f32 0.0, %v1739
    %v3063 = vsub.f32 0.0, %v1740
    %v3064 = vsub.f32 0.0, %v1741
    %v3065 = vsub.f32 0.0, %v1742
    %v3066 = vsub.f32 0.0, %v1743
    %v3067 = vsub.f32 0.0, %v1744
    %v3068 = vsub.f32 0.0, %v1745
    %v3069 = vsub.f32 0.0, %v1746
    %v3070 = vsub.f32 0.0, %v1747
    %v3071 = vsub.f32 0.0, %v1748
    %v3072 = vsub.f32 0.0, %v1749
    %v3073 = vsub.f32 0.0, %v1750
    %v3074 = vsub.f32 0.0, %v1751
    %v3075 = vsub.f32 0.0, %v1752
    %v3076 = vsub.f32 0.0, %v1753
    %v3077 = vsub.f32 0.0, %v1754
    %v3078 = vsub.f32 0.0, %v1755
    %v3079 = vsub.f32 0.0, %v1756
    %v3080 = vsub.f32 0.0, %v1757
    %v3081 = vsub.f32 0.0, %v1758
    %v3082 = vsub.f32 0.0, %v1759
    %v3083 = vmul.f32 %v3034, %v1711
    %v3084 = vmul.f32 %v3035, %v1712
    %v3085 = vmul.f32 %v3036, %v1713
    %v3086 = vmul.f32 %v3037, %v1714
    %v3087 = vmul.f32 %v3038, %v1715
    %v3088 = vmul.f32 %v3039, %v1716
    %v3089 = vmul.f32 %v3040, %v1717
    %v3090 = vmul.f32 %v3041, %v1718
    %v3091 = vmul.f32 %v3042, %v1719
    %v3092 = vmul.f32 %v3043, %v1720
    %v3093 = vmul.f32 %v3044, %v1721
    %v3094 = vmul.f32 %v3045, %v1722
    %v3095 = vmul.f32 %v3046, %v1723
    %v3096 = vmul.f32 %v3047, %v1724
    %v3097 = vmul.f32 %v3048, %v1725
    %v3098 = vmul.f32 %v3049, %v1726
    %v3099 = vmul.f32 %v3050, %v1727
    %v3100 = vmul.f32 %v3051, %v1728
    %v3101 = vmul.f32 %v3052, %v1729
    %v3102 = vmul.f32 %v3053, %v1730
    %v3103 = vmul.f32 %v3054, %v1731
    %v3104 = vmul.f32 %v3055, %v1732
    %v3105 = vmul.f32 %v3056, %v1733
    %v3106 = vmul.f32 %v3057, %v1734
    %v3107 = vmul.f32 %v3058, %v1735
    %v3108 = vmul.f32 %v3059, %v1736
    %v3109 = vmul.f32 %v3060, %v1737
    %v3110 = vmul.f32 %v3061, %v1738
    %v3111 = vmul.f32 %v3062, %v1739
    %v3112 = vmul.f32 %v3063, %v1740
    %v3113 = vmul.f32 %v3064, %v1741
    %v3114 = vmul.f32 %v3065, %v1742
    %v3115 = vmul.f32 %v3066, %v1743
    %v3116 = vmul.f32 %v3067, %v1744
    %v3117 = vmul.f32 %v3068, %v1745
    %v3118 = vmul.f32 %v3069, %v1746
    %v3119 = vmul.f32 %v3070, %v1747
    %v3120 = vmul.f32 %v3071, %v1748
    %v3121 = vmul.f32 %v3072, %v1749
    %v3122 = vmul.f32 %v3073, %v1750
    %v3123 = vmul.f32 %v3074, %v1751
    %v3124 = vmul.f32 %v3075, %v1752
    %v3125 = vmul.f32 %v3076, %v1753
    %v3126 = vmul.f32 %v3077, %v1754
    %v3127 = vmul.f32 %v3078, %v1755
    %v3128 = vmul.f32 %v3079, %v1756
    %v3129 = vmul.f32 %v3080, %v1757
    %v3130 = vmul.f32 %v3081, %v1758
    %v3131 = vmul.f32 %v3082, %v1759
    %v3132 = vmul.f32 %v3083, 1.442695
    %v3133 = vpow.pop %v3132
    %v3134 = vmul.f32 %v3084, 1.442695
    %v3135 = vpow.pop %v3134
    %v3136 = vmul.f32 %v3085, 1.442695
    %v3137 = vpow.pop %v3136
    %v3138 = vmul.f32 %v3086, 1.442695
    %v3139 = vpow.pop %v3138
    %v3140 = vmul.f32 %v3087, 1.442695
    %v3141 = vpow.pop %v3140
    %v3142 = vmul.f32 %v3088, 1.442695
    %v3143 = vpow.pop %v3142
    %v3144 = vmul.f32 %v3089, 1.442695
    %v3145 = vpow.pop %v3144
    %v3146 = vmul.f32 %v3090, 1.442695
    %v3147 = vpow.pop %v3146
    %v3148 = vmul.f32 %v3091, 1.442695
    %v3149 = vpow.pop %v3148
    %v3150 = vmul.f32 %v3092, 1.442695
    %v3151 = vpow.pop %v3150
    %v3152 = vmul.f32 %v3093, 1.442695
    %v3153 = vpow.pop %v3152
    %v3154 = vmul.f32 %v3094, 1.442695
    %v3155 = vpow.pop %v3154
    %v3156 = vmul.f32 %v3095, 1.442695
    %v3157 = vpow.pop %v3156
    %v3158 = vmul.f32 %v3096, 1.442695
    %v3159 = vpow.pop %v3158
    %v3160 = vmul.f32 %v3097, 1.442695
    %v3161 = vpow.pop %v3160
    %v3162 = vmul.f32 %v3098, 1.442695
    %v3163 = vpow.pop %v3162
    %v3164 = vmul.f32 %v3099, 1.442695
    %v3165 = vpow.pop %v3164
    %v3166 = vmul.f32 %v3100, 1.442695
    %v3167 = vpow.pop %v3166
    %v3168 = vmul.f32 %v3101, 1.442695
    %v3169 = vpow.pop %v3168
    %v3170 = vmul.f32 %v3102, 1.442695
    %v3171 = vpow.pop %v3170
    %v3172 = vmul.f32 %v3103, 1.442695
    %v3173 = vpow.pop %v3172
    %v3174 = vmul.f32 %v3104, 1.442695
    %v3175 = vpow.pop %v3174
    %v3176 = vmul.f32 %v3105, 1.442695
    %v3177 = vpow.pop %v3176
    %v3178 = vmul.f32 %v3106, 1.442695
    %v3179 = vpow.pop %v3178
    %v3180 = vmul.f32 %v3107, 1.442695
    %v3181 = vpow.pop %v3180
    %v3182 = vmul.f32 %v3108, 1.442695
    %v3183 = vpow.pop %v3182
    %v3184 = vmul.f32 %v3109, 1.442695
    %v3185 = vpow.pop %v3184
    %v3186 = vmul.f32 %v3110, 1.442695
    %v3187 = vpow.pop %v3186
    %v3188 = vmul.f32 %v3111, 1.442695
    %v3189 = vpow.pop %v3188
    %v3190 = vmul.f32 %v3112, 1.442695
    %v3191 = vpow.pop %v3190
    %v3192 = vmul.f32 %v3113, 1.442695
    %v3193 = vpow.pop %v3192
    %v3194 = vmul.f32 %v3114, 1.442695
    %v3195 = vpow.pop %v3194
    %v3196 = vmul.f32 %v3115, 1.442695
    %v3197 = vpow.pop %v3196
    %v3198 = vmul.f32 %v3116, 1.442695
    %v3199 = vpow.pop %v3198
    %v3200 = vmul.f32 %v3117, 1.442695
    %v3201 = vpow.pop %v3200
    %v3202 = vmul.f32 %v3118, 1.442695
    %v3203 = vpow.pop %v3202
    %v3204 = vmul.f32 %v3119, 1.442695
    %v3205 = vpow.pop %v3204
    %v3206 = vmul.f32 %v3120, 1.442695
    %v3207 = vpow.pop %v3206
    %v3208 = vmul.f32 %v3121, 1.442695
    %v3209 = vpow.pop %v3208
    %v3210 = vmul.f32 %v3122, 1.442695
    %v3211 = vpow.pop %v3210
    %v3212 = vmul.f32 %v3123, 1.442695
    %v3213 = vpow.pop %v3212
    %v3214 = vmul.f32 %v3124, 1.442695
    %v3215 = vpow.pop %v3214
    %v3216 = vmul.f32 %v3125, 1.442695
    %v3217 = vpow.pop %v3216
    %v3218 = vmul.f32 %v3126, 1.442695
    %v3219 = vpow.pop %v3218
    %v3220 = vmul.f32 %v3127, 1.442695
    %v3221 = vpow.pop %v3220
    %v3222 = vmul.f32 %v3128, 1.442695
    %v3223 = vpow.pop %v3222
    %v3224 = vmul.f32 %v3129, 1.442695
    %v3225 = vpow.pop %v3224
    %v3226 = vmul.f32 %v3130, 1.442695
    %v3227 = vpow.pop %v3226
    %v3228 = vmul.f32 %v3131, 1.442695
    %v3229 = vpow.pop %v3228
    %v3230 = vmul.f32 %v2985, %v3133
    %v3231 = vmul.f32 %v2986, %v3135
    %v3232 = vmul.f32 %v2987, %v3137
    %v3233 = vmul.f32 %v2988, %v3139
    %v3234 = vmul.f32 %v2989, %v3141
    %v3235 = vmul.f32 %v2990, %v3143
    %v3236 = vmul.f32 %v2991, %v3145
    %v3237 = vmul.f32 %v2992, %v3147
    %v3238 = vmul.f32 %v2993, %v3149
    %v3239 = vmul.f32 %v2994, %v3151
    %v3240 = vmul.f32 %v2995, %v3153
    %v3241 = vmul.f32 %v2996, %v3155
    %v3242 = vmul.f32 %v2997, %v3157
    %v3243 = vmul.f32 %v2998, %v3159
    %v3244 = vmul.f32 %v2999, %v3161
    %v3245 = vmul.f32 %v3000, %v3163
    %v3246 = vmul.f32 %v3001, %v3165
    %v3247 = vmul.f32 %v3002, %v3167
    %v3248 = vmul.f32 %v3003, %v3169
    %v3249 = vmul.f32 %v3004, %v3171
    %v3250 = vmul.f32 %v3005, %v3173
    %v3251 = vmul.f32 %v3006, %v3175
    %v3252 = vmul.f32 %v3007, %v3177
    %v3253 = vmul.f32 %v3008, %v3179
    %v3254 = vmul.f32 %v3009, %v3181
    %v3255 = vmul.f32 %v3010, %v3183
    %v3256 = vmul.f32 %v3011, %v3185
    %v3257 = vmul.f32 %v3012, %v3187
    %v3258 = vmul.f32 %v3013, %v3189
    %v3259 = vmul.f32 %v3014, %v3191
    %v3260 = vmul.f32 %v3015, %v3193
    %v3261 = vmul.f32 %v3016, %v3195
    %v3262 = vmul.f32 %v3017, %v3197
    %v3263 = vmul.f32 %v3018, %v3199
    %v3264 = vmul.f32 %v3019, %v3201
    %v3265 = vmul.f32 %v3020, %v3203
    %v3266 = vmul.f32 %v3021, %v3205
    %v3267 = vmul.f32 %v3022, %v3207
    %v3268 = vmul.f32 %v3023, %v3209
    %v3269 = vmul.f32 %v3024, %v3211
    %v3270 = vmul.f32 %v3025, %v3213
    %v3271 = vmul.f32 %v3026, %v3215
    %v3272 = vmul.f32 %v3027, %v3217
    %v3273 = vmul.f32 %v3028, %v3219
    %v3274 = vmul.f32 %v3029, %v3221
    %v3275 = vmul.f32 %v3030, %v3223
    %v3276 = vmul.f32 %v3031, %v3225
    %v3277 = vmul.f32 %v3032, %v3227
    %v3278 = vmul.f32 %v3033, %v3229
    %v3279 = vsub.f32 1.0, %v3230
    %v3280 = vsub.f32 1.0, %v3231
    %v3281 = vsub.f32 1.0, %v3232
    %v3282 = vsub.f32 1.0, %v3233
    %v3283 = vsub.f32 1.0, %v3234
    %v3284 = vsub.f32 1.0, %v3235
    %v3285 = vsub.f32 1.0, %v3236
    %v3286 = vsub.f32 1.0, %v3237
    %v3287 = vsub.f32 1.0, %v3238
    %v3288 = vsub.f32 1.0, %v3239
    %v3289 = vsub.f32 1.0, %v3240
    %v3290 = vsub.f32 1.0, %v3241
    %v3291 = vsub.f32 1.0, %v3242
    %v3292 = vsub.f32 1.0, %v3243
    %v3293 = vsub.f32 1.0, %v3244
    %v3294 = vsub.f32 1.0, %v3245
    %v3295 = vsub.f32 1.0, %v3246
    %v3296 = vsub.f32 1.0, %v3247
    %v3297 = vsub.f32 1.0, %v3248
    %v3298 = vsub.f32 1.0, %v3249
    %v3299 = vsub.f32 1.0, %v3250
    %v3300 = vsub.f32 1.0, %v3251
    %v3301 = vsub.f32 1.0, %v3252
    %v3302 = vsub.f32 1.0, %v3253
    %v3303 = vsub.f32 1.0, %v3254
    %v3304 = vsub.f32 1.0, %v3255
    %v3305 = vsub.f32 1.0, %v3256
    %v3306 = vsub.f32 1.0, %v3257
    %v3307 = vsub.f32 1.0, %v3258
    %v3308 = vsub.f32 1.0, %v3259
    %v3309 = vsub.f32 1.0, %v3260
    %v3310 = vsub.f32 1.0, %v3261
    %v3311 = vsub.f32 1.0, %v3262
    %v3312 = vsub.f32 1.0, %v3263
    %v3313 = vsub.f32 1.0, %v3264
    %v3314 = vsub.f32 1.0, %v3265
    %v3315 = vsub.f32 1.0, %v3266
    %v3316 = vsub.f32 1.0, %v3267
    %v3317 = vsub.f32 1.0, %v3268
    %v3318 = vsub.f32 1.0, %v3269
    %v3319 = vsub.f32 1.0, %v3270
    %v3320 = vsub.f32 1.0, %v3271
    %v3321 = vsub.f32 1.0, %v3272
    %v3322 = vsub.f32 1.0, %v3273
    %v3323 = vsub.f32 1.0, %v3274
    %v3324 = vsub.f32 1.0, %v3275
    %v3325 = vsub.f32 1.0, %v3276
    %v3326 = vsub.f32 1.0, %v3277
    %v3327 = vsub.f32 1.0, %v3278
    %v3328 = vmul.f32 %v1662, %v3279
    %v3329 = vmul.f32 %v1663, %v3280
    %v3330 = vmul.f32 %v1664, %v3281
    %v3331 = vmul.f32 %v1665, %v3282
    %v3332 = vmul.f32 %v1666, %v3283
    %v3333 = vmul.f32 %v1667, %v3284
    %v3334 = vmul.f32 %v1668, %v3285
    %v3335 = vmul.f32 %v1669, %v3286
    %v3336 = vmul.f32 %v1670, %v3287
    %v3337 = vmul.f32 %v1671, %v3288
    %v3338 = vmul.f32 %v1672, %v3289
    %v3339 = vmul.f32 %v1673, %v3290
    %v3340 = vmul.f32 %v1674, %v3291
    %v3341 = vmul.f32 %v1675, %v3292
    %v3342 = vmul.f32 %v1676, %v3293
    %v3343 = vmul.f32 %v1677, %v3294
    %v3344 = vmul.f32 %v1678, %v3295
    %v3345 = vmul.f32 %v1679, %v3296
    %v3346 = vmul.f32 %v1680, %v3297
    %v3347 = vmul.f32 %v1681, %v3298
    %v3348 = vmul.f32 %v1682, %v3299
    %v3349 = vmul.f32 %v1683, %v3300
    %v3350 = vmul.f32 %v1684, %v3301
    %v3351 = vmul.f32 %v1685, %v3302
    %v3352 = vmul.f32 %v1686, %v3303
    %v3353 = vmul.f32 %v1687, %v3304
    %v3354 = vmul.f32 %v1688, %v3305
    %v3355 = vmul.f32 %v1689, %v3306
    %v3356 = vmul.f32 %v1690, %v3307
    %v3357 = vmul.f32 %v1691, %v3308
    %v3358 = vmul.f32 %v1692, %v3309
    %v3359 = vmul.f32 %v1693, %v3310
    %v3360 = vmul.f32 %v1694, %v3311
    %v3361 = vmul.f32 %v1695, %v3312
    %v3362 = vmul.f32 %v1696, %v3313
    %v3363 = vmul.f32 %v1697, %v3314
    %v3364 = vmul.f32 %v1698, %v3315
    %v3365 = vmul.f32 %v1699, %v3316
    %v3366 = vmul.f32 %v1700, %v3317
    %v3367 = vmul.f32 %v1701, %v3318
    %v3368 = vmul.f32 %v1702, %v3319
    %v3369 = vmul.f32 %v1703, %v3320
    %v3370 = vmul.f32 %v1704, %v3321
    %v3371 = vmul.f32 %v1705, %v3322
    %v3372 = vmul.f32 %v1706, %v3323
    %v3373 = vmul.f32 %v1707, %v3324
    %v3374 = vmul.f32 %v1708, %v3325
    %v3375 = vmul.f32 %v1709, %v3326
    %v3376 = vmul.f32 %v1710, %v3327
    %v3377 = vadd.f32 %v3328, 1.0
    %v3378 = vadd.f32 %v3329, 1.0
    %v3379 = vadd.f32 %v3330, 1.0
    %v3380 = vadd.f32 %v3331, 1.0
    %v3381 = vadd.f32 %v3332, 1.0
    %v3382 = vadd.f32 %v3333, 1.0
    %v3383 = vadd.f32 %v3334, 1.0
    %v3384 = vadd.f32 %v3335, 1.0
    %v3385 = vadd.f32 %v3336, 1.0
    %v3386 = vadd.f32 %v3337, 1.0
    %v3387 = vadd.f32 %v3338, 1.0
    %v3388 = vadd.f32 %v3339, 1.0
    %v3389 = vadd.f32 %v3340, 1.0
    %v3390 = vadd.f32 %v3341, 1.0
    %v3391 = vadd.f32 %v3342, 1.0
    %v3392 = vadd.f32 %v3343, 1.0
    %v3393 = vadd.f32 %v3344, 1.0
    %v3394 = vadd.f32 %v3345, 1.0
    %v3395 = vadd.f32 %v3346, 1.0
    %v3396 = vadd.f32 %v3347, 1.0
    %v3397 = vadd.f32 %v3348, 1.0
    %v3398 = vadd.f32 %v3349, 1.0
    %v3399 = vadd.f32 %v3350, 1.0
    %v3400 = vadd.f32 %v3351, 1.0
    %v3401 = vadd.f32 %v3352, 1.0
    %v3402 = vadd.f32 %v3353, 1.0
    %v3403 = vadd.f32 %v3354, 1.0
    %v3404 = vadd.f32 %v3355, 1.0
    %v3405 = vadd.f32 %v3356, 1.0
    %v3406 = vadd.f32 %v3357, 1.0
    %v3407 = vadd.f32 %v3358, 1.0
    %v3408 = vadd.f32 %v3359, 1.0
    %v3409 = vadd.f32 %v3360, 1.0
    %v3410 = vadd.f32 %v3361, 1.0
    %v3411 = vadd.f32 %v3362, 1.0
    %v3412 = vadd.f32 %v3363, 1.0
    %v3413 = vadd.f32 %v3364, 1.0
    %v3414 = vadd.f32 %v3365, 1.0
    %v3415 = vadd.f32 %v3366, 1.0
    %v3416 = vadd.f32 %v3367, 1.0
    %v3417 = vadd.f32 %v3368, 1.0
    %v3418 = vadd.f32 %v3369, 1.0
    %v3419 = vadd.f32 %v3370, 1.0
    %v3420 = vadd.f32 %v3371, 1.0
    %v3421 = vadd.f32 %v3372, 1.0
    %v3422 = vadd.f32 %v3373, 1.0
    %v3423 = vadd.f32 %v3374, 1.0
    %v3424 = vadd.f32 %v3375, 1.0
    %v3425 = vadd.f32 %v3376, 1.0
    %v3426 = vmul.f32 %v1515, %v3377
    %v3427 = vmul.f32 %v1516, %v3378
    %v3428 = vmul.f32 %v1517, %v3379
    %v3429 = vmul.f32 %v1518, %v3380
    %v3430 = vmul.f32 %v1519, %v3381
    %v3431 = vmul.f32 %v1520, %v3382
    %v3432 = vmul.f32 %v1521, %v3383
    %v3433 = vmul.f32 %v1522, %v3384
    %v3434 = vmul.f32 %v1523, %v3385
    %v3435 = vmul.f32 %v1524, %v3386
    %v3436 = vmul.f32 %v1525, %v3387
    %v3437 = vmul.f32 %v1526, %v3388
    %v3438 = vmul.f32 %v1527, %v3389
    %v3439 = vmul.f32 %v1528, %v3390
    %v3440 = vmul.f32 %v1529, %v3391
    %v3441 = vmul.f32 %v1530, %v3392
    %v3442 = vmul.f32 %v1531, %v3393
    %v3443 = vmul.f32 %v1532, %v3394
    %v3444 = vmul.f32 %v1533, %v3395
    %v3445 = vmul.f32 %v1534, %v3396
    %v3446 = vmul.f32 %v1535, %v3397
    %v3447 = vmul.f32 %v1536, %v3398
    %v3448 = vmul.f32 %v1537, %v3399
    %v3449 = vmul.f32 %v1538, %v3400
    %v3450 = vmul.f32 %v1539, %v3401
    %v3451 = vmul.f32 %v1540, %v3402
    %v3452 = vmul.f32 %v1541, %v3403
    %v3453 = vmul.f32 %v1542, %v3404
    %v3454 = vmul.f32 %v1543, %v3405
    %v3455 = vmul.f32 %v1544, %v3406
    %v3456 = vmul.f32 %v1545, %v3407
    %v3457 = vmul.f32 %v1546, %v3408
    %v3458 = vmul.f32 %v1547, %v3409
    %v3459 = vmul.f32 %v1548, %v3410
    %v3460 = vmul.f32 %v1549, %v3411
    %v3461 = vmul.f32 %v1550, %v3412
    %v3462 = vmul.f32 %v1551, %v3413
    %v3463 = vmul.f32 %v1552, %v3414
    %v3464 = vmul.f32 %v1553, %v3415
    %v3465 = vmul.f32 %v1554, %v3416
    %v3466 = vmul.f32 %v1555, %v3417
    %v3467 = vmul.f32 %v1556, %v3418
    %v3468 = vmul.f32 %v1557, %v3419
    %v3469 = vmul.f32 %v1558, %v3420
    %v3470 = vmul.f32 %v1559, %v3421
    %v3471 = vmul.f32 %v1560, %v3422
    %v3472 = vmul.f32 %v1561, %v3423
    %v3473 = vmul.f32 %v1562, %v3424
    %v3474 = vmul.f32 %v1563, %v3425
    %v3475 = vpack.c.bf16 %v3426, %v3426
    %v3476 = vpack.c.bf16 %v3427, %v3427
    %v3477 = vpack.c.bf16 %v3428, %v3428
    %v3478 = vpack.c.bf16 %v3429, %v3429
    %v3479 = vpack.c.bf16 %v3430, %v3430
    %v3480 = vpack.c.bf16 %v3431, %v3431
    %v3481 = vpack.c.bf16 %v3432, %v3432
    %v3482 = vpack.c.bf16 %v3433, %v3433
    %v3483 = vpack.c.bf16 %v3434, %v3434
    %v3484 = vpack.c.bf16 %v3435, %v3435
    %v3485 = vpack.c.bf16 %v3436, %v3436
    %v3486 = vpack.c.bf16 %v3437, %v3437
    %v3487 = vpack.c.bf16 %v3438, %v3438
    %v3488 = vpack.c.bf16 %v3439, %v3439
    %v3489 = vpack.c.bf16 %v3440, %v3440
    %v3490 = vpack.c.bf16 %v3441, %v3441
    %v3491 = vpack.c.bf16 %v3442, %v3442
    %v3492 = vpack.c.bf16 %v3443, %v3443
    %v3493 = vpack.c.bf16 %v3444, %v3444
    %v3494 = vpack.c.bf16 %v3445, %v3445
    %v3495 = vpack.c.bf16 %v3446, %v3446
    %v3496 = vpack.c.bf16 %v3447, %v3447
    %v3497 = vpack.c.bf16 %v3448, %v3448
    %v3498 = vpack.c.bf16 %v3449, %v3449
    %v3499 = vpack.c.bf16 %v3450, %v3450
    %v3500 = vpack.c.bf16 %v3451, %v3451
    %v3501 = vpack.c.bf16 %v3452, %v3452
    %v3502 = vpack.c.bf16 %v3453, %v3453
    %v3503 = vpack.c.bf16 %v3454, %v3454
    %v3504 = vpack.c.bf16 %v3455, %v3455
    %v3505 = vpack.c.bf16 %v3456, %v3456
    %v3506 = vpack.c.bf16 %v3457, %v3457
    %v3507 = vpack.c.bf16 %v3458, %v3458
    %v3508 = vpack.c.bf16 %v3459, %v3459
    %v3509 = vpack.c.bf16 %v3460, %v3460
    %v3510 = vpack.c.bf16 %v3461, %v3461
    %v3511 = vpack.c.bf16 %v3462, %v3462
    %v3512 = vpack.c.bf16 %v3463, %v3463
    %v3513 = vpack.c.bf16 %v3464, %v3464
    %v3514 = vpack.c.bf16 %v3465, %v3465
    %v3515 = vpack.c.bf16 %v3466, %v3466
    %v3516 = vpack.c.bf16 %v3467, %v3467
    %v3517 = vpack.c.bf16 %v3468, %v3468
    %v3518 = vpack.c.bf16 %v3469, %v3469
    %v3519 = vpack.c.bf16 %v3470, %v3470
    %v3520 = vpack.c.bf16 %v3471, %v3471
    %v3521 = vpack.c.bf16 %v3472, %v3472
    %v3522 = vpack.c.bf16 %v3473, %v3473
    %v3523 = vpack.c.bf16 %v3474, %v3474
    %3524 = vst [vmem:[#allocation7] sm:$0xf] %v3475
    %3525 = vst [vmem:[#allocation7 + $0x4] sm:$0xf] %v3476
    %3526 = vst [vmem:[#allocation7 + $0x8] sm:$0xf] %v3477
    %3527 = vst [vmem:[#allocation7 + $0xc] sm:$0xf] %v3478
    %3528 = vst [vmem:[#allocation7 + $0x10] sm:$0xf] %v3479
    %3529 = vst [vmem:[#allocation7 + $0x14] sm:$0xf] %v3480
    %3530 = vst [vmem:[#allocation7 + $0x18] sm:$0xf] %v3481
    %3531 = vst [vmem:[#allocation7 + $0x1c] sm:$0xf] %v3482
    %3532 = vst [vmem:[#allocation7 + $0x20] sm:$0xf] %v3483
    %3533 = vst [vmem:[#allocation7 + $0x24] sm:$0xf] %v3484
    %3534 = vst [vmem:[#allocation7 + $0x28] sm:$0xf] %v3485
    %3535 = vst [vmem:[#allocation7 + $0x2c] sm:$0xf] %v3486
    %3536 = vst [vmem:[#allocation7 + $0x30] sm:$0xf] %v3487
    %3537 = vst [vmem:[#allocation7 + $0x34] sm:$0xf] %v3488
    %3538 = vst [vmem:[#allocation7 + $0x38] sm:$0xf] %v3489
    %3539 = vst [vmem:[#allocation7 + $0x3c] sm:$0xf] %v3490
    %3540 = vst [vmem:[#allocation7 + $0x40] sm:$0xf] %v3491
    %3541 = vst [vmem:[#allocation7 + $0x44] sm:$0xf] %v3492
    %3542 = vst [vmem:[#allocation7 + $0x48] sm:$0xf] %v3493
    %3543 = vst [vmem:[#allocation7 + $0x4c] sm:$0xf] %v3494
    %3544 = vst [vmem:[#allocation7 + $0x50] sm:$0xf] %v3495
    %3545 = vst [vmem:[#allocation7 + $0x54] sm:$0xf] %v3496
    %3546 = vst [vmem:[#allocation7 + $0x58] sm:$0xf] %v3497
    %3547 = vst [vmem:[#allocation7 + $0x5c] sm:$0xf] %v3498
    %3548 = vst [vmem:[#allocation7 + $0x60] sm:$0xf] %v3499
    %3549 = vst [vmem:[#allocation7 + $0x64] sm:$0xf] %v3500
    %3550 = vst [vmem:[#allocation7 + $0x68] sm:$0xf] %v3501
    %3551 = vst [vmem:[#allocation7 + $0x6c] sm:$0xf] %v3502
    %3552 = vst [vmem:[#allocation7 + $0x70] sm:$0xf] %v3503
    %3553 = vst [vmem:[#allocation7 + $0x74] sm:$0xf] %v3504
    %3554 = vst [vmem:[#allocation7 + $0x78] sm:$0xf] %v3505
    %3555 = vst [vmem:[#allocation7 + $0x7c] sm:$0xf] %v3506
    %3556 = vst [vmem:[#allocation7 + $0x80] sm:$0xf] %v3507
    %3557 = vst [vmem:[#allocation7 + $0x84] sm:$0xf] %v3508
    %3558 = vst [vmem:[#allocation7 + $0x88] sm:$0xf] %v3509
    %3559 = vst [vmem:[#allocation7 + $0x8c] sm:$0xf] %v3510
    %3560 = vst [vmem:[#allocation7 + $0x90] sm:$0xf] %v3511
    %3561 = vst [vmem:[#allocation7 + $0x94] sm:$0xf] %v3512
    %3562 = vst [vmem:[#allocation7 + $0x98] sm:$0xf] %v3513
    %3563 = vst [vmem:[#allocation7 + $0x9c] sm:$0xf] %v3514
    %3564 = vst [vmem:[#allocation7 + $0xa0] sm:$0xf] %v3515
    %3565 = vst [vmem:[#allocation7 + $0xa4] sm:$0xf] %v3516
    %3566 = vst [vmem:[#allocation7 + $0xa8] sm:$0xf] %v3517
    %3567 = vst [vmem:[#allocation7 + $0xac] sm:$0xf] %v3518
    %3568 = vst [vmem:[#allocation7 + $0xb0] sm:$0xf] %v3519
    %3569 = vst [vmem:[#allocation7 + $0xb4] sm:$0xf] %v3520
    %3570 = vst [vmem:[#allocation7 + $0xb8] sm:$0xf] %v3521
    %3571 = vst [vmem:[#allocation7 + $0xbc] sm:$0xf] %v3522
    %3572 = vst [vmem:[#allocation7 + $0xc0] sm:$0xf] %v3523
    // Predicated region
    $region30: #{tpu_custom_call.1} parent=1 // pred_check
      _
    $region31: #{tpu_custom_call.1} parent=1 // pred_check_branch
      %3574 = sbr.rel (0) target = $region33
    $region32: #{tpu_custom_call.1} parent=1 // pred_region
      %3576 = vsyncadd [#allocation4], 0
      %s3577 = sshll.u32 [#allocation7], 4
      %s3578 = int_to_ptr.vmem [resolvable:$true] %s3577
      %s3579 = sshll.u32 %s5, 4
      %s3580 = int_to_ptr.hbm [resolvable:$true] %s3579
      %3585 = dma.vmem_to_hbm [thread:$0]  %s3578, 3136, %s3580, [#allocation4], 64, 64, 4
    $region33: #{tpu_custom_call.1} parent=1 // pred_fallthru
      _
    // Predicated region
    $region34: #{tpu_custom_call.1} parent=1 // pred_check
      _
    $region35: #{tpu_custom_call.1} parent=1 // pred_check_branch
      %3587 = sbr.rel (0) target = $region37
    $region36: #{tpu_custom_call.1} parent=1 // pred_region
      %3589 = dma.done [#allocation4], 3136
    $region37: #{tpu_custom_call.1} parent=1 // pred_fallthru
      _
    %3590 = vsyncpa [#allocation3], 1
    %3591 = vsyncpa [#allocation6], 1
    %3592 = vsyncpa [#allocation4], 1

</llo_original>
